<compile_context>
chip_gen: v5e
topology: v5e:2x2
jax: 0.10.0
libtpu: 0.0.40
codegen_flags: <defaults>
</compile_context>

<pallas_src>
from functools import partial
from math import ceil

import jax
import jax.numpy as jnp
from jax.experimental import pallas as pl
from jax.experimental.pallas import tpu as pltpu

LEAKY_SLOPE = 0.2
BN_EPS = 1e-5

# Order of the kernel's input refs (activations first, then parameters).
_INPUT_NAMES = (
    "rf", "ff",
    "enc_c1_w",
    "enc_c2_w", "enc_bn2_g", "enc_bn2_b",
    "enc_c3_w", "enc_bn3_g", "enc_bn3_b",
    "enc_lin_w", "enc_lin_b",
    "mlp1_w_rf", "mlp1_w_enc", "mlp1_b",
    "mlp2_w", "mlp2_b",
    "mlp3_w", "mlp3_b",
    "dec_lin_w", "dec_lin_b",
    "dec_t1_w", "dec_bn1_g", "dec_bn1_b",
    "dec_t2_w", "dec_bn2_g", "dec_bn2_b",
    "dec_t3_w", "dec_t3_b",
    "bl1_w", "bl1_b",
    "bl2_w", "bl2_b",
)


# ----------------------------------------------------------------------------
# Fused Pallas kernel (built for static batch size / layer lengths).
# ----------------------------------------------------------------------------
def _make_generator_kernel(batch, enc_lens, dec_lens):
    L0, L1, L2, L3 = enc_lens
    D0, D1, D2, D3 = dec_lens
    n_in = len(_INPUT_NAMES)

    # weight name -> (Cin, Cout, Lin, Lout, is_transposed)
    conv_cfg = {
        "enc_c1_w": (1, 8, L0, L1, False),
        "enc_c2_w": (8, 16, L1, L2, False),
        "enc_c3_w": (16, 1, L2, L3, False),
        "dec_t1_w": (1, 16, D0, D1, True),
        "dec_t2_w": (16, 8, D1, D2, True),
        "dec_t3_w": (8, 1, D2, D3, True),
    }

    def kernel(*refs):
        r = dict(zip(_INPUT_NAMES, refs[:n_in]))
        cur_ref, bl_ref = refs[n_in], refs[n_in + 1]

        def lrelu(v):
            return jnp.where(v >= 0, v, LEAKY_SLOPE * v)

        def mm(a, b):
            return jnp.dot(a, b, preferred_element_type=jnp.float32)

        def dense(x, w_name, b_name):
            return mm(x, r[w_name][...]) + r[b_name][...]

        def conv(x, w_name):
            # Strided Conv1d / ConvTranspose1d (K=3, stride=2, pad=1) on the
            # (batch*channel, length) activation layout:
            #     out = sum_k  blockdiag_B(W_k) @ (x @ S_k)
            # S_k is the 0/1 tap-selection matrix generated here from iotas
            # (zero HBM traffic; also encodes zero padding / output_padding);
            # blockdiag_B(W_k) is a tiny host-built matrix of real weights.
            _cin, cout, lin, lout, transposed = conv_cfg[w_name]
            w_ref = r[w_name]                                 # (3, B*cout, B*cin)
            li = jax.lax.broadcasted_iota(jnp.int32, (lin, lout), 0)
            lo = jax.lax.broadcasted_iota(jnp.int32, (lin, lout), 1)
            out = None
            for k in range(3):
                if transposed:
                    sel = (lo == 2 * li + (k - 1))            # lo = 2*li + k - 1
                else:
                    sel = (li == 2 * lo + (k - 1))            # li = 2*lo + k - 1
                y = mm(x, sel.astype(jnp.float32))            # (B*cin, lout)
                term = mm(w_ref[k], y)                        # (B*cout, lout)
                out = term if out is None else out + term
            return out

        def bn_lrelu(x, g_name, b_name, c):
            # Training-mode BatchNorm1d(c) + LeakyReLU on (B*c, L) rows.
            # Per-channel scale/shift computed once in (c, 1) space
            # (E[x^2] - mean^2, clamped >= 0), applied with one fused FMA.
            length = x.shape[1]
            row_sum = jnp.sum(x, axis=1, keepdims=True)       # (B*c, 1)
            row_sq = jnp.sum(x * x, axis=1, keepdims=True)    # (B*c, 1)
            ch_sum, ch_sq = row_sum[0:c, :], row_sq[0:c, :]
            for b in range(1, batch):
                ch_sum = ch_sum + row_sum[b * c:(b + 1) * c, :]
                ch_sq = ch_sq + row_sq[b * c:(b + 1) * c, :]
            inv_n = 1.0 / float(batch * length)
            mean = ch_sum * inv_n                             # (c, 1)
            var = jnp.maximum(ch_sq * inv_n - mean * mean, 0.0)
            scale = r[g_name][...] * jax.lax.rsqrt(var + BN_EPS)
            shift = r[b_name][...] - mean * scale
            if batch > 1:
                scale = jnp.concatenate([scale] * batch, axis=0)
                shift = jnp.concatenate([shift] * batch, axis=0)
            return lrelu(x * scale + shift)

        # ---------------- ConvolutionalEncoder ----------------
        x = lrelu(conv(r["ff"][...], "enc_c1_w"))                      # (B*8, L1)
        x = bn_lrelu(conv(x, "enc_c2_w"), "enc_bn2_g", "enc_bn2_b", 16)
        x = bn_lrelu(conv(x, "enc_c3_w"), "enc_bn3_g", "enc_bn3_b", 1)  # (B, L3)
        encoded = lrelu(dense(x, "enc_lin_w", "enc_lin_b"))            # (B, 10)

        # ---------------- combine with rf settings ----------------
        # concat([rf, encoded]) @ W  ==  rf @ W[:5] + encoded @ W[5:]
        z = mm(r["rf"][...], r["mlp1_w_rf"][...]) \
            + mm(encoded, r["mlp1_w_enc"][...]) + r["mlp1_b"][...]
        z = lrelu(z)                                                   # (B, 50)
        z = lrelu(dense(z, "mlp2_w", "mlp2_b"))                        # (B, 20)
        latent = lrelu(dense(z, "mlp3_w", "mlp3_b"))                   # (B, 10)

        # ---------------- ConvolutionalDecoder ----------------
        y = lrelu(dense(latent, "dec_lin_w", "dec_lin_b"))             # (B, D0)
        y = bn_lrelu(conv(y, "dec_t1_w"), "dec_bn1_g", "dec_bn1_b", 16)
        y = bn_lrelu(conv(y, "dec_t2_w"), "dec_bn2_g", "dec_bn2_b", 8)
        y = conv(y, "dec_t3_w") + r["dec_t3_b"][...]                   # (B, D3)
        cur_ref[...] = jnp.maximum(y, 0.0)                             # ReLU

        # ---------------- bunch length head ----------------
        h = lrelu(dense(latent, "bl1_w", "bl1_b"))                     # (B, 20)
        bl = dense(h, "bl2_w", "bl2_b")                                # (B, 1)
        # Softplus(beta=1, threshold=20), as in torch.
        bl_ref[...] = jnp.where(bl > 20.0, bl,
                                jnp.log1p(jnp.exp(jnp.minimum(bl, 20.0))))

    return kernel


# ----------------------------------------------------------------------------
# Wrapper: per-tap block-diagonal conv weights + pallas_call.
# ----------------------------------------------------------------------------
def _blockdiag_taps(w, transposed, batch):
    """(Cout,Cin,3) conv / (Cin,Cout,3) transposed-conv weight ->
    stacked per-tap block-diagonal matrices (3, batch*Cout, batch*Cin)."""
    if transposed:
        taps = [jnp.transpose(w[:, :, k]) for k in range(3)]   # (Cout, Cin)
    else:
        taps = [w[:, :, k] for k in range(3)]
    eye = jnp.eye(batch, dtype=jnp.float32)
    return jnp.stack([jnp.kron(eye, t.astype(jnp.float32)) for t in taps])


@partial(jax.jit, static_argnames=("num_current_samples",))
def generator_forward(params, rf_settings, formfactor, num_current_samples=300):
    """Fused Generator forward. Returns (current_profile, bunch_length)."""
    B = rf_settings.shape[0]

    # Static layer lengths (mirror the PyTorch module's arithmetic).
    L0 = formfactor.shape[1]
    L1 = (L0 - 1) // 2 + 1
    L2 = (L1 - 1) // 2 + 1
    L3 = (L2 - 1) // 2 + 1
    D0 = ceil(num_current_samples / 8)
    D1 = 2 * D0 - 1 + int(num_current_samples % 8 == 0)
    D2 = 2 * D1 - 1 + int(num_current_samples % 4 == 0)
    D3 = 2 * D2 - 1 + int(num_current_samples % 2 == 0)

    tensors = {
        "rf": rf_settings.astype(jnp.float32),
        "ff": formfactor.astype(jnp.float32),
        "enc_c1_w": _blockdiag_taps(params["enc_c1_w"], False, B),
        "enc_c2_w": _blockdiag_taps(params["enc_c2_w"], False, B),
        "enc_c3_w": _blockdiag_taps(params["enc_c3_w"], False, B),
        "dec_t1_w": _blockdiag_taps(params["dec_t1_w"], True, B),
        "dec_t2_w": _blockdiag_taps(params["dec_t2_w"], True, B),
        "dec_t3_w": _blockdiag_taps(params["dec_t3_w"], True, B),
    }
    for name in _INPUT_NAMES:
        if name not in tensors:
            tensors[name] = params[name].astype(jnp.float32)
    inputs = [tensors[name] for name in _INPUT_NAMES]

    kernel = _make_generator_kernel(B, (L0, L1, L2, L3), (D0, D1, D2, D3))
    vmem = pl.BlockSpec(memory_space=pltpu.MemorySpace.VMEM)
    return pl.pallas_call(
        kernel,
        out_shape=(jax.ShapeDtypeStruct((B, D3), jnp.float32),
                   jax.ShapeDtypeStruct((B, 1), jnp.float32)),
        in_specs=[vmem] * len(inputs),
        out_specs=(vmem, vmem),
    )(*inputs)


# ----------------------------------------------------------------------------
# Parameter setup (PyTorch-style shapes / default uniform init).
# ----------------------------------------------------------------------------
def init_generator_params(key,
                          num_rf_settings=5,
                          num_formfactor_samples=240,
                          num_current_samples=300,
                          encoded_formfactor_dims=10,
                          latent_dims=10):
    keys = iter(jax.random.split(key, 32))

    def u(shape, fan_in):
        bound = 1.0 / float(fan_in) ** 0.5
        return jax.random.uniform(next(keys), shape, jnp.float32, -bound, bound)

    p = {}

    # ---------------- ConvolutionalEncoder (convs bias=False) --------------
    p["enc_c1_w"] = u((8, 1, 3), 1 * 3)        # Conv1d(1, 8, 3, s=2, p=1)
    p["enc_c2_w"] = u((16, 8, 3), 8 * 3)       # Conv1d(8, 16, 3, s=2, p=1)
    p["enc_c3_w"] = u((1, 16, 3), 16 * 3)      # Conv1d(16, 1, 3, s=2, p=1)
    p["enc_bn2_g"] = jnp.ones((16, 1), jnp.float32)
    p["enc_bn2_b"] = jnp.zeros((16, 1), jnp.float32)
    p["enc_bn3_g"] = jnp.ones((1, 1), jnp.float32)
    p["enc_bn3_b"] = jnp.zeros((1, 1), jnp.float32)
    enc_lin_in = ceil(num_formfactor_samples / 8)
    p["enc_lin_w"] = u((enc_lin_in, encoded_formfactor_dims), enc_lin_in)
    p["enc_lin_b"] = u((1, encoded_formfactor_dims), enc_lin_in)

    # ---------------- scalar_spectral_combine_mlp --------------------------
    d_in = encoded_formfactor_dims + num_rf_settings
    w1 = u((d_in, 50), d_in)
    p["mlp1_w_rf"] = w1[:num_rf_settings]      # rows for rf_settings
    p["mlp1_w_enc"] = w1[num_rf_settings:]     # rows for encoded formfactor
    p["mlp1_b"] = u((1, 50), d_in)
    p["mlp2_w"], p["mlp2_b"] = u((50, 20), 50), u((1, 20), 50)
    p["mlp3_w"], p["mlp3_b"] = u((20, latent_dims), 20), u((1, latent_dims), 20)

    # ---------------- ConvolutionalDecoder ---------------------------------
    dec_lin_out = ceil(num_current_samples / 8)
    p["dec_lin_w"] = u((latent_dims, dec_lin_out), latent_dims)
    p["dec_lin_b"] = u((1, dec_lin_out), latent_dims)
    p["dec_t1_w"] = u((1, 16, 3), 1 * 3)       # ConvTranspose1d(1, 16, bias=False)
    p["dec_t2_w"] = u((16, 8, 3), 16 * 3)      # ConvTranspose1d(16, 8, bias=False)
    p["dec_t3_w"] = u((8, 1, 3), 8 * 3)        # ConvTranspose1d(8, 1, bias=True)
    p["dec_t3_b"] = u((1, 1), 8 * 3)
    p["dec_bn1_g"] = jnp.ones((16, 1), jnp.float32)
    p["dec_bn1_b"] = jnp.zeros((16, 1), jnp.float32)
    p["dec_bn2_g"] = jnp.ones((8, 1), jnp.float32)
    p["dec_bn2_b"] = jnp.zeros((8, 1), jnp.float32)

    # ---------------- bunch_length_decoder ----------------------------------
    p["bl1_w"], p["bl1_b"] = u((latent_dims, 20), latent_dims), u((1, 20), latent_dims)
    p["bl2_w"], p["bl2_b"] = u((20, 1), 20), u((1, 1), 20)
    return p


if __name__ == "__main__":
    NUM_RF = 5
    NUM_FF = 240
    NUM_CUR = 300
    B = 2

    key = jax.random.PRNGKey(0)
    pkey, rkey, fkey = jax.random.split(key, 3)

    params = init_generator_params(
        pkey,
        num_rf_settings=NUM_RF,
        num_formfactor_samples=NUM_FF,
        num_current_samples=NUM_CUR,
        encoded_formfactor_dims=10,
        latent_dims=10,
    )

    rf_settings = jax.random.normal(rkey, (B, NUM_RF), jnp.float32)
    formfactor = jax.random.normal(fkey, (B, NUM_FF), jnp.float32)

    current_profile, bunch_length = generator_forward(
        params, rf_settings, formfactor, num_current_samples=NUM_CUR)
    jax.block_until_ready((current_profile, bunch_length))

    assert current_profile.shape == (B, NUM_CUR), current_profile.shape
    assert bunch_length.shape == (B, 1), bunch_length.shape
    assert bool(jnp.all(jnp.isfinite(current_profile)))
    assert bool(jnp.all(current_profile >= 0.0))      # ReLU output
    assert bool(jnp.all(jnp.isfinite(bunch_length)))
    assert bool(jnp.all(bunch_length >= 0.0))          # Softplus output
    print("KERNEL_OK")
</pallas_src>

<mosaic_0001>
module attributes {stable_mosaic.version = 11 : i64} {
  func.func @kernel(%arg0: memref<2x5xf32, #tpu.memory_space<vmem>>, %arg1: memref<2x240xf32, #tpu.memory_space<vmem>>, %arg2: memref<3x16x2xf32, #tpu.memory_space<vmem>>, %arg3: memref<3x32x16xf32, #tpu.memory_space<vmem>>, %arg4: memref<16x1xf32, #tpu.memory_space<vmem>>, %arg5: memref<16x1xf32, #tpu.memory_space<vmem>>, %arg6: memref<3x2x32xf32, #tpu.memory_space<vmem>>, %arg7: memref<1x1xf32, #tpu.memory_space<vmem>>, %arg8: memref<1x1xf32, #tpu.memory_space<vmem>>, %arg9: memref<30x10xf32, #tpu.memory_space<vmem>>, %arg10: memref<1x10xf32, #tpu.memory_space<vmem>>, %arg11: memref<5x50xf32, #tpu.memory_space<vmem>>, %arg12: memref<10x50xf32, #tpu.memory_space<vmem>>, %arg13: memref<1x50xf32, #tpu.memory_space<vmem>>, %arg14: memref<50x20xf32, #tpu.memory_space<vmem>>, %arg15: memref<1x20xf32, #tpu.memory_space<vmem>>, %arg16: memref<20x10xf32, #tpu.memory_space<vmem>>, %arg17: memref<1x10xf32, #tpu.memory_space<vmem>>, %arg18: memref<10x38xf32, #tpu.memory_space<vmem>>, %arg19: memref<1x38xf32, #tpu.memory_space<vmem>>, %arg20: memref<3x32x2xf32, #tpu.memory_space<vmem>>, %arg21: memref<16x1xf32, #tpu.memory_space<vmem>>, %arg22: memref<16x1xf32, #tpu.memory_space<vmem>>, %arg23: memref<3x16x32xf32, #tpu.memory_space<vmem>>, %arg24: memref<8x1xf32, #tpu.memory_space<vmem>>, %arg25: memref<8x1xf32, #tpu.memory_space<vmem>>, %arg26: memref<3x2x16xf32, #tpu.memory_space<vmem>>, %arg27: memref<1x1xf32, #tpu.memory_space<vmem>>, %arg28: memref<10x20xf32, #tpu.memory_space<vmem>>, %arg29: memref<1x20xf32, #tpu.memory_space<vmem>>, %arg30: memref<20x1xf32, #tpu.memory_space<vmem>>, %arg31: memref<1x1xf32, #tpu.memory_space<vmem>>, %arg32: memref<2x300xf32, #tpu.memory_space<vmem>>, %arg33: memref<2x1xf32, #tpu.memory_space<vmem>>) attributes {dimension_semantics = [], scalar_prefetch = 0 : i64, scratch_operands = 0 : i64, tpu.core_type = #tpu.core_type<tc>} {
    %c0 = arith.constant 0 : index
    %c0_0 = arith.constant 0 : index
    %0 = vector.load %arg1[%c0, %c0_0] : memref<2x240xf32, #tpu.memory_space<vmem>>, vector<2x240xf32>
    %1 = tpu.iota {dimensions = array<i32: 0>} : vector<240x120xi32>
    %2 = tpu.iota {dimensions = array<i32: 1>} : vector<240x120xi32>
    %c2_i32 = arith.constant 2 : i32
    %3 = vector.broadcast %c2_i32 : i32 to vector<240x120xi32>
    %4 = arith.muli %3, %2 : vector<240x120xi32>
    %c-1_i32 = arith.constant -1 : i32
    %5 = vector.broadcast %c-1_i32 : i32 to vector<240x120xi32>
    %6 = arith.addi %4, %5 : vector<240x120xi32>
    %7 = arith.cmpi eq, %1, %6 : vector<240x120xi32>
    %8 = arith.extui %7 : vector<240x120xi1> to vector<240x120xi32>
    %9 = arith.sitofp %8 : vector<240x120xi32> to vector<240x120xf32>
    %cst = arith.constant dense<0.000000e+00> : vector<2x120xf32>
    %10 = tpu.matmul %0, %9, %cst {dimension_numbers = #tpu.dot_dimension_numbers<[1], [0], [0], [1], [0, 0, 1, 1], [], []>} : vector<2x240xf32>, vector<240x120xf32>, vector<2x120xf32> -> vector<2x120xf32>
    %c0_1 = arith.constant 0 : index
    %c0_2 = arith.constant 0 : index
    %c0_3 = arith.constant 0 : index
    %11 = vector.load %arg2[%c0_1, %c0_2, %c0_3] : memref<3x16x2xf32, #tpu.memory_space<vmem>>, vector<1x16x2xf32>
    %12 = vector.shape_cast %11 : vector<1x16x2xf32> to vector<16x2xf32>
    %cst_4 = arith.constant dense<0.000000e+00> : vector<16x120xf32>
    %13 = tpu.matmul %12, %10, %cst_4 {dimension_numbers = #tpu.dot_dimension_numbers<[1], [0], [0], [1], [0, 0, 1, 1], [], []>} : vector<16x2xf32>, vector<2x120xf32>, vector<16x120xf32> -> vector<16x120xf32>
    %c2_i32_5 = arith.constant 2 : i32
    %14 = vector.broadcast %c2_i32_5 : i32 to vector<240x120xi32>
    %15 = arith.muli %14, %2 : vector<240x120xi32>
    %c0_i32 = arith.constant 0 : i32
    %16 = vector.broadcast %c0_i32 : i32 to vector<240x120xi32>
    %17 = arith.addi %15, %16 : vector<240x120xi32>
    %18 = arith.cmpi eq, %1, %17 : vector<240x120xi32>
    %19 = arith.extui %18 : vector<240x120xi1> to vector<240x120xi32>
    %20 = arith.sitofp %19 : vector<240x120xi32> to vector<240x120xf32>
    %cst_6 = arith.constant dense<0.000000e+00> : vector<2x120xf32>
    %21 = tpu.matmul %0, %20, %cst_6 {dimension_numbers = #tpu.dot_dimension_numbers<[1], [0], [0], [1], [0, 0, 1, 1], [], []>} : vector<2x240xf32>, vector<240x120xf32>, vector<2x120xf32> -> vector<2x120xf32>
    %c1 = arith.constant 1 : index
    %c0_7 = arith.constant 0 : index
    %c0_8 = arith.constant 0 : index
    %22 = vector.load %arg2[%c1, %c0_7, %c0_8] : memref<3x16x2xf32, #tpu.memory_space<vmem>>, vector<1x16x2xf32>
    %23 = vector.shape_cast %22 : vector<1x16x2xf32> to vector<16x2xf32>
    %cst_9 = arith.constant dense<0.000000e+00> : vector<16x120xf32>
    %24 = tpu.matmul %23, %21, %cst_9 {dimension_numbers = #tpu.dot_dimension_numbers<[1], [0], [0], [1], [0, 0, 1, 1], [], []>} : vector<16x2xf32>, vector<2x120xf32>, vector<16x120xf32> -> vector<16x120xf32>
    %25 = arith.addf %13, %24 : vector<16x120xf32>
    %c2_i32_10 = arith.constant 2 : i32
    %26 = vector.broadcast %c2_i32_10 : i32 to vector<240x120xi32>
    %27 = arith.muli %26, %2 : vector<240x120xi32>
    %c1_i32 = arith.constant 1 : i32
    %28 = vector.broadcast %c1_i32 : i32 to vector<240x120xi32>
    %29 = arith.addi %27, %28 : vector<240x120xi32>
    %30 = arith.cmpi eq, %1, %29 : vector<240x120xi32>
    %31 = arith.extui %30 : vector<240x120xi1> to vector<240x120xi32>
    %32 = arith.sitofp %31 : vector<240x120xi32> to vector<240x120xf32>
    %cst_11 = arith.constant dense<0.000000e+00> : vector<2x120xf32>
    %33 = tpu.matmul %0, %32, %cst_11 {dimension_numbers = #tpu.dot_dimension_numbers<[1], [0], [0], [1], [0, 0, 1, 1], [], []>} : vector<2x240xf32>, vector<240x120xf32>, vector<2x120xf32> -> vector<2x120xf32>
    %c2 = arith.constant 2 : index
    %c0_12 = arith.constant 0 : index
    %c0_13 = arith.constant 0 : index
    %34 = vector.load %arg2[%c2, %c0_12, %c0_13] : memref<3x16x2xf32, #tpu.memory_space<vmem>>, vector<1x16x2xf32>
    %35 = vector.shape_cast %34 : vector<1x16x2xf32> to vector<16x2xf32>
    %cst_14 = arith.constant dense<0.000000e+00> : vector<16x120xf32>
    %36 = tpu.matmul %35, %33, %cst_14 {dimension_numbers = #tpu.dot_dimension_numbers<[1], [0], [0], [1], [0, 0, 1, 1], [], []>} : vector<16x2xf32>, vector<2x120xf32>, vector<16x120xf32> -> vector<16x120xf32>
    %37 = arith.addf %25, %36 : vector<16x120xf32>
    %cst_15 = arith.constant 0.000000e+00 : f32
    %38 = vector.broadcast %cst_15 : f32 to vector<16x120xf32>
    %39 = arith.cmpf oge, %37, %38 : vector<16x120xf32>
    %cst_16 = arith.constant 2.000000e-01 : f32
    %40 = vector.broadcast %cst_16 : f32 to vector<16x120xf32>
    %41 = arith.mulf %40, %37 : vector<16x120xf32>
    %42 = arith.select %39, %37, %41 : vector<16x120xi1>, vector<16x120xf32>
    %43 = tpu.iota {dimensions = array<i32: 0>} : vector<120x60xi32>
    %44 = tpu.iota {dimensions = array<i32: 1>} : vector<120x60xi32>
    %c2_i32_17 = arith.constant 2 : i32
    %45 = vector.broadcast %c2_i32_17 : i32 to vector<120x60xi32>
    %46 = arith.muli %45, %44 : vector<120x60xi32>
    %c-1_i32_18 = arith.constant -1 : i32
    %47 = vector.broadcast %c-1_i32_18 : i32 to vector<120x60xi32>
    %48 = arith.addi %46, %47 : vector<120x60xi32>
    %49 = arith.cmpi eq, %43, %48 : vector<120x60xi32>
    %50 = arith.extui %49 : vector<120x60xi1> to vector<120x60xi32>
    %51 = arith.sitofp %50 : vector<120x60xi32> to vector<120x60xf32>
    %cst_19 = arith.constant dense<0.000000e+00> : vector<16x60xf32>
    %52 = tpu.matmul %42, %51, %cst_19 {dimension_numbers = #tpu.dot_dimension_numbers<[1], [0], [0], [1], [0, 0, 1, 1], [], []>} : vector<16x120xf32>, vector<120x60xf32>, vector<16x60xf32> -> vector<16x60xf32>
    %c0_20 = arith.constant 0 : index
    %c0_21 = arith.constant 0 : index
    %c0_22 = arith.constant 0 : index
    %53 = vector.load %arg3[%c0_20, %c0_21, %c0_22] : memref<3x32x16xf32, #tpu.memory_space<vmem>>, vector<1x32x16xf32>
    %54 = vector.shape_cast %53 : vector<1x32x16xf32> to vector<32x16xf32>
    %cst_23 = arith.constant dense<0.000000e+00> : vector<32x60xf32>
    %55 = tpu.matmul %54, %52, %cst_23 {dimension_numbers = #tpu.dot_dimension_numbers<[1], [0], [0], [1], [0, 0, 1, 1], [], []>} : vector<32x16xf32>, vector<16x60xf32>, vector<32x60xf32> -> vector<32x60xf32>
    %c2_i32_24 = arith.constant 2 : i32
    %56 = vector.broadcast %c2_i32_24 : i32 to vector<120x60xi32>
    %57 = arith.muli %56, %44 : vector<120x60xi32>
    %c0_i32_25 = arith.constant 0 : i32
    %58 = vector.broadcast %c0_i32_25 : i32 to vector<120x60xi32>
    %59 = arith.addi %57, %58 : vector<120x60xi32>
    %60 = arith.cmpi eq, %43, %59 : vector<120x60xi32>
    %61 = arith.extui %60 : vector<120x60xi1> to vector<120x60xi32>
    %62 = arith.sitofp %61 : vector<120x60xi32> to vector<120x60xf32>
    %cst_26 = arith.constant dense<0.000000e+00> : vector<16x60xf32>
    %63 = tpu.matmul %42, %62, %cst_26 {dimension_numbers = #tpu.dot_dimension_numbers<[1], [0], [0], [1], [0, 0, 1, 1], [], []>} : vector<16x120xf32>, vector<120x60xf32>, vector<16x60xf32> -> vector<16x60xf32>
    %c1_27 = arith.constant 1 : index
    %c0_28 = arith.constant 0 : index
    %c0_29 = arith.constant 0 : index
    %64 = vector.load %arg3[%c1_27, %c0_28, %c0_29] : memref<3x32x16xf32, #tpu.memory_space<vmem>>, vector<1x32x16xf32>
    %65 = vector.shape_cast %64 : vector<1x32x16xf32> to vector<32x16xf32>
    %cst_30 = arith.constant dense<0.000000e+00> : vector<32x60xf32>
    %66 = tpu.matmul %65, %63, %cst_30 {dimension_numbers = #tpu.dot_dimension_numbers<[1], [0], [0], [1], [0, 0, 1, 1], [], []>} : vector<32x16xf32>, vector<16x60xf32>, vector<32x60xf32> -> vector<32x60xf32>
    %67 = arith.addf %55, %66 : vector<32x60xf32>
    %c2_i32_31 = arith.constant 2 : i32
    %68 = vector.broadcast %c2_i32_31 : i32 to vector<120x60xi32>
    %69 = arith.muli %68, %44 : vector<120x60xi32>
    %c1_i32_32 = arith.constant 1 : i32
    %70 = vector.broadcast %c1_i32_32 : i32 to vector<120x60xi32>
    %71 = arith.addi %69, %70 : vector<120x60xi32>
    %72 = arith.cmpi eq, %43, %71 : vector<120x60xi32>
    %73 = arith.extui %72 : vector<120x60xi1> to vector<120x60xi32>
    %74 = arith.sitofp %73 : vector<120x60xi32> to vector<120x60xf32>
    %cst_33 = arith.constant dense<0.000000e+00> : vector<16x60xf32>
    %75 = tpu.matmul %42, %74, %cst_33 {dimension_numbers = #tpu.dot_dimension_numbers<[1], [0], [0], [1], [0, 0, 1, 1], [], []>} : vector<16x120xf32>, vector<120x60xf32>, vector<16x60xf32> -> vector<16x60xf32>
    %c2_34 = arith.constant 2 : index
    %c0_35 = arith.constant 0 : index
    %c0_36 = arith.constant 0 : index
    %76 = vector.load %arg3[%c2_34, %c0_35, %c0_36] : memref<3x32x16xf32, #tpu.memory_space<vmem>>, vector<1x32x16xf32>
    %77 = vector.shape_cast %76 : vector<1x32x16xf32> to vector<32x16xf32>
    %cst_37 = arith.constant dense<0.000000e+00> : vector<32x60xf32>
    %78 = tpu.matmul %77, %75, %cst_37 {dimension_numbers = #tpu.dot_dimension_numbers<[1], [0], [0], [1], [0, 0, 1, 1], [], []>} : vector<32x16xf32>, vector<16x60xf32>, vector<32x60xf32> -> vector<32x60xf32>
    %79 = arith.addf %67, %78 : vector<32x60xf32>
    %cst_38 = arith.constant dense<0.000000e+00> : vector<32xf32>
    %80 = vector.multi_reduction <add>, %79, %cst_38 [1] : vector<32x60xf32> to vector<32xf32>
    %81 = vector.shape_cast %80 : vector<32xf32> to vector<32x1xf32>
    %82 = arith.mulf %79, %79 : vector<32x60xf32>
    %cst_39 = arith.constant dense<0.000000e+00> : vector<32xf32>
    %83 = vector.multi_reduction <add>, %82, %cst_39 [1] : vector<32x60xf32> to vector<32xf32>
    %84 = vector.shape_cast %83 : vector<32xf32> to vector<32x1xf32>
    %85 = vector.extract_strided_slice %81 {offsets = [0, 0], sizes = [16, 1], strides = [1, 1]} : vector<32x1xf32> to vector<16x1xf32>
    %86 = vector.extract_strided_slice %84 {offsets = [0, 0], sizes = [16, 1], strides = [1, 1]} : vector<32x1xf32> to vector<16x1xf32>
    %87 = vector.extract_strided_slice %81 {offsets = [16, 0], sizes = [16, 1], strides = [1, 1]} : vector<32x1xf32> to vector<16x1xf32>
    %88 = arith.addf %85, %87 : vector<16x1xf32>
    %89 = vector.extract_strided_slice %84 {offsets = [16, 0], sizes = [16, 1], strides = [1, 1]} : vector<32x1xf32> to vector<16x1xf32>
    %90 = arith.addf %86, %89 : vector<16x1xf32>
    %cst_40 = arith.constant 0.00833333377 : f32
    %91 = vector.broadcast %cst_40 : f32 to vector<16x1xf32>
    %92 = arith.mulf %88, %91 : vector<16x1xf32>
    %cst_41 = arith.constant 0.00833333377 : f32
    %93 = vector.broadcast %cst_41 : f32 to vector<16x1xf32>
    %94 = arith.mulf %90, %93 : vector<16x1xf32>
    %95 = arith.mulf %92, %92 : vector<16x1xf32>
    %96 = arith.subf %94, %95 : vector<16x1xf32>
    %cst_42 = arith.constant 0.000000e+00 : f32
    %97 = vector.broadcast %cst_42 : f32 to vector<16x1xf32>
    %98 = arith.maximumf %96, %97 : vector<16x1xf32>
    %c0_43 = arith.constant 0 : index
    %c0_44 = arith.constant 0 : index
    %99 = vector.load %arg4[%c0_43, %c0_44] : memref<16x1xf32, #tpu.memory_space<vmem>>, vector<16x1xf32>
    %cst_45 = arith.constant 9.99999974E-6 : f32
    %100 = vector.broadcast %cst_45 : f32 to vector<16x1xf32>
    %101 = arith.addf %98, %100 : vector<16x1xf32>
    %102 = math.rsqrt %101 : vector<16x1xf32>
    %103 = arith.mulf %99, %102 : vector<16x1xf32>
    %c0_46 = arith.constant 0 : index
    %c0_47 = arith.constant 0 : index
    %104 = vector.load %arg5[%c0_46, %c0_47] : memref<16x1xf32, #tpu.memory_space<vmem>>, vector<16x1xf32>
    %105 = arith.mulf %92, %103 : vector<16x1xf32>
    %106 = arith.subf %104, %105 : vector<16x1xf32>
    %107 = tpu.concatenate %103, %103 in 0 : vector<16x1xf32>, vector<16x1xf32> -> vector<32x1xf32>
    %108 = tpu.concatenate %106, %106 in 0 : vector<16x1xf32>, vector<16x1xf32> -> vector<32x1xf32>
    %109 = vector.broadcast %107 : vector<32x1xf32> to vector<32x60xf32>
    %110 = arith.mulf %79, %109 : vector<32x60xf32>
    %111 = vector.broadcast %108 : vector<32x1xf32> to vector<32x60xf32>
    %112 = arith.addf %110, %111 : vector<32x60xf32>
    %cst_48 = arith.constant 0.000000e+00 : f32
    %113 = vector.broadcast %cst_48 : f32 to vector<32x60xf32>
    %114 = arith.cmpf oge, %112, %113 : vector<32x60xf32>
    %cst_49 = arith.constant 2.000000e-01 : f32
    %115 = vector.broadcast %cst_49 : f32 to vector<32x60xf32>
    %116 = arith.mulf %115, %112 : vector<32x60xf32>
    %117 = arith.select %114, %112, %116 : vector<32x60xi1>, vector<32x60xf32>
    %118 = tpu.iota {dimensions = array<i32: 0>} : vector<60x30xi32>
    %119 = tpu.iota {dimensions = array<i32: 1>} : vector<60x30xi32>
    %c2_i32_50 = arith.constant 2 : i32
    %120 = vector.broadcast %c2_i32_50 : i32 to vector<60x30xi32>
    %121 = arith.muli %120, %119 : vector<60x30xi32>
    %c-1_i32_51 = arith.constant -1 : i32
    %122 = vector.broadcast %c-1_i32_51 : i32 to vector<60x30xi32>
    %123 = arith.addi %121, %122 : vector<60x30xi32>
    %124 = arith.cmpi eq, %118, %123 : vector<60x30xi32>
    %125 = arith.extui %124 : vector<60x30xi1> to vector<60x30xi32>
    %126 = arith.sitofp %125 : vector<60x30xi32> to vector<60x30xf32>
    %cst_52 = arith.constant dense<0.000000e+00> : vector<32x30xf32>
    %127 = tpu.matmul %117, %126, %cst_52 {dimension_numbers = #tpu.dot_dimension_numbers<[1], [0], [0], [1], [0, 0, 1, 1], [], []>} : vector<32x60xf32>, vector<60x30xf32>, vector<32x30xf32> -> vector<32x30xf32>
    %c0_53 = arith.constant 0 : index
    %c0_54 = arith.constant 0 : index
    %c0_55 = arith.constant 0 : index
    %128 = vector.load %arg6[%c0_53, %c0_54, %c0_55] : memref<3x2x32xf32, #tpu.memory_space<vmem>>, vector<1x2x32xf32>
    %129 = vector.shape_cast %128 : vector<1x2x32xf32> to vector<2x32xf32>
    %cst_56 = arith.constant dense<0.000000e+00> : vector<2x30xf32>
    %130 = tpu.matmul %129, %127, %cst_56 {dimension_numbers = #tpu.dot_dimension_numbers<[1], [0], [0], [1], [0, 0, 1, 1], [], []>} : vector<2x32xf32>, vector<32x30xf32>, vector<2x30xf32> -> vector<2x30xf32>
    %c2_i32_57 = arith.constant 2 : i32
    %131 = vector.broadcast %c2_i32_57 : i32 to vector<60x30xi32>
    %132 = arith.muli %131, %119 : vector<60x30xi32>
    %c0_i32_58 = arith.constant 0 : i32
    %133 = vector.broadcast %c0_i32_58 : i32 to vector<60x30xi32>
    %134 = arith.addi %132, %133 : vector<60x30xi32>
    %135 = arith.cmpi eq, %118, %134 : vector<60x30xi32>
    %136 = arith.extui %135 : vector<60x30xi1> to vector<60x30xi32>
    %137 = arith.sitofp %136 : vector<60x30xi32> to vector<60x30xf32>
    %cst_59 = arith.constant dense<0.000000e+00> : vector<32x30xf32>
    %138 = tpu.matmul %117, %137, %cst_59 {dimension_numbers = #tpu.dot_dimension_numbers<[1], [0], [0], [1], [0, 0, 1, 1], [], []>} : vector<32x60xf32>, vector<60x30xf32>, vector<32x30xf32> -> vector<32x30xf32>
    %c1_60 = arith.constant 1 : index
    %c0_61 = arith.constant 0 : index
    %c0_62 = arith.constant 0 : index
    %139 = vector.load %arg6[%c1_60, %c0_61, %c0_62] : memref<3x2x32xf32, #tpu.memory_space<vmem>>, vector<1x2x32xf32>
    %140 = vector.shape_cast %139 : vector<1x2x32xf32> to vector<2x32xf32>
    %cst_63 = arith.constant dense<0.000000e+00> : vector<2x30xf32>
    %141 = tpu.matmul %140, %138, %cst_63 {dimension_numbers = #tpu.dot_dimension_numbers<[1], [0], [0], [1], [0, 0, 1, 1], [], []>} : vector<2x32xf32>, vector<32x30xf32>, vector<2x30xf32> -> vector<2x30xf32>
    %142 = arith.addf %130, %141 : vector<2x30xf32>
    %c2_i32_64 = arith.constant 2 : i32
    %143 = vector.broadcast %c2_i32_64 : i32 to vector<60x30xi32>
    %144 = arith.muli %143, %119 : vector<60x30xi32>
    %c1_i32_65 = arith.constant 1 : i32
    %145 = vector.broadcast %c1_i32_65 : i32 to vector<60x30xi32>
    %146 = arith.addi %144, %145 : vector<60x30xi32>
    %147 = arith.cmpi eq, %118, %146 : vector<60x30xi32>
    %148 = arith.extui %147 : vector<60x30xi1> to vector<60x30xi32>
    %149 = arith.sitofp %148 : vector<60x30xi32> to vector<60x30xf32>
    %cst_66 = arith.constant dense<0.000000e+00> : vector<32x30xf32>
    %150 = tpu.matmul %117, %149, %cst_66 {dimension_numbers = #tpu.dot_dimension_numbers<[1], [0], [0], [1], [0, 0, 1, 1], [], []>} : vector<32x60xf32>, vector<60x30xf32>, vector<32x30xf32> -> vector<32x30xf32>
    %c2_67 = arith.constant 2 : index
    %c0_68 = arith.constant 0 : index
    %c0_69 = arith.constant 0 : index
    %151 = vector.load %arg6[%c2_67, %c0_68, %c0_69] : memref<3x2x32xf32, #tpu.memory_space<vmem>>, vector<1x2x32xf32>
    %152 = vector.shape_cast %151 : vector<1x2x32xf32> to vector<2x32xf32>
    %cst_70 = arith.constant dense<0.000000e+00> : vector<2x30xf32>
    %153 = tpu.matmul %152, %150, %cst_70 {dimension_numbers = #tpu.dot_dimension_numbers<[1], [0], [0], [1], [0, 0, 1, 1], [], []>} : vector<2x32xf32>, vector<32x30xf32>, vector<2x30xf32> -> vector<2x30xf32>
    %154 = arith.addf %142, %153 : vector<2x30xf32>
    %cst_71 = arith.constant dense<0.000000e+00> : vector<2xf32>
    %155 = vector.multi_reduction <add>, %154, %cst_71 [1] : vector<2x30xf32> to vector<2xf32>
    %156 = vector.shape_cast %155 : vector<2xf32> to vector<2x1xf32>
    %157 = arith.mulf %154, %154 : vector<2x30xf32>
    %cst_72 = arith.constant dense<0.000000e+00> : vector<2xf32>
    %158 = vector.multi_reduction <add>, %157, %cst_72 [1] : vector<2x30xf32> to vector<2xf32>
    %159 = vector.shape_cast %158 : vector<2xf32> to vector<2x1xf32>
    %160 = vector.extract_strided_slice %156 {offsets = [0, 0], sizes = [1, 1], strides = [1, 1]} : vector<2x1xf32> to vector<1x1xf32>
    %161 = vector.extract_strided_slice %159 {offsets = [0, 0], sizes = [1, 1], strides = [1, 1]} : vector<2x1xf32> to vector<1x1xf32>
    %162 = vector.extract_strided_slice %156 {offsets = [1, 0], sizes = [1, 1], strides = [1, 1]} : vector<2x1xf32> to vector<1x1xf32>
    %163 = arith.addf %160, %162 : vector<1x1xf32>
    %164 = vector.extract_strided_slice %159 {offsets = [1, 0], sizes = [1, 1], strides = [1, 1]} : vector<2x1xf32> to vector<1x1xf32>
    %165 = arith.addf %161, %164 : vector<1x1xf32>
    %cst_73 = arith.constant 0.0166666675 : f32
    %166 = vector.broadcast %cst_73 : f32 to vector<1x1xf32>
    %167 = arith.mulf %163, %166 : vector<1x1xf32>
    %cst_74 = arith.constant 0.0166666675 : f32
    %168 = vector.broadcast %cst_74 : f32 to vector<1x1xf32>
    %169 = arith.mulf %165, %168 : vector<1x1xf32>
    %170 = arith.mulf %167, %167 : vector<1x1xf32>
    %171 = arith.subf %169, %170 : vector<1x1xf32>
    %cst_75 = arith.constant 0.000000e+00 : f32
    %172 = vector.broadcast %cst_75 : f32 to vector<1x1xf32>
    %173 = arith.maximumf %171, %172 : vector<1x1xf32>
    %c0_76 = arith.constant 0 : index
    %c0_77 = arith.constant 0 : index
    %174 = vector.load %arg7[%c0_76, %c0_77] : memref<1x1xf32, #tpu.memory_space<vmem>>, vector<1x1xf32>
    %cst_78 = arith.constant 9.99999974E-6 : f32
    %175 = vector.broadcast %cst_78 : f32 to vector<1x1xf32>
    %176 = arith.addf %173, %175 : vector<1x1xf32>
    %177 = math.rsqrt %176 : vector<1x1xf32>
    %178 = arith.mulf %174, %177 : vector<1x1xf32>
    %c0_79 = arith.constant 0 : index
    %c0_80 = arith.constant 0 : index
    %179 = vector.load %arg8[%c0_79, %c0_80] : memref<1x1xf32, #tpu.memory_space<vmem>>, vector<1x1xf32>
    %180 = arith.mulf %167, %178 : vector<1x1xf32>
    %181 = arith.subf %179, %180 : vector<1x1xf32>
    %182 = tpu.concatenate %178, %178 in 0 : vector<1x1xf32>, vector<1x1xf32> -> vector<2x1xf32>
    %183 = tpu.concatenate %181, %181 in 0 : vector<1x1xf32>, vector<1x1xf32> -> vector<2x1xf32>
    %184 = vector.broadcast %182 : vector<2x1xf32> to vector<2x30xf32>
    %185 = arith.mulf %154, %184 : vector<2x30xf32>
    %186 = vector.broadcast %183 : vector<2x1xf32> to vector<2x30xf32>
    %187 = arith.addf %185, %186 : vector<2x30xf32>
    %cst_81 = arith.constant 0.000000e+00 : f32
    %188 = vector.broadcast %cst_81 : f32 to vector<2x30xf32>
    %189 = arith.cmpf oge, %187, %188 : vector<2x30xf32>
    %cst_82 = arith.constant 2.000000e-01 : f32
    %190 = vector.broadcast %cst_82 : f32 to vector<2x30xf32>
    %191 = arith.mulf %190, %187 : vector<2x30xf32>
    %192 = arith.select %189, %187, %191 : vector<2x30xi1>, vector<2x30xf32>
    %c0_83 = arith.constant 0 : index
    %c0_84 = arith.constant 0 : index
    %193 = vector.load %arg9[%c0_83, %c0_84] : memref<30x10xf32, #tpu.memory_space<vmem>>, vector<30x10xf32>
    %cst_85 = arith.constant dense<0.000000e+00> : vector<2x10xf32>
    %194 = tpu.matmul %192, %193, %cst_85 {dimension_numbers = #tpu.dot_dimension_numbers<[1], [0], [0], [1], [0, 0, 1, 1], [], []>} : vector<2x30xf32>, vector<30x10xf32>, vector<2x10xf32> -> vector<2x10xf32>
    %c0_86 = arith.constant 0 : index
    %c0_87 = arith.constant 0 : index
    %195 = vector.load %arg10[%c0_86, %c0_87] : memref<1x10xf32, #tpu.memory_space<vmem>>, vector<1x10xf32>
    %196 = vector.broadcast %195 : vector<1x10xf32> to vector<2x10xf32>
    %197 = arith.addf %194, %196 : vector<2x10xf32>
    %cst_88 = arith.constant 0.000000e+00 : f32
    %198 = vector.broadcast %cst_88 : f32 to vector<2x10xf32>
    %199 = arith.cmpf oge, %197, %198 : vector<2x10xf32>
    %cst_89 = arith.constant 2.000000e-01 : f32
    %200 = vector.broadcast %cst_89 : f32 to vector<2x10xf32>
    %201 = arith.mulf %200, %197 : vector<2x10xf32>
    %202 = arith.select %199, %197, %201 : vector<2x10xi1>, vector<2x10xf32>
    %c0_90 = arith.constant 0 : index
    %c0_91 = arith.constant 0 : index
    %203 = vector.load %arg0[%c0_90, %c0_91] : memref<2x5xf32, #tpu.memory_space<vmem>>, vector<2x5xf32>
    %c0_92 = arith.constant 0 : index
    %c0_93 = arith.constant 0 : index
    %204 = vector.load %arg11[%c0_92, %c0_93] : memref<5x50xf32, #tpu.memory_space<vmem>>, vector<5x50xf32>
    %cst_94 = arith.constant dense<0.000000e+00> : vector<2x50xf32>
    %205 = tpu.matmul %203, %204, %cst_94 {dimension_numbers = #tpu.dot_dimension_numbers<[1], [0], [0], [1], [0, 0, 1, 1], [], []>} : vector<2x5xf32>, vector<5x50xf32>, vector<2x50xf32> -> vector<2x50xf32>
    %c0_95 = arith.constant 0 : index
    %c0_96 = arith.constant 0 : index
    %206 = vector.load %arg12[%c0_95, %c0_96] : memref<10x50xf32, #tpu.memory_space<vmem>>, vector<10x50xf32>
    %cst_97 = arith.constant dense<0.000000e+00> : vector<2x50xf32>
    %207 = tpu.matmul %202, %206, %cst_97 {dimension_numbers = #tpu.dot_dimension_numbers<[1], [0], [0], [1], [0, 0, 1, 1], [], []>} : vector<2x10xf32>, vector<10x50xf32>, vector<2x50xf32> -> vector<2x50xf32>
    %208 = arith.addf %205, %207 : vector<2x50xf32>
    %c0_98 = arith.constant 0 : index
    %c0_99 = arith.constant 0 : index
    %209 = vector.load %arg13[%c0_98, %c0_99] : memref<1x50xf32, #tpu.memory_space<vmem>>, vector<1x50xf32>
    %210 = vector.broadcast %209 : vector<1x50xf32> to vector<2x50xf32>
    %211 = arith.addf %208, %210 : vector<2x50xf32>
    %cst_100 = arith.constant 0.000000e+00 : f32
    %212 = vector.broadcast %cst_100 : f32 to vector<2x50xf32>
    %213 = arith.cmpf oge, %211, %212 : vector<2x50xf32>
    %cst_101 = arith.constant 2.000000e-01 : f32
    %214 = vector.broadcast %cst_101 : f32 to vector<2x50xf32>
    %215 = arith.mulf %214, %211 : vector<2x50xf32>
    %216 = arith.select %213, %211, %215 : vector<2x50xi1>, vector<2x50xf32>
    %c0_102 = arith.constant 0 : index
    %c0_103 = arith.constant 0 : index
    %217 = vector.load %arg14[%c0_102, %c0_103] : memref<50x20xf32, #tpu.memory_space<vmem>>, vector<50x20xf32>
    %cst_104 = arith.constant dense<0.000000e+00> : vector<2x20xf32>
    %218 = tpu.matmul %216, %217, %cst_104 {dimension_numbers = #tpu.dot_dimension_numbers<[1], [0], [0], [1], [0, 0, 1, 1], [], []>} : vector<2x50xf32>, vector<50x20xf32>, vector<2x20xf32> -> vector<2x20xf32>
    %c0_105 = arith.constant 0 : index
    %c0_106 = arith.constant 0 : index
    %219 = vector.load %arg15[%c0_105, %c0_106] : memref<1x20xf32, #tpu.memory_space<vmem>>, vector<1x20xf32>
    %220 = vector.broadcast %219 : vector<1x20xf32> to vector<2x20xf32>
    %221 = arith.addf %218, %220 : vector<2x20xf32>
    %cst_107 = arith.constant 0.000000e+00 : f32
    %222 = vector.broadcast %cst_107 : f32 to vector<2x20xf32>
    %223 = arith.cmpf oge, %221, %222 : vector<2x20xf32>
    %cst_108 = arith.constant 2.000000e-01 : f32
    %224 = vector.broadcast %cst_108 : f32 to vector<2x20xf32>
    %225 = arith.mulf %224, %221 : vector<2x20xf32>
    %226 = arith.select %223, %221, %225 : vector<2x20xi1>, vector<2x20xf32>
    %c0_109 = arith.constant 0 : index
    %c0_110 = arith.constant 0 : index
    %227 = vector.load %arg16[%c0_109, %c0_110] : memref<20x10xf32, #tpu.memory_space<vmem>>, vector<20x10xf32>
    %cst_111 = arith.constant dense<0.000000e+00> : vector<2x10xf32>
    %228 = tpu.matmul %226, %227, %cst_111 {dimension_numbers = #tpu.dot_dimension_numbers<[1], [0], [0], [1], [0, 0, 1, 1], [], []>} : vector<2x20xf32>, vector<20x10xf32>, vector<2x10xf32> -> vector<2x10xf32>
    %c0_112 = arith.constant 0 : index
    %c0_113 = arith.constant 0 : index
    %229 = vector.load %arg17[%c0_112, %c0_113] : memref<1x10xf32, #tpu.memory_space<vmem>>, vector<1x10xf32>
    %230 = vector.broadcast %229 : vector<1x10xf32> to vector<2x10xf32>
    %231 = arith.addf %228, %230 : vector<2x10xf32>
    %cst_114 = arith.constant 0.000000e+00 : f32
    %232 = vector.broadcast %cst_114 : f32 to vector<2x10xf32>
    %233 = arith.cmpf oge, %231, %232 : vector<2x10xf32>
    %cst_115 = arith.constant 2.000000e-01 : f32
    %234 = vector.broadcast %cst_115 : f32 to vector<2x10xf32>
    %235 = arith.mulf %234, %231 : vector<2x10xf32>
    %236 = arith.select %233, %231, %235 : vector<2x10xi1>, vector<2x10xf32>
    %c0_116 = arith.constant 0 : index
    %c0_117 = arith.constant 0 : index
    %237 = vector.load %arg18[%c0_116, %c0_117] : memref<10x38xf32, #tpu.memory_space<vmem>>, vector<10x38xf32>
    %cst_118 = arith.constant dense<0.000000e+00> : vector<2x38xf32>
    %238 = tpu.matmul %236, %237, %cst_118 {dimension_numbers = #tpu.dot_dimension_numbers<[1], [0], [0], [1], [0, 0, 1, 1], [], []>} : vector<2x10xf32>, vector<10x38xf32>, vector<2x38xf32> -> vector<2x38xf32>
    %c0_119 = arith.constant 0 : index
    %c0_120 = arith.constant 0 : index
    %239 = vector.load %arg19[%c0_119, %c0_120] : memref<1x38xf32, #tpu.memory_space<vmem>>, vector<1x38xf32>
    %240 = vector.broadcast %239 : vector<1x38xf32> to vector<2x38xf32>
    %241 = arith.addf %238, %240 : vector<2x38xf32>
    %cst_121 = arith.constant 0.000000e+00 : f32
    %242 = vector.broadcast %cst_121 : f32 to vector<2x38xf32>
    %243 = arith.cmpf oge, %241, %242 : vector<2x38xf32>
    %cst_122 = arith.constant 2.000000e-01 : f32
    %244 = vector.broadcast %cst_122 : f32 to vector<2x38xf32>
    %245 = arith.mulf %244, %241 : vector<2x38xf32>
    %246 = arith.select %243, %241, %245 : vector<2x38xi1>, vector<2x38xf32>
    %247 = tpu.iota {dimensions = array<i32: 0>} : vector<38x75xi32>
    %248 = tpu.iota {dimensions = array<i32: 1>} : vector<38x75xi32>
    %c2_i32_123 = arith.constant 2 : i32
    %249 = vector.broadcast %c2_i32_123 : i32 to vector<38x75xi32>
    %250 = arith.muli %249, %247 : vector<38x75xi32>
    %c-1_i32_124 = arith.constant -1 : i32
    %251 = vector.broadcast %c-1_i32_124 : i32 to vector<38x75xi32>
    %252 = arith.addi %250, %251 : vector<38x75xi32>
    %253 = arith.cmpi eq, %248, %252 : vector<38x75xi32>
    %254 = arith.extui %253 : vector<38x75xi1> to vector<38x75xi32>
    %255 = arith.sitofp %254 : vector<38x75xi32> to vector<38x75xf32>
    %cst_125 = arith.constant dense<0.000000e+00> : vector<2x75xf32>
    %256 = tpu.matmul %246, %255, %cst_125 {dimension_numbers = #tpu.dot_dimension_numbers<[1], [0], [0], [1], [0, 0, 1, 1], [], []>} : vector<2x38xf32>, vector<38x75xf32>, vector<2x75xf32> -> vector<2x75xf32>
    %c0_126 = arith.constant 0 : index
    %c0_127 = arith.constant 0 : index
    %c0_128 = arith.constant 0 : index
    %257 = vector.load %arg20[%c0_126, %c0_127, %c0_128] : memref<3x32x2xf32, #tpu.memory_space<vmem>>, vector<1x32x2xf32>
    %258 = vector.shape_cast %257 : vector<1x32x2xf32> to vector<32x2xf32>
    %cst_129 = arith.constant dense<0.000000e+00> : vector<32x75xf32>
    %259 = tpu.matmul %258, %256, %cst_129 {dimension_numbers = #tpu.dot_dimension_numbers<[1], [0], [0], [1], [0, 0, 1, 1], [], []>} : vector<32x2xf32>, vector<2x75xf32>, vector<32x75xf32> -> vector<32x75xf32>
    %c2_i32_130 = arith.constant 2 : i32
    %260 = vector.broadcast %c2_i32_130 : i32 to vector<38x75xi32>
    %261 = arith.muli %260, %247 : vector<38x75xi32>
    %c0_i32_131 = arith.constant 0 : i32
    %262 = vector.broadcast %c0_i32_131 : i32 to vector<38x75xi32>
    %263 = arith.addi %261, %262 : vector<38x75xi32>
    %264 = arith.cmpi eq, %248, %263 : vector<38x75xi32>
    %265 = arith.extui %264 : vector<38x75xi1> to vector<38x75xi32>
    %266 = arith.sitofp %265 : vector<38x75xi32> to vector<38x75xf32>
    %cst_132 = arith.constant dense<0.000000e+00> : vector<2x75xf32>
    %267 = tpu.matmul %246, %266, %cst_132 {dimension_numbers = #tpu.dot_dimension_numbers<[1], [0], [0], [1], [0, 0, 1, 1], [], []>} : vector<2x38xf32>, vector<38x75xf32>, vector<2x75xf32> -> vector<2x75xf32>
    %c1_133 = arith.constant 1 : index
    %c0_134 = arith.constant 0 : index
    %c0_135 = arith.constant 0 : index
    %268 = vector.load %arg20[%c1_133, %c0_134, %c0_135] : memref<3x32x2xf32, #tpu.memory_space<vmem>>, vector<1x32x2xf32>
    %269 = vector.shape_cast %268 : vector<1x32x2xf32> to vector<32x2xf32>
    %cst_136 = arith.constant dense<0.000000e+00> : vector<32x75xf32>
    %270 = tpu.matmul %269, %267, %cst_136 {dimension_numbers = #tpu.dot_dimension_numbers<[1], [0], [0], [1], [0, 0, 1, 1], [], []>} : vector<32x2xf32>, vector<2x75xf32>, vector<32x75xf32> -> vector<32x75xf32>
    %271 = arith.addf %259, %270 : vector<32x75xf32>
    %c2_i32_137 = arith.constant 2 : i32
    %272 = vector.broadcast %c2_i32_137 : i32 to vector<38x75xi32>
    %273 = arith.muli %272, %247 : vector<38x75xi32>
    %c1_i32_138 = arith.constant 1 : i32
    %274 = vector.broadcast %c1_i32_138 : i32 to vector<38x75xi32>
    %275 = arith.addi %273, %274 : vector<38x75xi32>
    %276 = arith.cmpi eq, %248, %275 : vector<38x75xi32>
    %277 = arith.extui %276 : vector<38x75xi1> to vector<38x75xi32>
    %278 = arith.sitofp %277 : vector<38x75xi32> to vector<38x75xf32>
    %cst_139 = arith.constant dense<0.000000e+00> : vector<2x75xf32>
    %279 = tpu.matmul %246, %278, %cst_139 {dimension_numbers = #tpu.dot_dimension_numbers<[1], [0], [0], [1], [0, 0, 1, 1], [], []>} : vector<2x38xf32>, vector<38x75xf32>, vector<2x75xf32> -> vector<2x75xf32>
    %c2_140 = arith.constant 2 : index
    %c0_141 = arith.constant 0 : index
    %c0_142 = arith.constant 0 : index
    %280 = vector.load %arg20[%c2_140, %c0_141, %c0_142] : memref<3x32x2xf32, #tpu.memory_space<vmem>>, vector<1x32x2xf32>
    %281 = vector.shape_cast %280 : vector<1x32x2xf32> to vector<32x2xf32>
    %cst_143 = arith.constant dense<0.000000e+00> : vector<32x75xf32>
    %282 = tpu.matmul %281, %279, %cst_143 {dimension_numbers = #tpu.dot_dimension_numbers<[1], [0], [0], [1], [0, 0, 1, 1], [], []>} : vector<32x2xf32>, vector<2x75xf32>, vector<32x75xf32> -> vector<32x75xf32>
    %283 = arith.addf %271, %282 : vector<32x75xf32>
    %cst_144 = arith.constant dense<0.000000e+00> : vector<32xf32>
    %284 = vector.multi_reduction <add>, %283, %cst_144 [1] : vector<32x75xf32> to vector<32xf32>
    %285 = vector.shape_cast %284 : vector<32xf32> to vector<32x1xf32>
    %286 = arith.mulf %283, %283 : vector<32x75xf32>
    %cst_145 = arith.constant dense<0.000000e+00> : vector<32xf32>
    %287 = vector.multi_reduction <add>, %286, %cst_145 [1] : vector<32x75xf32> to vector<32xf32>
    %288 = vector.shape_cast %287 : vector<32xf32> to vector<32x1xf32>
    %289 = vector.extract_strided_slice %285 {offsets = [0, 0], sizes = [16, 1], strides = [1, 1]} : vector<32x1xf32> to vector<16x1xf32>
    %290 = vector.extract_strided_slice %288 {offsets = [0, 0], sizes = [16, 1], strides = [1, 1]} : vector<32x1xf32> to vector<16x1xf32>
    %291 = vector.extract_strided_slice %285 {offsets = [16, 0], sizes = [16, 1], strides = [1, 1]} : vector<32x1xf32> to vector<16x1xf32>
    %292 = arith.addf %289, %291 : vector<16x1xf32>
    %293 = vector.extract_strided_slice %288 {offsets = [16, 0], sizes = [16, 1], strides = [1, 1]} : vector<32x1xf32> to vector<16x1xf32>
    %294 = arith.addf %290, %293 : vector<16x1xf32>
    %cst_146 = arith.constant 0.00666666683 : f32
    %295 = vector.broadcast %cst_146 : f32 to vector<16x1xf32>
    %296 = arith.mulf %292, %295 : vector<16x1xf32>
    %cst_147 = arith.constant 0.00666666683 : f32
    %297 = vector.broadcast %cst_147 : f32 to vector<16x1xf32>
    %298 = arith.mulf %294, %297 : vector<16x1xf32>
    %299 = arith.mulf %296, %296 : vector<16x1xf32>
    %300 = arith.subf %298, %299 : vector<16x1xf32>
    %cst_148 = arith.constant 0.000000e+00 : f32
    %301 = vector.broadcast %cst_148 : f32 to vector<16x1xf32>
    %302 = arith.maximumf %300, %301 : vector<16x1xf32>
    %c0_149 = arith.constant 0 : index
    %c0_150 = arith.constant 0 : index
    %303 = vector.load %arg21[%c0_149, %c0_150] : memref<16x1xf32, #tpu.memory_space<vmem>>, vector<16x1xf32>
    %cst_151 = arith.constant 9.99999974E-6 : f32
    %304 = vector.broadcast %cst_151 : f32 to vector<16x1xf32>
    %305 = arith.addf %302, %304 : vector<16x1xf32>
    %306 = math.rsqrt %305 : vector<16x1xf32>
    %307 = arith.mulf %303, %306 : vector<16x1xf32>
    %c0_152 = arith.constant 0 : index
    %c0_153 = arith.constant 0 : index
    %308 = vector.load %arg22[%c0_152, %c0_153] : memref<16x1xf32, #tpu.memory_space<vmem>>, vector<16x1xf32>
    %309 = arith.mulf %296, %307 : vector<16x1xf32>
    %310 = arith.subf %308, %309 : vector<16x1xf32>
    %311 = tpu.concatenate %307, %307 in 0 : vector<16x1xf32>, vector<16x1xf32> -> vector<32x1xf32>
    %312 = tpu.concatenate %310, %310 in 0 : vector<16x1xf32>, vector<16x1xf32> -> vector<32x1xf32>
    %313 = vector.broadcast %311 : vector<32x1xf32> to vector<32x75xf32>
    %314 = arith.mulf %283, %313 : vector<32x75xf32>
    %315 = vector.broadcast %312 : vector<32x1xf32> to vector<32x75xf32>
    %316 = arith.addf %314, %315 : vector<32x75xf32>
    %cst_154 = arith.constant 0.000000e+00 : f32
    %317 = vector.broadcast %cst_154 : f32 to vector<32x75xf32>
    %318 = arith.cmpf oge, %316, %317 : vector<32x75xf32>
    %cst_155 = arith.constant 2.000000e-01 : f32
    %319 = vector.broadcast %cst_155 : f32 to vector<32x75xf32>
    %320 = arith.mulf %319, %316 : vector<32x75xf32>
    %321 = arith.select %318, %316, %320 : vector<32x75xi1>, vector<32x75xf32>
    %322 = tpu.iota {dimensions = array<i32: 0>} : vector<75x150xi32>
    %323 = tpu.iota {dimensions = array<i32: 1>} : vector<75x150xi32>
    %c2_i32_156 = arith.constant 2 : i32
    %324 = vector.broadcast %c2_i32_156 : i32 to vector<75x150xi32>
    %325 = arith.muli %324, %322 : vector<75x150xi32>
    %c-1_i32_157 = arith.constant -1 : i32
    %326 = vector.broadcast %c-1_i32_157 : i32 to vector<75x150xi32>
    %327 = arith.addi %325, %326 : vector<75x150xi32>
    %328 = arith.cmpi eq, %323, %327 : vector<75x150xi32>
    %329 = arith.extui %328 : vector<75x150xi1> to vector<75x150xi32>
    %330 = arith.sitofp %329 : vector<75x150xi32> to vector<75x150xf32>
    %cst_158 = arith.constant dense<0.000000e+00> : vector<32x150xf32>
    %331 = tpu.matmul %321, %330, %cst_158 {dimension_numbers = #tpu.dot_dimension_numbers<[1], [0], [0], [1], [0, 0, 1, 1], [], []>} : vector<32x75xf32>, vector<75x150xf32>, vector<32x150xf32> -> vector<32x150xf32>
    %c0_159 = arith.constant 0 : index
    %c0_160 = arith.constant 0 : index
    %c0_161 = arith.constant 0 : index
    %332 = vector.load %arg23[%c0_159, %c0_160, %c0_161] : memref<3x16x32xf32, #tpu.memory_space<vmem>>, vector<1x16x32xf32>
    %333 = vector.shape_cast %332 : vector<1x16x32xf32> to vector<16x32xf32>
    %cst_162 = arith.constant dense<0.000000e+00> : vector<16x150xf32>
    %334 = tpu.matmul %333, %331, %cst_162 {dimension_numbers = #tpu.dot_dimension_numbers<[1], [0], [0], [1], [0, 0, 1, 1], [], []>} : vector<16x32xf32>, vector<32x150xf32>, vector<16x150xf32> -> vector<16x150xf32>
    %c2_i32_163 = arith.constant 2 : i32
    %335 = vector.broadcast %c2_i32_163 : i32 to vector<75x150xi32>
    %336 = arith.muli %335, %322 : vector<75x150xi32>
    %c0_i32_164 = arith.constant 0 : i32
    %337 = vector.broadcast %c0_i32_164 : i32 to vector<75x150xi32>
    %338 = arith.addi %336, %337 : vector<75x150xi32>
    %339 = arith.cmpi eq, %323, %338 : vector<75x150xi32>
    %340 = arith.extui %339 : vector<75x150xi1> to vector<75x150xi32>
    %341 = arith.sitofp %340 : vector<75x150xi32> to vector<75x150xf32>
    %cst_165 = arith.constant dense<0.000000e+00> : vector<32x150xf32>
    %342 = tpu.matmul %321, %341, %cst_165 {dimension_numbers = #tpu.dot_dimension_numbers<[1], [0], [0], [1], [0, 0, 1, 1], [], []>} : vector<32x75xf32>, vector<75x150xf32>, vector<32x150xf32> -> vector<32x150xf32>
    %c1_166 = arith.constant 1 : index
    %c0_167 = arith.constant 0 : index
    %c0_168 = arith.constant 0 : index
    %343 = vector.load %arg23[%c1_166, %c0_167, %c0_168] : memref<3x16x32xf32, #tpu.memory_space<vmem>>, vector<1x16x32xf32>
    %344 = vector.shape_cast %343 : vector<1x16x32xf32> to vector<16x32xf32>
    %cst_169 = arith.constant dense<0.000000e+00> : vector<16x150xf32>
    %345 = tpu.matmul %344, %342, %cst_169 {dimension_numbers = #tpu.dot_dimension_numbers<[1], [0], [0], [1], [0, 0, 1, 1], [], []>} : vector<16x32xf32>, vector<32x150xf32>, vector<16x150xf32> -> vector<16x150xf32>
    %346 = arith.addf %334, %345 : vector<16x150xf32>
    %c2_i32_170 = arith.constant 2 : i32
    %347 = vector.broadcast %c2_i32_170 : i32 to vector<75x150xi32>
    %348 = arith.muli %347, %322 : vector<75x150xi32>
    %c1_i32_171 = arith.constant 1 : i32
    %349 = vector.broadcast %c1_i32_171 : i32 to vector<75x150xi32>
    %350 = arith.addi %348, %349 : vector<75x150xi32>
    %351 = arith.cmpi eq, %323, %350 : vector<75x150xi32>
    %352 = arith.extui %351 : vector<75x150xi1> to vector<75x150xi32>
    %353 = arith.sitofp %352 : vector<75x150xi32> to vector<75x150xf32>
    %cst_172 = arith.constant dense<0.000000e+00> : vector<32x150xf32>
    %354 = tpu.matmul %321, %353, %cst_172 {dimension_numbers = #tpu.dot_dimension_numbers<[1], [0], [0], [1], [0, 0, 1, 1], [], []>} : vector<32x75xf32>, vector<75x150xf32>, vector<32x150xf32> -> vector<32x150xf32>
    %c2_173 = arith.constant 2 : index
    %c0_174 = arith.constant 0 : index
    %c0_175 = arith.constant 0 : index
    %355 = vector.load %arg23[%c2_173, %c0_174, %c0_175] : memref<3x16x32xf32, #tpu.memory_space<vmem>>, vector<1x16x32xf32>
    %356 = vector.shape_cast %355 : vector<1x16x32xf32> to vector<16x32xf32>
    %cst_176 = arith.constant dense<0.000000e+00> : vector<16x150xf32>
    %357 = tpu.matmul %356, %354, %cst_176 {dimension_numbers = #tpu.dot_dimension_numbers<[1], [0], [0], [1], [0, 0, 1, 1], [], []>} : vector<16x32xf32>, vector<32x150xf32>, vector<16x150xf32> -> vector<16x150xf32>
    %358 = arith.addf %346, %357 : vector<16x150xf32>
    %cst_177 = arith.constant dense<0.000000e+00> : vector<16xf32>
    %359 = vector.multi_reduction <add>, %358, %cst_177 [1] : vector<16x150xf32> to vector<16xf32>
    %360 = vector.shape_cast %359 : vector<16xf32> to vector<16x1xf32>
    %361 = arith.mulf %358, %358 : vector<16x150xf32>
    %cst_178 = arith.constant dense<0.000000e+00> : vector<16xf32>
    %362 = vector.multi_reduction <add>, %361, %cst_178 [1] : vector<16x150xf32> to vector<16xf32>
    %363 = vector.shape_cast %362 : vector<16xf32> to vector<16x1xf32>
    %364 = vector.extract_strided_slice %360 {offsets = [0, 0], sizes = [8, 1], strides = [1, 1]} : vector<16x1xf32> to vector<8x1xf32>
    %365 = vector.extract_strided_slice %363 {offsets = [0, 0], sizes = [8, 1], strides = [1, 1]} : vector<16x1xf32> to vector<8x1xf32>
    %366 = vector.extract_strided_slice %360 {offsets = [8, 0], sizes = [8, 1], strides = [1, 1]} : vector<16x1xf32> to vector<8x1xf32>
    %367 = arith.addf %364, %366 : vector<8x1xf32>
    %368 = vector.extract_strided_slice %363 {offsets = [8, 0], sizes = [8, 1], strides = [1, 1]} : vector<16x1xf32> to vector<8x1xf32>
    %369 = arith.addf %365, %368 : vector<8x1xf32>
    %cst_179 = arith.constant 0.00333333341 : f32
    %370 = vector.broadcast %cst_179 : f32 to vector<8x1xf32>
    %371 = arith.mulf %367, %370 : vector<8x1xf32>
    %cst_180 = arith.constant 0.00333333341 : f32
    %372 = vector.broadcast %cst_180 : f32 to vector<8x1xf32>
    %373 = arith.mulf %369, %372 : vector<8x1xf32>
    %374 = arith.mulf %371, %371 : vector<8x1xf32>
    %375 = arith.subf %373, %374 : vector<8x1xf32>
    %cst_181 = arith.constant 0.000000e+00 : f32
    %376 = vector.broadcast %cst_181 : f32 to vector<8x1xf32>
    %377 = arith.maximumf %375, %376 : vector<8x1xf32>
    %c0_182 = arith.constant 0 : index
    %c0_183 = arith.constant 0 : index
    %378 = vector.load %arg24[%c0_182, %c0_183] : memref<8x1xf32, #tpu.memory_space<vmem>>, vector<8x1xf32>
    %cst_184 = arith.constant 9.99999974E-6 : f32
    %379 = vector.broadcast %cst_184 : f32 to vector<8x1xf32>
    %380 = arith.addf %377, %379 : vector<8x1xf32>
    %381 = math.rsqrt %380 : vector<8x1xf32>
    %382 = arith.mulf %378, %381 : vector<8x1xf32>
    %c0_185 = arith.constant 0 : index
    %c0_186 = arith.constant 0 : index
    %383 = vector.load %arg25[%c0_185, %c0_186] : memref<8x1xf32, #tpu.memory_space<vmem>>, vector<8x1xf32>
    %384 = arith.mulf %371, %382 : vector<8x1xf32>
    %385 = arith.subf %383, %384 : vector<8x1xf32>
    %386 = tpu.concatenate %382, %382 in 0 : vector<8x1xf32>, vector<8x1xf32> -> vector<16x1xf32>
    %387 = tpu.concatenate %385, %385 in 0 : vector<8x1xf32>, vector<8x1xf32> -> vector<16x1xf32>
    %388 = vector.broadcast %386 : vector<16x1xf32> to vector<16x150xf32>
    %389 = arith.mulf %358, %388 : vector<16x150xf32>
    %390 = vector.broadcast %387 : vector<16x1xf32> to vector<16x150xf32>
    %391 = arith.addf %389, %390 : vector<16x150xf32>
    %cst_187 = arith.constant 0.000000e+00 : f32
    %392 = vector.broadcast %cst_187 : f32 to vector<16x150xf32>
    %393 = arith.cmpf oge, %391, %392 : vector<16x150xf32>
    %cst_188 = arith.constant 2.000000e-01 : f32
    %394 = vector.broadcast %cst_188 : f32 to vector<16x150xf32>
    %395 = arith.mulf %394, %391 : vector<16x150xf32>
    %396 = arith.select %393, %391, %395 : vector<16x150xi1>, vector<16x150xf32>
    %397 = tpu.iota {dimensions = array<i32: 0>} : vector<150x300xi32>
    %398 = tpu.iota {dimensions = array<i32: 1>} : vector<150x300xi32>
    %c2_i32_189 = arith.constant 2 : i32
    %399 = vector.broadcast %c2_i32_189 : i32 to vector<150x300xi32>
    %400 = arith.muli %399, %397 : vector<150x300xi32>
    %c-1_i32_190 = arith.constant -1 : i32
    %401 = vector.broadcast %c-1_i32_190 : i32 to vector<150x300xi32>
    %402 = arith.addi %400, %401 : vector<150x300xi32>
    %403 = arith.cmpi eq, %398, %402 : vector<150x300xi32>
    %404 = arith.extui %403 : vector<150x300xi1> to vector<150x300xi32>
    %405 = arith.sitofp %404 : vector<150x300xi32> to vector<150x300xf32>
    %cst_191 = arith.constant dense<0.000000e+00> : vector<16x300xf32>
    %406 = tpu.matmul %396, %405, %cst_191 {dimension_numbers = #tpu.dot_dimension_numbers<[1], [0], [0], [1], [0, 0, 1, 1], [], []>} : vector<16x150xf32>, vector<150x300xf32>, vector<16x300xf32> -> vector<16x300xf32>
    %c0_192 = arith.constant 0 : index
    %c0_193 = arith.constant 0 : index
    %c0_194 = arith.constant 0 : index
    %407 = vector.load %arg26[%c0_192, %c0_193, %c0_194] : memref<3x2x16xf32, #tpu.memory_space<vmem>>, vector<1x2x16xf32>
    %408 = vector.shape_cast %407 : vector<1x2x16xf32> to vector<2x16xf32>
    %cst_195 = arith.constant dense<0.000000e+00> : vector<2x300xf32>
    %409 = tpu.matmul %408, %406, %cst_195 {dimension_numbers = #tpu.dot_dimension_numbers<[1], [0], [0], [1], [0, 0, 1, 1], [], []>} : vector<2x16xf32>, vector<16x300xf32>, vector<2x300xf32> -> vector<2x300xf32>
    %c2_i32_196 = arith.constant 2 : i32
    %410 = vector.broadcast %c2_i32_196 : i32 to vector<150x300xi32>
    %411 = arith.muli %410, %397 : vector<150x300xi32>
    %c0_i32_197 = arith.constant 0 : i32
    %412 = vector.broadcast %c0_i32_197 : i32 to vector<150x300xi32>
    %413 = arith.addi %411, %412 : vector<150x300xi32>
    %414 = arith.cmpi eq, %398, %413 : vector<150x300xi32>
    %415 = arith.extui %414 : vector<150x300xi1> to vector<150x300xi32>
    %416 = arith.sitofp %415 : vector<150x300xi32> to vector<150x300xf32>
    %cst_198 = arith.constant dense<0.000000e+00> : vector<16x300xf32>
    %417 = tpu.matmul %396, %416, %cst_198 {dimension_numbers = #tpu.dot_dimension_numbers<[1], [0], [0], [1], [0, 0, 1, 1], [], []>} : vector<16x150xf32>, vector<150x300xf32>, vector<16x300xf32> -> vector<16x300xf32>
    %c1_199 = arith.constant 1 : index
    %c0_200 = arith.constant 0 : index
    %c0_201 = arith.constant 0 : index
    %418 = vector.load %arg26[%c1_199, %c0_200, %c0_201] : memref<3x2x16xf32, #tpu.memory_space<vmem>>, vector<1x2x16xf32>
    %419 = vector.shape_cast %418 : vector<1x2x16xf32> to vector<2x16xf32>
    %cst_202 = arith.constant dense<0.000000e+00> : vector<2x300xf32>
    %420 = tpu.matmul %419, %417, %cst_202 {dimension_numbers = #tpu.dot_dimension_numbers<[1], [0], [0], [1], [0, 0, 1, 1], [], []>} : vector<2x16xf32>, vector<16x300xf32>, vector<2x300xf32> -> vector<2x300xf32>
    %421 = arith.addf %409, %420 : vector<2x300xf32>
    %c2_i32_203 = arith.constant 2 : i32
    %422 = vector.broadcast %c2_i32_203 : i32 to vector<150x300xi32>
    %423 = arith.muli %422, %397 : vector<150x300xi32>
    %c1_i32_204 = arith.constant 1 : i32
    %424 = vector.broadcast %c1_i32_204 : i32 to vector<150x300xi32>
    %425 = arith.addi %423, %424 : vector<150x300xi32>
    %426 = arith.cmpi eq, %398, %425 : vector<150x300xi32>
    %427 = arith.extui %426 : vector<150x300xi1> to vector<150x300xi32>
    %428 = arith.sitofp %427 : vector<150x300xi32> to vector<150x300xf32>
    %cst_205 = arith.constant dense<0.000000e+00> : vector<16x300xf32>
    %429 = tpu.matmul %396, %428, %cst_205 {dimension_numbers = #tpu.dot_dimension_numbers<[1], [0], [0], [1], [0, 0, 1, 1], [], []>} : vector<16x150xf32>, vector<150x300xf32>, vector<16x300xf32> -> vector<16x300xf32>
    %c2_206 = arith.constant 2 : index
    %c0_207 = arith.constant 0 : index
    %c0_208 = arith.constant 0 : index
    %430 = vector.load %arg26[%c2_206, %c0_207, %c0_208] : memref<3x2x16xf32, #tpu.memory_space<vmem>>, vector<1x2x16xf32>
    %431 = vector.shape_cast %430 : vector<1x2x16xf32> to vector<2x16xf32>
    %cst_209 = arith.constant dense<0.000000e+00> : vector<2x300xf32>
    %432 = tpu.matmul %431, %429, %cst_209 {dimension_numbers = #tpu.dot_dimension_numbers<[1], [0], [0], [1], [0, 0, 1, 1], [], []>} : vector<2x16xf32>, vector<16x300xf32>, vector<2x300xf32> -> vector<2x300xf32>
    %433 = arith.addf %421, %432 : vector<2x300xf32>
    %c0_210 = arith.constant 0 : index
    %c0_211 = arith.constant 0 : index
    %434 = vector.load %arg27[%c0_210, %c0_211] : memref<1x1xf32, #tpu.memory_space<vmem>>, vector<1x1xf32>
    %435 = vector.broadcast %434 : vector<1x1xf32> to vector<2x300xf32>
    %436 = arith.addf %433, %435 : vector<2x300xf32>
    %cst_212 = arith.constant 0.000000e+00 : f32
    %437 = vector.broadcast %cst_212 : f32 to vector<2x300xf32>
    %438 = arith.maximumf %436, %437 : vector<2x300xf32>
    %c0_213 = arith.constant 0 : index
    %c0_214 = arith.constant 0 : index
    %439 = vector.load %arg32[%c0_213, %c0_214] : memref<2x300xf32, #tpu.memory_space<vmem>>, vector<2x300xf32>
    tpu.vector_store %arg32[%c0_213, %c0_214], %438 {strides = array<i32>} : memref<2x300xf32, #tpu.memory_space<vmem>>, vector<2x300xf32>,
    %c0_215 = arith.constant 0 : index
    %c0_216 = arith.constant 0 : index
    %440 = vector.load %arg28[%c0_215, %c0_216] : memref<10x20xf32, #tpu.memory_space<vmem>>, vector<10x20xf32>
    %cst_217 = arith.constant dense<0.000000e+00> : vector<2x20xf32>
    %441 = tpu.matmul %236, %440, %cst_217 {dimension_numbers = #tpu.dot_dimension_numbers<[1], [0], [0], [1], [0, 0, 1, 1], [], []>} : vector<2x10xf32>, vector<10x20xf32>, vector<2x20xf32> -> vector<2x20xf32>
    %c0_218 = arith.constant 0 : index
    %c0_219 = arith.constant 0 : index
    %442 = vector.load %arg29[%c0_218, %c0_219] : memref<1x20xf32, #tpu.memory_space<vmem>>, vector<1x20xf32>
    %443 = vector.broadcast %442 : vector<1x20xf32> to vector<2x20xf32>
    %444 = arith.addf %441, %443 : vector<2x20xf32>
    %cst_220 = arith.constant 0.000000e+00 : f32
    %445 = vector.broadcast %cst_220 : f32 to vector<2x20xf32>
    %446 = arith.cmpf oge, %444, %445 : vector<2x20xf32>
    %cst_221 = arith.constant 2.000000e-01 : f32
    %447 = vector.broadcast %cst_221 : f32 to vector<2x20xf32>
    %448 = arith.mulf %447, %444 : vector<2x20xf32>
    %449 = arith.select %446, %444, %448 : vector<2x20xi1>, vector<2x20xf32>
    %c0_222 = arith.constant 0 : index
    %c0_223 = arith.constant 0 : index
    %450 = vector.load %arg30[%c0_222, %c0_223] : memref<20x1xf32, #tpu.memory_space<vmem>>, vector<20x1xf32>
    %cst_224 = arith.constant dense<0.000000e+00> : vector<2x1xf32>
    %451 = tpu.matmul %449, %450, %cst_224 {dimension_numbers = #tpu.dot_dimension_numbers<[1], [0], [0], [1], [0, 0, 1, 1], [], []>} : vector<2x20xf32>, vector<20x1xf32>, vector<2x1xf32> -> vector<2x1xf32>
    %c0_225 = arith.constant 0 : index
    %c0_226 = arith.constant 0 : index
    %452 = vector.load %arg31[%c0_225, %c0_226] : memref<1x1xf32, #tpu.memory_space<vmem>>, vector<1x1xf32>
    %453 = vector.broadcast %452 : vector<1x1xf32> to vector<2x1xf32>
    %454 = arith.addf %451, %453 : vector<2x1xf32>
    %cst_227 = arith.constant 2.000000e+01 : f32
    %455 = vector.broadcast %cst_227 : f32 to vector<2x1xf32>
    %456 = arith.cmpf ogt, %454, %455 : vector<2x1xf32>
    %cst_228 = arith.constant 2.000000e+01 : f32
    %457 = vector.broadcast %cst_228 : f32 to vector<2x1xf32>
    %458 = arith.minimumf %454, %457 : vector<2x1xf32>
    %459 = math.exp %458 : vector<2x1xf32>
    %460 = math.log1p %459 : vector<2x1xf32>
    %461 = arith.select %456, %454, %460 : vector<2x1xi1>, vector<2x1xf32>
    %c0_229 = arith.constant 0 : index
    %c0_230 = arith.constant 0 : index
    %462 = vector.load %arg33[%c0_229, %c0_230] : memref<2x1xf32, #tpu.memory_space<vmem>>, vector<2x1xf32>
    tpu.vector_store %arg33[%c0_229, %c0_230], %461 {strides = array<i32>} : memref<2x1xf32, #tpu.memory_space<vmem>>, vector<2x1xf32>,
    return
  }
}

</mosaic_0001>

<llo_original>
// kernel: generator_forward.1
$region0: #{generator_forward.1}
  #allocation0 [shape = 'u32[]', space=smem, size = 0x4, offset = 0x4, fixed_abs, tag = 'smem constant byte address 0x4 - core index']
  #allocation1 [shape = 'u32[72,128]{1,0:T(1,128)}', space=vmem, size = 0x9000, scoped, tag = 'internal scratch']
  #allocation2 [shape = 'f32[1,1]{1,0:T(1,128)S(1)}', space=vmem, size = 0x200, scoped, tag = 'scoped memory for generator_forward.1']
  #allocation3 [shape = 'f32[1,1]{1,0:T(1,128)S(1)}', space=vmem, size = 0x200, scoped, tag = 'scoped memory for generator_forward.1']
  #allocation4 [shape = 'f32[1,1]{1,0:T(1,128)S(1)}', space=vmem, size = 0x200, scoped, tag = 'scoped memory for generator_forward.1']
  #allocation5 [shape = 'f32[1,1]{1,0:T(1,128)S(1)}', space=vmem, size = 0x200, scoped, tag = 'scoped memory for generator_forward.1']
  %s0 = inlined_call_operand.smem [shape: u32[34], index: -1, kind: input, shape index: {}]
  %s1 = sld [smem:[%s0]]
  %s2 = scalar_lea.smem %s0, 1
  %s3 = sld [smem:[%s2]]
  %s4 = scalar_lea.smem %s0, 2
  %s5 = sld [smem:[%s4]]
  %s6 = scalar_lea.smem %s0, 3
  %s7 = sld [smem:[%s6]]
  %s8 = scalar_lea.smem %s0, 4
  %s9 = sld [smem:[%s8]]
  %s10 = scalar_lea.smem %s0, 5
  %s11 = sld [smem:[%s10]]
  %s12 = scalar_lea.smem %s0, 6
  %s13 = sld [smem:[%s12]]
  %s14 = scalar_lea.smem %s0, 7
  %s15 = sld [smem:[%s14]]
  %s16 = scalar_lea.smem %s0, 8
  %s17 = sld [smem:[%s16]]
  %s18 = scalar_lea.smem %s0, 9
  %s19 = sld [smem:[%s18]]
  %s20 = scalar_lea.smem %s0, 10
  %s21 = sld [smem:[%s20]]
  %s22 = scalar_lea.smem %s0, 11
  %s23 = sld [smem:[%s22]]
  %s24 = scalar_lea.smem %s0, 12
  %s25 = sld [smem:[%s24]]
  %s26 = scalar_lea.smem %s0, 13
  %s27 = sld [smem:[%s26]]
  %s28 = scalar_lea.smem %s0, 14
  %s29 = sld [smem:[%s28]]
  %s30 = scalar_lea.smem %s0, 15
  %s31 = sld [smem:[%s30]]
  %s32 = scalar_lea.smem %s0, 16
  %s33 = sld [smem:[%s32]]
  %s34 = scalar_lea.smem %s0, 17
  %s35 = sld [smem:[%s34]]
  %s36 = scalar_lea.smem %s0, 18
  %s37 = sld [smem:[%s36]]
  %s38 = scalar_lea.smem %s0, 19
  %s39 = sld [smem:[%s38]]
  %s40 = scalar_lea.smem %s0, 20
  %s41 = sld [smem:[%s40]]
  %s42 = scalar_lea.smem %s0, 21
  %s43 = sld [smem:[%s42]]
  %s44 = scalar_lea.smem %s0, 22
  %s45 = sld [smem:[%s44]]
  %s46 = scalar_lea.smem %s0, 23
  %s47 = sld [smem:[%s46]]
  %s48 = scalar_lea.smem %s0, 24
  %s49 = sld [smem:[%s48]]
  %s50 = scalar_lea.smem %s0, 25
  %s51 = sld [smem:[%s50]]
  %s52 = scalar_lea.smem %s0, 26
  %s53 = sld [smem:[%s52]]
  %s54 = scalar_lea.smem %s0, 27
  %s55 = sld [smem:[%s54]]
  %s56 = scalar_lea.smem %s0, 28
  %s57 = sld [smem:[%s56]]
  %s58 = scalar_lea.smem %s0, 29
  %s59 = sld [smem:[%s58]]
  %s60 = scalar_lea.smem %s0, 30
  %s61 = sld [smem:[%s60]]
  %s62 = scalar_lea.smem %s0, 31
  %s63 = sld [smem:[%s62]]
  %s64 = scalar_lea.smem %s0, 32
  %s65 = sld [smem:[%s64]]
  %s66 = scalar_lea.smem %s0, 33
  %s67 = sld [smem:[%s66]]
  %68 = xla_tuple %s65, %s67
  %s69 = sld [smem:[#allocation0]]
  $region146: #{generator_forward.1} parent=0
    _
  %s71 = ssub.s32 1, %s69
  %s72 = scalar_select 0, %s71, %s69
  %v73 = vstv %s15
  %74 = vst [vmem:[#allocation2] sm:$0x1] %v73
  %v75 = vstv %s17
  %76 = vst [vmem:[#allocation3] sm:$0x1] %v75
  %v77 = vstv %s55
  %78 = vst [vmem:[#allocation4] sm:$0x1] %v77
  %v79 = vstv %s63
  %80 = vst [vmem:[#allocation5] sm:$0x1] %v79
  $region1: #{generator_forward.1} parent=0
    #allocation6 [shape = 'u8[3072]{0}', space=vmem, size = 0xc00, scoped, tag = 'output window, operand 0, single buffered']
    #allocation7 [shape = 's32[1]{0}', space=sflag, size = 0x4, scoped, tag = 'scoped memory for generator_forward.1']
    %81 = vsyncpa [#allocation7], 0
    // Predicated region
    $region2: #{generator_forward.1} parent=1 // pred_check
      _
    $region3: #{generator_forward.1} parent=1 // pred_check_branch
      %83 = sbr.rel (0) target = $region5
    $region4: #{generator_forward.1} parent=1 // pred_region
      _
    $region5: #{generator_forward.1} parent=1 // pred_fallthru
      _
    // Predicated region
    $region6: #{generator_forward.1} parent=1 // pred_check
      _
    $region7: #{generator_forward.1} parent=1 // pred_check_branch
      %85 = sbr.rel (0) target = $region9
    $region8: #{generator_forward.1} parent=1 // pred_region
      _
    $region9: #{generator_forward.1} parent=1 // pred_fallthru
      _
    // Predicated region
    $region10: #{generator_forward.1} parent=1 // pred_check
      _
    $region11: #{generator_forward.1} parent=1 // pred_check_branch
      %87 = sbr.rel (0) target = $region13
    $region12: #{generator_forward.1} parent=1 // pred_region
      _
    $region13: #{generator_forward.1} parent=1 // pred_fallthru
      _
    // Predicated region
    $region14: #{generator_forward.1} parent=1 // pred_check
      _
    $region15: #{generator_forward.1} parent=1 // pred_check_branch
      %89 = sbr.rel (0) target = $region17
    $region16: #{generator_forward.1} parent=1 // pred_region
      _
    $region17: #{generator_forward.1} parent=1 // pred_fallthru
      _
    // Predicated region
    $region18: #{generator_forward.1} parent=1 // pred_check
      _
    $region19: #{generator_forward.1} parent=1 // pred_check_branch
      %91 = sbr.rel (0) target = $region21
    $region20: #{generator_forward.1} parent=1 // pred_region
      _
    $region21: #{generator_forward.1} parent=1 // pred_fallthru
      _
    // Predicated region
    $region22: #{generator_forward.1} parent=1 // pred_check
      _
    $region23: #{generator_forward.1} parent=1 // pred_check_branch
      %93 = sbr.rel (0) target = $region25
    $region24: #{generator_forward.1} parent=1 // pred_region
      _
    $region25: #{generator_forward.1} parent=1 // pred_fallthru
      _
    // Predicated region
    $region26: #{generator_forward.1} parent=1 // pred_check
      _
    $region27: #{generator_forward.1} parent=1 // pred_check_branch
      %95 = sbr.rel (0) target = $region29
    $region28: #{generator_forward.1} parent=1 // pred_region
      _
    $region29: #{generator_forward.1} parent=1 // pred_fallthru
      _
    // Predicated region
    $region30: #{generator_forward.1} parent=1 // pred_check
      _
    $region31: #{generator_forward.1} parent=1 // pred_check_branch
      %97 = sbr.rel (0) target = $region33
    $region32: #{generator_forward.1} parent=1 // pred_region
      _
    $region33: #{generator_forward.1} parent=1 // pred_fallthru
      _
    // Predicated region
    $region34: #{generator_forward.1} parent=1 // pred_check
      _
    $region35: #{generator_forward.1} parent=1 // pred_check_branch
      %99 = sbr.rel (0) target = $region37
    $region36: #{generator_forward.1} parent=1 // pred_region
      _
    $region37: #{generator_forward.1} parent=1 // pred_fallthru
      _
    // Predicated region
    $region38: #{generator_forward.1} parent=1 // pred_check
      _
    $region39: #{generator_forward.1} parent=1 // pred_check_branch
      %101 = sbr.rel (0) target = $region41
    $region40: #{generator_forward.1} parent=1 // pred_region
      _
    $region41: #{generator_forward.1} parent=1 // pred_fallthru
      _
    // Predicated region
    $region42: #{generator_forward.1} parent=1 // pred_check
      _
    $region43: #{generator_forward.1} parent=1 // pred_check_branch
      %103 = sbr.rel (0) target = $region45
    $region44: #{generator_forward.1} parent=1 // pred_region
      _
    $region45: #{generator_forward.1} parent=1 // pred_fallthru
      _
    // Predicated region
    $region46: #{generator_forward.1} parent=1 // pred_check
      _
    $region47: #{generator_forward.1} parent=1 // pred_check_branch
      %105 = sbr.rel (0) target = $region49
    $region48: #{generator_forward.1} parent=1 // pred_region
      _
    $region49: #{generator_forward.1} parent=1 // pred_fallthru
      _
    // Predicated region
    $region50: #{generator_forward.1} parent=1 // pred_check
      _
    $region51: #{generator_forward.1} parent=1 // pred_check_branch
      %107 = sbr.rel (0) target = $region53
    $region52: #{generator_forward.1} parent=1 // pred_region
      _
    $region53: #{generator_forward.1} parent=1 // pred_fallthru
      _
    // Predicated region
    $region54: #{generator_forward.1} parent=1 // pred_check
      _
    $region55: #{generator_forward.1} parent=1 // pred_check_branch
      %109 = sbr.rel (0) target = $region57
    $region56: #{generator_forward.1} parent=1 // pred_region
      _
    $region57: #{generator_forward.1} parent=1 // pred_fallthru
      _
    // Predicated region
    $region58: #{generator_forward.1} parent=1 // pred_check
      _
    $region59: #{generator_forward.1} parent=1 // pred_check_branch
      %111 = sbr.rel (0) target = $region61
    $region60: #{generator_forward.1} parent=1 // pred_region
      _
    $region61: #{generator_forward.1} parent=1 // pred_fallthru
      _
    // Predicated region
    $region62: #{generator_forward.1} parent=1 // pred_check
      _
    $region63: #{generator_forward.1} parent=1 // pred_check_branch
      %113 = sbr.rel (0) target = $region65
    $region64: #{generator_forward.1} parent=1 // pred_region
      _
    $region65: #{generator_forward.1} parent=1 // pred_fallthru
      _
    // Predicated region
    $region66: #{generator_forward.1} parent=1 // pred_check
      _
    $region67: #{generator_forward.1} parent=1 // pred_check_branch
      %115 = sbr.rel (0) target = $region69
    $region68: #{generator_forward.1} parent=1 // pred_region
      _
    $region69: #{generator_forward.1} parent=1 // pred_fallthru
      _
    // Predicated region
    $region70: #{generator_forward.1} parent=1 // pred_check
      _
    $region71: #{generator_forward.1} parent=1 // pred_check_branch
      %117 = sbr.rel (0) target = $region73
    $region72: #{generator_forward.1} parent=1 // pred_region
      _
    $region73: #{generator_forward.1} parent=1 // pred_fallthru
      _
    // Predicated region
    $region74: #{generator_forward.1} parent=1 // pred_check
      _
    $region75: #{generator_forward.1} parent=1 // pred_check_branch
      %119 = sbr.rel (0) target = $region77
    $region76: #{generator_forward.1} parent=1 // pred_region
      _
    $region77: #{generator_forward.1} parent=1 // pred_fallthru
      _
    // Predicated region
    $region78: #{generator_forward.1} parent=1 // pred_check
      _
    $region79: #{generator_forward.1} parent=1 // pred_check_branch
      %121 = sbr.rel (0) target = $region81
    $region80: #{generator_forward.1} parent=1 // pred_region
      _
    $region81: #{generator_forward.1} parent=1 // pred_fallthru
      _
    // Predicated region
    $region82: #{generator_forward.1} parent=1 // pred_check
      _
    $region83: #{generator_forward.1} parent=1 // pred_check_branch
      %123 = sbr.rel (0) target = $region85
    $region84: #{generator_forward.1} parent=1 // pred_region
      _
    $region85: #{generator_forward.1} parent=1 // pred_fallthru
      _
    // Predicated region
    $region86: #{generator_forward.1} parent=1 // pred_check
      _
    $region87: #{generator_forward.1} parent=1 // pred_check_branch
      %125 = sbr.rel (0) target = $region89
    $region88: #{generator_forward.1} parent=1 // pred_region
      _
    $region89: #{generator_forward.1} parent=1 // pred_fallthru
      _
    // Predicated region
    $region90: #{generator_forward.1} parent=1 // pred_check
      _
    $region91: #{generator_forward.1} parent=1 // pred_check_branch
      %127 = sbr.rel (0) target = $region93
    $region92: #{generator_forward.1} parent=1 // pred_region
      _
    $region93: #{generator_forward.1} parent=1 // pred_fallthru
      _
    // Predicated region
    $region94: #{generator_forward.1} parent=1 // pred_check
      _
    $region95: #{generator_forward.1} parent=1 // pred_check_branch
      %129 = sbr.rel (0) target = $region97
    $region96: #{generator_forward.1} parent=1 // pred_region
      _
    $region97: #{generator_forward.1} parent=1 // pred_fallthru
      _
    // Predicated region
    $region98: #{generator_forward.1} parent=1 // pred_check
      _
    $region99: #{generator_forward.1} parent=1 // pred_check_branch
      %131 = sbr.rel (0) target = $region101
    $region100: #{generator_forward.1} parent=1 // pred_region
      _
    $region101: #{generator_forward.1} parent=1 // pred_fallthru
      _
    // Predicated region
    $region102: #{generator_forward.1} parent=1 // pred_check
      _
    $region103: #{generator_forward.1} parent=1 // pred_check_branch
      %133 = sbr.rel (0) target = $region105
    $region104: #{generator_forward.1} parent=1 // pred_region
      _
    $region105: #{generator_forward.1} parent=1 // pred_fallthru
      _
    // Predicated region
    $region106: #{generator_forward.1} parent=1 // pred_check
      _
    $region107: #{generator_forward.1} parent=1 // pred_check_branch
      %135 = sbr.rel (0) target = $region109
    $region108: #{generator_forward.1} parent=1 // pred_region
      _
    $region109: #{generator_forward.1} parent=1 // pred_fallthru
      _
    // Predicated region
    $region110: #{generator_forward.1} parent=1 // pred_check
      _
    $region111: #{generator_forward.1} parent=1 // pred_check_branch
      %137 = sbr.rel (0) target = $region113
    $region112: #{generator_forward.1} parent=1 // pred_region
      _
    $region113: #{generator_forward.1} parent=1 // pred_fallthru
      _
    // Predicated region
    $region114: #{generator_forward.1} parent=1 // pred_check
      _
    $region115: #{generator_forward.1} parent=1 // pred_check_branch
      %139 = sbr.rel (0) target = $region117
    $region116: #{generator_forward.1} parent=1 // pred_region
      _
    $region117: #{generator_forward.1} parent=1 // pred_fallthru
      _
    // Predicated region
    $region118: #{generator_forward.1} parent=1 // pred_check
      _
    $region119: #{generator_forward.1} parent=1 // pred_check_branch
      %141 = sbr.rel (0) target = $region121
    $region120: #{generator_forward.1} parent=1 // pred_region
      _
    $region121: #{generator_forward.1} parent=1 // pred_fallthru
      _
    // Predicated region
    $region122: #{generator_forward.1} parent=1 // pred_check
      _
    $region123: #{generator_forward.1} parent=1 // pred_check_branch
      %143 = sbr.rel (0) target = $region125
    $region124: #{generator_forward.1} parent=1 // pred_region
      _
    $region125: #{generator_forward.1} parent=1 // pred_fallthru
      _
    // Predicated region
    $region126: #{generator_forward.1} parent=1 // pred_check
      _
    $region127: #{generator_forward.1} parent=1 // pred_check_branch
      %145 = sbr.rel (0) target = $region129
    $region128: #{generator_forward.1} parent=1 // pred_region
      _
    $region129: #{generator_forward.1} parent=1 // pred_fallthru
      _
    %v146 = vld [vmem:[%s3] sm:$0xf]
    %v147 = vlaneseq
    %v148 = vshrl.u32 %v147, 7
    %v149 = vadd.s32 %v148, 8
    %v150 = vadd.s32 %v148, 16
    %v151 = vadd.s32 %v148, 24
    %v152 = vadd.s32 %v148, 32
    %v153 = vadd.s32 %v148, 40
    %v154 = vadd.s32 %v148, 48
    %v155 = vadd.s32 %v148, 56
    %v156 = vadd.s32 %v148, 64
    %v157 = vadd.s32 %v148, 72
    %v158 = vadd.s32 %v148, 80
    %v159 = vadd.s32 %v148, 88
    %v160 = vadd.s32 %v148, 96
    %v161 = vadd.s32 %v148, 104
    %v162 = vadd.s32 %v148, 112
    %v163 = vadd.s32 %v148, 120
    %v164 = vadd.s32 %v148, 128
    %v165 = vadd.s32 %v148, 136
    %v166 = vadd.s32 %v148, 144
    %v167 = vadd.s32 %v148, 152
    %v168 = vadd.s32 %v148, 160
    %v169 = vadd.s32 %v148, 168
    %v170 = vadd.s32 %v148, 176
    %v171 = vadd.s32 %v148, 184
    %v172 = vadd.s32 %v148, 192
    %v173 = vadd.s32 %v148, 200
    %v174 = vadd.s32 %v148, 208
    %v175 = vadd.s32 %v148, 216
    %v176 = vadd.s32 %v148, 224
    %v177 = vadd.s32 %v148, 232
    %v178 = vlaneseq
    %v179 = vand.u32 %v178, 127
    %v180 = vmul.u32 %v179, 2
    %v181 = vadd.s32 %v180, 4294967295
    %vm182 = vcmp.eq.s32.totalorder %v148, %v181
    %vm183 = vcmp.eq.s32.totalorder %v149, %v181
    %vm184 = vcmp.eq.s32.totalorder %v150, %v181
    %vm185 = vcmp.eq.s32.totalorder %v151, %v181
    %vm186 = vcmp.eq.s32.totalorder %v152, %v181
    %vm187 = vcmp.eq.s32.totalorder %v153, %v181
    %vm188 = vcmp.eq.s32.totalorder %v154, %v181
    %vm189 = vcmp.eq.s32.totalorder %v155, %v181
    %vm190 = vcmp.eq.s32.totalorder %v156, %v181
    %vm191 = vcmp.eq.s32.totalorder %v157, %v181
    %vm192 = vcmp.eq.s32.totalorder %v158, %v181
    %vm193 = vcmp.eq.s32.totalorder %v159, %v181
    %vm194 = vcmp.eq.s32.totalorder %v160, %v181
    %vm195 = vcmp.eq.s32.totalorder %v161, %v181
    %vm196 = vcmp.eq.s32.totalorder %v162, %v181
    %vm197 = vcmp.eq.s32.totalorder %v163, %v181
    %vm198 = vcmp.eq.s32.totalorder %v164, %v181
    %vm199 = vcmp.eq.s32.totalorder %v165, %v181
    %vm200 = vcmp.eq.s32.totalorder %v166, %v181
    %vm201 = vcmp.eq.s32.totalorder %v167, %v181
    %vm202 = vcmp.eq.s32.totalorder %v168, %v181
    %vm203 = vcmp.eq.s32.totalorder %v169, %v181
    %vm204 = vcmp.eq.s32.totalorder %v170, %v181
    %vm205 = vcmp.eq.s32.totalorder %v171, %v181
    %vm206 = vcmp.eq.s32.totalorder %v172, %v181
    %vm207 = vcmp.eq.s32.totalorder %v173, %v181
    %vm208 = vcmp.eq.s32.totalorder %v174, %v181
    %vm209 = vcmp.eq.s32.totalorder %v175, %v181
    %vm210 = vcmp.eq.s32.totalorder %v176, %v181
    %vm211 = vcmp.eq.s32.totalorder %v177, %v181
    %v212 = vsel %vm182, 1, 0
    %v213 = vsel %vm183, 1, 0
    %v214 = vsel %vm184, 1, 0
    %v215 = vsel %vm185, 1, 0
    %v216 = vsel %vm186, 1, 0
    %v217 = vsel %vm187, 1, 0
    %v218 = vsel %vm188, 1, 0
    %v219 = vsel %vm189, 1, 0
    %v220 = vsel %vm190, 1, 0
    %v221 = vsel %vm191, 1, 0
    %v222 = vsel %vm192, 1, 0
    %v223 = vsel %vm193, 1, 0
    %v224 = vsel %vm194, 1, 0
    %v225 = vsel %vm195, 1, 0
    %v226 = vsel %vm196, 1, 0
    %v227 = vsel %vm197, 1, 0
    %v228 = vsel %vm198, 1, 0
    %v229 = vsel %vm199, 1, 0
    %v230 = vsel %vm200, 1, 0
    %v231 = vsel %vm201, 1, 0
    %v232 = vsel %vm202, 1, 0
    %v233 = vsel %vm203, 1, 0
    %v234 = vsel %vm204, 1, 0
    %v235 = vsel %vm205, 1, 0
    %v236 = vsel %vm206, 1, 0
    %v237 = vsel %vm207, 1, 0
    %v238 = vsel %vm208, 1, 0
    %v239 = vsel %vm209, 1, 0
    %v240 = vsel %vm210, 1, 0
    %v241 = vsel %vm211, 1, 0
    %v242 = vcvt.s32.f32 %v212
    %v243 = vcvt.s32.f32 %v213
    %v244 = vcvt.s32.f32 %v214
    %v245 = vcvt.s32.f32 %v215
    %v246 = vcvt.s32.f32 %v216
    %v247 = vcvt.s32.f32 %v217
    %v248 = vcvt.s32.f32 %v218
    %v249 = vcvt.s32.f32 %v219
    %v250 = vcvt.s32.f32 %v220
    %v251 = vcvt.s32.f32 %v221
    %v252 = vcvt.s32.f32 %v222
    %v253 = vcvt.s32.f32 %v223
    %v254 = vcvt.s32.f32 %v224
    %v255 = vcvt.s32.f32 %v225
    %v256 = vcvt.s32.f32 %v226
    %v257 = vcvt.s32.f32 %v227
    %v258 = vcvt.s32.f32 %v228
    %v259 = vcvt.s32.f32 %v229
    %v260 = vcvt.s32.f32 %v230
    %v261 = vcvt.s32.f32 %v231
    %v262 = vcvt.s32.f32 %v232
    %v263 = vcvt.s32.f32 %v233
    %v264 = vcvt.s32.f32 %v234
    %v265 = vcvt.s32.f32 %v235
    %v266 = vcvt.s32.f32 %v236
    %v267 = vcvt.s32.f32 %v237
    %v268 = vcvt.s32.f32 %v238
    %v269 = vcvt.s32.f32 %v239
    %v270 = vcvt.s32.f32 %v240
    %v271 = vcvt.s32.f32 %v241
    %273 = vst [vmem:[#allocation1] ss:$4 sm:$0xff] %v146
    %v274 = vld.sshfl [vmem:[#allocation1] sm:$0xff pattern:$0x73625140]
    %v275 = vld.sshfl [vmem:[#allocation1 + $0x8] sm:$0xff pattern:$0x73625140]
    %vm277 = vcmask 916480
    %v278 = vsel %vm277, %v275, 0
    %280 = vmatpush.msra.mxu0 %v257
    %281 = vmatpush.msra.mxu0 %v256
    %282 = vmatpush.msra.mxu0 %v255
    %283 = vmatpush.msra.mxu0 %v254
    %284 = vmatpush.msra.mxu0 %v253
    %285 = vmatpush.msra.mxu0 %v252
    %286 = vmatpush.msra.mxu0 %v251
    %287 = vmatpush.msra.mxu0 %v250
    %288 = vmatpush.msra.mxu0 %v249
    %289 = vmatpush.msra.mxu0 %v248
    %290 = vmatpush.msra.mxu0 %v247
    %291 = vmatpush.msra.mxu0 %v246
    %292 = vmatpush.msra.mxu0 %v245
    %293 = vmatpush.msra.mxu0 %v244
    %294 = vmatpush.msra.mxu0 %v243
    %295 = vmatpush.msra.mxu0 %v242
    %296 = vmatmul.f32.gmra.mxu0 %v274
    %v297 = vpop.f32.mrf.mxu0
    %v298 = vadd.f32 0.0, %v297
    %299 = vdwg.mxu0
    %300 = vmatpush.msra.mxu0 0.0
    %301 = vmatpush.msra.mxu0 0.0
    %302 = vmatpush.msra.mxu0 %v271
    %303 = vmatpush.msra.mxu0 %v270
    %304 = vmatpush.msra.mxu0 %v269
    %305 = vmatpush.msra.mxu0 %v268
    %306 = vmatpush.msra.mxu0 %v267
    %307 = vmatpush.msra.mxu0 %v266
    %308 = vmatpush.msra.mxu0 %v265
    %309 = vmatpush.msra.mxu0 %v264
    %310 = vmatpush.msra.mxu0 %v263
    %311 = vmatpush.msra.mxu0 %v262
    %312 = vmatpush.msra.mxu0 %v261
    %313 = vmatpush.msra.mxu0 %v260
    %314 = vmatpush.msra.mxu0 %v259
    %315 = vmatpush.msra.mxu0 %v258
    %316 = vmatmul.f32.gmra.mxu0 %v278
    %v317 = vpop.f32.mrf.mxu0
    %v318 = vadd.f32 %v298, %v317
    %319 = vdwg.mxu0
    %v320 = vld [vmem:[%s5] sm:$0xff]
    %v321 = vld [vmem:[%s5 + $0x8] sm:$0xff]
    %vm322 = vcmp.eq.s32.totalorder %v148, %v180
    %vm323 = vcmp.eq.s32.totalorder %v149, %v180
    %vm324 = vcmp.eq.s32.totalorder %v150, %v180
    %vm325 = vcmp.eq.s32.totalorder %v151, %v180
    %vm326 = vcmp.eq.s32.totalorder %v152, %v180
    %vm327 = vcmp.eq.s32.totalorder %v153, %v180
    %vm328 = vcmp.eq.s32.totalorder %v154, %v180
    %vm329 = vcmp.eq.s32.totalorder %v155, %v180
    %vm330 = vcmp.eq.s32.totalorder %v156, %v180
    %vm331 = vcmp.eq.s32.totalorder %v157, %v180
    %vm332 = vcmp.eq.s32.totalorder %v158, %v180
    %vm333 = vcmp.eq.s32.totalorder %v159, %v180
    %vm334 = vcmp.eq.s32.totalorder %v160, %v180
    %vm335 = vcmp.eq.s32.totalorder %v161, %v180
    %vm336 = vcmp.eq.s32.totalorder %v162, %v180
    %vm337 = vcmp.eq.s32.totalorder %v163, %v180
    %vm338 = vcmp.eq.s32.totalorder %v164, %v180
    %vm339 = vcmp.eq.s32.totalorder %v165, %v180
    %vm340 = vcmp.eq.s32.totalorder %v166, %v180
    %vm341 = vcmp.eq.s32.totalorder %v167, %v180
    %vm342 = vcmp.eq.s32.totalorder %v168, %v180
    %vm343 = vcmp.eq.s32.totalorder %v169, %v180
    %vm344 = vcmp.eq.s32.totalorder %v170, %v180
    %vm345 = vcmp.eq.s32.totalorder %v171, %v180
    %vm346 = vcmp.eq.s32.totalorder %v172, %v180
    %vm347 = vcmp.eq.s32.totalorder %v173, %v180
    %vm348 = vcmp.eq.s32.totalorder %v174, %v180
    %vm349 = vcmp.eq.s32.totalorder %v175, %v180
    %vm350 = vcmp.eq.s32.totalorder %v176, %v180
    %vm351 = vcmp.eq.s32.totalorder %v177, %v180
    %v352 = vsel %vm322, 1, 0
    %v353 = vsel %vm323, 1, 0
    %v354 = vsel %vm324, 1, 0
    %v355 = vsel %vm325, 1, 0
    %v356 = vsel %vm326, 1, 0
    %v357 = vsel %vm327, 1, 0
    %v358 = vsel %vm328, 1, 0
    %v359 = vsel %vm329, 1, 0
    %v360 = vsel %vm330, 1, 0
    %v361 = vsel %vm331, 1, 0
    %v362 = vsel %vm332, 1, 0
    %v363 = vsel %vm333, 1, 0
    %v364 = vsel %vm334, 1, 0
    %v365 = vsel %vm335, 1, 0
    %v366 = vsel %vm336, 1, 0
    %v367 = vsel %vm337, 1, 0
    %v368 = vsel %vm338, 1, 0
    %v369 = vsel %vm339, 1, 0
    %v370 = vsel %vm340, 1, 0
    %v371 = vsel %vm341, 1, 0
    %v372 = vsel %vm342, 1, 0
    %v373 = vsel %vm343, 1, 0
    %v374 = vsel %vm344, 1, 0
    %v375 = vsel %vm345, 1, 0
    %v376 = vsel %vm346, 1, 0
    %v377 = vsel %vm347, 1, 0
    %v378 = vsel %vm348, 1, 0
    %v379 = vsel %vm349, 1, 0
    %v380 = vsel %vm350, 1, 0
    %v381 = vsel %vm351, 1, 0
    %v382 = vcvt.s32.f32 %v352
    %v383 = vcvt.s32.f32 %v353
    %v384 = vcvt.s32.f32 %v354
    %v385 = vcvt.s32.f32 %v355
    %v386 = vcvt.s32.f32 %v356
    %v387 = vcvt.s32.f32 %v357
    %v388 = vcvt.s32.f32 %v358
    %v389 = vcvt.s32.f32 %v359
    %v390 = vcvt.s32.f32 %v360
    %v391 = vcvt.s32.f32 %v361
    %v392 = vcvt.s32.f32 %v362
    %v393 = vcvt.s32.f32 %v363
    %v394 = vcvt.s32.f32 %v364
    %v395 = vcvt.s32.f32 %v365
    %v396 = vcvt.s32.f32 %v366
    %v397 = vcvt.s32.f32 %v367
    %v398 = vcvt.s32.f32 %v368
    %v399 = vcvt.s32.f32 %v369
    %v400 = vcvt.s32.f32 %v370
    %v401 = vcvt.s32.f32 %v371
    %v402 = vcvt.s32.f32 %v372
    %v403 = vcvt.s32.f32 %v373
    %v404 = vcvt.s32.f32 %v374
    %v405 = vcvt.s32.f32 %v375
    %v406 = vcvt.s32.f32 %v376
    %v407 = vcvt.s32.f32 %v377
    %v408 = vcvt.s32.f32 %v378
    %v409 = vcvt.s32.f32 %v379
    %v410 = vcvt.s32.f32 %v380
    %v411 = vcvt.s32.f32 %v381
    %412 = vst [vmem:[#allocation1] ss:$4 sm:$0xff] %v146
    %v413 = vld.sshfl [vmem:[#allocation1] sm:$0xff pattern:$0x73625140]
    %v414 = vld.sshfl [vmem:[#allocation1 + $0x8] sm:$0xff pattern:$0x73625140]
    %v416 = vsel %vm277, %v414, 0
    %418 = vmatpush.msra.mxu0 %v397
    %419 = vmatpush.msra.mxu0 %v396
    %420 = vmatpush.msra.mxu0 %v395
    %421 = vmatpush.msra.mxu0 %v394
    %422 = vmatpush.msra.mxu0 %v393
    %423 = vmatpush.msra.mxu0 %v392
    %424 = vmatpush.msra.mxu0 %v391
    %425 = vmatpush.msra.mxu0 %v390
    %426 = vmatpush.msra.mxu0 %v389
    %427 = vmatpush.msra.mxu0 %v388
    %428 = vmatpush.msra.mxu0 %v387
    %429 = vmatpush.msra.mxu0 %v386
    %430 = vmatpush.msra.mxu0 %v385
    %431 = vmatpush.msra.mxu0 %v384
    %432 = vmatpush.msra.mxu0 %v383
    %433 = vmatpush.msra.mxu0 %v382
    %434 = vmatmul.f32.gmra.mxu0 %v413
    %v435 = vpop.f32.mrf.mxu0
    %v436 = vadd.f32 0.0, %v435
    %437 = vdwg.mxu0
    %438 = vmatpush.msra.mxu0 0.0
    %439 = vmatpush.msra.mxu0 0.0
    %440 = vmatpush.msra.mxu0 %v411
    %441 = vmatpush.msra.mxu0 %v410
    %442 = vmatpush.msra.mxu0 %v409
    %443 = vmatpush.msra.mxu0 %v408
    %444 = vmatpush.msra.mxu0 %v407
    %445 = vmatpush.msra.mxu0 %v406
    %446 = vmatpush.msra.mxu0 %v405
    %447 = vmatpush.msra.mxu0 %v404
    %448 = vmatpush.msra.mxu0 %v403
    %449 = vmatpush.msra.mxu0 %v402
    %450 = vmatpush.msra.mxu0 %v401
    %451 = vmatpush.msra.mxu0 %v400
    %452 = vmatpush.msra.mxu0 %v399
    %453 = vmatpush.msra.mxu0 %v398
    %454 = vmatmul.f32.gmra.mxu0 %v416
    %v455 = vpop.f32.mrf.mxu0
    %v456 = vadd.f32 %v436, %v455
    %457 = vdwg.mxu0
    %s458 = scalar_lea.vmem %s5, 16
    %v459 = vld [vmem:[%s458] sm:$0xff]
    %v460 = vld [vmem:[%s458 + $0x8] sm:$0xff]
    %vm461 = vcmask 15360
    %v463 = vsel %vm461, %v459, 0
    %v466 = vsel %vm461, %v460, 0
    %vm468 = vcmask 1041408
    %v470 = vsel %vm468, %v456, 0
    %472 = vmatpush.msra.mxu0 0.0
    %473 = vmatpush.msra.mxu0 0.0
    %474 = vmatpush.msra.mxu0 0.0
    %475 = vmatpush.msra.mxu0 0.0
    %476 = vmatpush.msra.mxu0 0.0
    %477 = vmatpush.msra.mxu0 0.0
    %478 = vmatpush.msra.mxu0 0.0
    %479 = vmatpush.msra.mxu0 0.0
    %480 = vmatpush.msra.mxu0 0.0
    %481 = vmatpush.msra.mxu0 0.0
    %482 = vmatpush.msra.mxu0 0.0
    %483 = vmatpush.msra.mxu0 0.0
    %484 = vmatpush.msra.mxu0 0.0
    %485 = vmatpush.msra.mxu0 0.0
    %486 = vmatpush.msra.mxu0 0.0
    %487 = vmatpush.msra.mxu0 %v470
    %488 = vmatmul.f32.gmra.mxu0 %v463
    %v489 = vpop.f32.mrf.mxu0
    %v490 = vadd.f32 0.0, %v489
    %491 = vmatmul.f32.gmra.mxu0 %v466
    %v492 = vpop.f32.mrf.mxu0
    %v493 = vadd.f32 0.0, %v492
    %494 = vdwg.mxu0
    %v496 = vsel %vm461, %v320, 0
    %v499 = vsel %vm461, %v321, 0
    %v502 = vsel %vm468, %v318, 0
    %504 = vmatpush.msra.mxu0 0.0
    %505 = vmatpush.msra.mxu0 0.0
    %506 = vmatpush.msra.mxu0 0.0
    %507 = vmatpush.msra.mxu0 0.0
    %508 = vmatpush.msra.mxu0 0.0
    %509 = vmatpush.msra.mxu0 0.0
    %510 = vmatpush.msra.mxu0 0.0
    %511 = vmatpush.msra.mxu0 0.0
    %512 = vmatpush.msra.mxu0 0.0
    %513 = vmatpush.msra.mxu0 0.0
    %514 = vmatpush.msra.mxu0 0.0
    %515 = vmatpush.msra.mxu0 0.0
    %516 = vmatpush.msra.mxu0 0.0
    %517 = vmatpush.msra.mxu0 0.0
    %518 = vmatpush.msra.mxu0 0.0
    %519 = vmatpush.msra.mxu0 %v502
    %520 = vmatmul.f32.gmra.mxu0 %v496
    %v521 = vpop.f32.mrf.mxu0
    %v522 = vadd.f32 %v490, %v521
    %523 = vmatmul.f32.gmra.mxu0 %v499
    %v524 = vpop.f32.mrf.mxu0
    %v525 = vadd.f32 %v493, %v524
    %526 = vdwg.mxu0
    %v527 = vadd.s32 %v180, 1
    %vm528 = vcmp.eq.s32.totalorder %v148, %v527
    %vm529 = vcmp.eq.s32.totalorder %v149, %v527
    %vm530 = vcmp.eq.s32.totalorder %v150, %v527
    %vm531 = vcmp.eq.s32.totalorder %v151, %v527
    %vm532 = vcmp.eq.s32.totalorder %v152, %v527
    %vm533 = vcmp.eq.s32.totalorder %v153, %v527
    %vm534 = vcmp.eq.s32.totalorder %v154, %v527
    %vm535 = vcmp.eq.s32.totalorder %v155, %v527
    %vm536 = vcmp.eq.s32.totalorder %v156, %v527
    %vm537 = vcmp.eq.s32.totalorder %v157, %v527
    %vm538 = vcmp.eq.s32.totalorder %v158, %v527
    %vm539 = vcmp.eq.s32.totalorder %v159, %v527
    %vm540 = vcmp.eq.s32.totalorder %v160, %v527
    %vm541 = vcmp.eq.s32.totalorder %v161, %v527
    %vm542 = vcmp.eq.s32.totalorder %v162, %v527
    %vm543 = vcmp.eq.s32.totalorder %v163, %v527
    %vm544 = vcmp.eq.s32.totalorder %v164, %v527
    %vm545 = vcmp.eq.s32.totalorder %v165, %v527
    %vm546 = vcmp.eq.s32.totalorder %v166, %v527
    %vm547 = vcmp.eq.s32.totalorder %v167, %v527
    %vm548 = vcmp.eq.s32.totalorder %v168, %v527
    %vm549 = vcmp.eq.s32.totalorder %v169, %v527
    %vm550 = vcmp.eq.s32.totalorder %v170, %v527
    %vm551 = vcmp.eq.s32.totalorder %v171, %v527
    %vm552 = vcmp.eq.s32.totalorder %v172, %v527
    %vm553 = vcmp.eq.s32.totalorder %v173, %v527
    %vm554 = vcmp.eq.s32.totalorder %v174, %v527
    %vm555 = vcmp.eq.s32.totalorder %v175, %v527
    %vm556 = vcmp.eq.s32.totalorder %v176, %v527
    %vm557 = vcmp.eq.s32.totalorder %v177, %v527
    %v558 = vsel %vm528, 1, 0
    %v559 = vsel %vm529, 1, 0
    %v560 = vsel %vm530, 1, 0
    %v561 = vsel %vm531, 1, 0
    %v562 = vsel %vm532, 1, 0
    %v563 = vsel %vm533, 1, 0
    %v564 = vsel %vm534, 1, 0
    %v565 = vsel %vm535, 1, 0
    %v566 = vsel %vm536, 1, 0
    %v567 = vsel %vm537, 1, 0
    %v568 = vsel %vm538, 1, 0
    %v569 = vsel %vm539, 1, 0
    %v570 = vsel %vm540, 1, 0
    %v571 = vsel %vm541, 1, 0
    %v572 = vsel %vm542, 1, 0
    %v573 = vsel %vm543, 1, 0
    %v574 = vsel %vm544, 1, 0
    %v575 = vsel %vm545, 1, 0
    %v576 = vsel %vm546, 1, 0
    %v577 = vsel %vm547, 1, 0
    %v578 = vsel %vm548, 1, 0
    %v579 = vsel %vm549, 1, 0
    %v580 = vsel %vm550, 1, 0
    %v581 = vsel %vm551, 1, 0
    %v582 = vsel %vm552, 1, 0
    %v583 = vsel %vm553, 1, 0
    %v584 = vsel %vm554, 1, 0
    %v585 = vsel %vm555, 1, 0
    %v586 = vsel %vm556, 1, 0
    %v587 = vsel %vm557, 1, 0
    %v588 = vcvt.s32.f32 %v558
    %v589 = vcvt.s32.f32 %v559
    %v590 = vcvt.s32.f32 %v560
    %v591 = vcvt.s32.f32 %v561
    %v592 = vcvt.s32.f32 %v562
    %v593 = vcvt.s32.f32 %v563
    %v594 = vcvt.s32.f32 %v564
    %v595 = vcvt.s32.f32 %v565
    %v596 = vcvt.s32.f32 %v566
    %v597 = vcvt.s32.f32 %v567
    %v598 = vcvt.s32.f32 %v568
    %v599 = vcvt.s32.f32 %v569
    %v600 = vcvt.s32.f32 %v570
    %v601 = vcvt.s32.f32 %v571
    %v602 = vcvt.s32.f32 %v572
    %v603 = vcvt.s32.f32 %v573
    %v604 = vcvt.s32.f32 %v574
    %v605 = vcvt.s32.f32 %v575
    %v606 = vcvt.s32.f32 %v576
    %v607 = vcvt.s32.f32 %v577
    %v608 = vcvt.s32.f32 %v578
    %v609 = vcvt.s32.f32 %v579
    %v610 = vcvt.s32.f32 %v580
    %v611 = vcvt.s32.f32 %v581
    %v612 = vcvt.s32.f32 %v582
    %v613 = vcvt.s32.f32 %v583
    %v614 = vcvt.s32.f32 %v584
    %v615 = vcvt.s32.f32 %v585
    %v616 = vcvt.s32.f32 %v586
    %v617 = vcvt.s32.f32 %v587
    %618 = vst [vmem:[#allocation1] ss:$4 sm:$0xff] %v146
    %v619 = vld.sshfl [vmem:[#allocation1] sm:$0xff pattern:$0x73625140]
    %v620 = vld.sshfl [vmem:[#allocation1 + $0x8] sm:$0xff pattern:$0x73625140]
    %v622 = vsel %vm277, %v620, 0
    %624 = vmatpush.msra.mxu0 %v603
    %625 = vmatpush.msra.mxu0 %v602
    %626 = vmatpush.msra.mxu0 %v601
    %627 = vmatpush.msra.mxu0 %v600
    %628 = vmatpush.msra.mxu0 %v599
    %629 = vmatpush.msra.mxu0 %v598
    %630 = vmatpush.msra.mxu0 %v597
    %631 = vmatpush.msra.mxu0 %v596
    %632 = vmatpush.msra.mxu0 %v595
    %633 = vmatpush.msra.mxu0 %v594
    %634 = vmatpush.msra.mxu0 %v593
    %635 = vmatpush.msra.mxu0 %v592
    %636 = vmatpush.msra.mxu0 %v591
    %637 = vmatpush.msra.mxu0 %v590
    %638 = vmatpush.msra.mxu0 %v589
    %639 = vmatpush.msra.mxu0 %v588
    %640 = vmatmul.f32.gmra.mxu0 %v619
    %v641 = vpop.f32.mrf.mxu0
    %v642 = vadd.f32 0.0, %v641
    %643 = vdwg.mxu0
    %644 = vmatpush.msra.mxu0 0.0
    %645 = vmatpush.msra.mxu0 0.0
    %646 = vmatpush.msra.mxu0 %v617
    %647 = vmatpush.msra.mxu0 %v616
    %648 = vmatpush.msra.mxu0 %v615
    %649 = vmatpush.msra.mxu0 %v614
    %650 = vmatpush.msra.mxu0 %v613
    %651 = vmatpush.msra.mxu0 %v612
    %652 = vmatpush.msra.mxu0 %v611
    %653 = vmatpush.msra.mxu0 %v610
    %654 = vmatpush.msra.mxu0 %v609
    %655 = vmatpush.msra.mxu0 %v608
    %656 = vmatpush.msra.mxu0 %v607
    %657 = vmatpush.msra.mxu0 %v606
    %658 = vmatpush.msra.mxu0 %v605
    %659 = vmatpush.msra.mxu0 %v604
    %660 = vmatmul.f32.gmra.mxu0 %v622
    %v661 = vpop.f32.mrf.mxu0
    %v662 = vadd.f32 %v642, %v661
    %663 = vdwg.mxu0
    %s664 = scalar_lea.vmem %s5, 32
    %v665 = vld [vmem:[%s664] sm:$0xff]
    %v666 = vld [vmem:[%s664 + $0x8] sm:$0xff]
    %v668 = vsel %vm461, %v665, 0
    %v671 = vsel %vm461, %v666, 0
    %v674 = vsel %vm468, %v662, 0
    %676 = vmatpush.msra.mxu0 0.0
    %677 = vmatpush.msra.mxu0 0.0
    %678 = vmatpush.msra.mxu0 0.0
    %679 = vmatpush.msra.mxu0 0.0
    %680 = vmatpush.msra.mxu0 0.0
    %681 = vmatpush.msra.mxu0 0.0
    %682 = vmatpush.msra.mxu0 0.0
    %683 = vmatpush.msra.mxu0 0.0
    %684 = vmatpush.msra.mxu0 0.0
    %685 = vmatpush.msra.mxu0 0.0
    %686 = vmatpush.msra.mxu0 0.0
    %687 = vmatpush.msra.mxu0 0.0
    %688 = vmatpush.msra.mxu0 0.0
    %689 = vmatpush.msra.mxu0 0.0
    %690 = vmatpush.msra.mxu0 0.0
    %691 = vmatpush.msra.mxu0 %v674
    %692 = vmatmul.f32.gmra.mxu0 %v668
    %v693 = vpop.f32.mrf.mxu0
    %v694 = vadd.f32 0.0, %v693
    %695 = vmatmul.f32.gmra.mxu0 %v671
    %v696 = vpop.f32.mrf.mxu0
    %v697 = vadd.f32 0.0, %v696
    %698 = vdwg.mxu0
    %v699 = vadd.f32 %v522, %v694
    %v700 = vadd.f32 %v525, %v697
    %vm701 = vcmp.ge.f32.partialorder %v699, 0.0
    %vm702 = vcmp.ge.f32.partialorder %v700, 0.0
    %v703 = vmul.f32 %v699, 0.2
    %v704 = vmul.f32 %v700, 0.2
    %v705 = vsel %vm701, %v699, %v703
    %v706 = vsel %vm702, %v700, %v704
    %vm707 = vcmask 982016
    %v709 = vsel %vm707, %v705, 0
    %v712 = vsel %vm707, %v706, 0
    %714 = vmatpush.msra.mxu0 0.0
    %715 = vmatpush.msra.mxu0 %v256
    %716 = vmatpush.msra.mxu0 %v255
    %717 = vmatpush.msra.mxu0 %v254
    %718 = vmatpush.msra.mxu0 %v253
    %719 = vmatpush.msra.mxu0 %v252
    %720 = vmatpush.msra.mxu0 %v251
    %721 = vmatpush.msra.mxu0 %v250
    %722 = vmatpush.msra.mxu0 %v249
    %723 = vmatpush.msra.mxu0 %v248
    %724 = vmatpush.msra.mxu0 %v247
    %725 = vmatpush.msra.mxu0 %v246
    %726 = vmatpush.msra.mxu0 %v245
    %727 = vmatpush.msra.mxu0 %v244
    %728 = vmatpush.msra.mxu0 %v243
    %729 = vmatpush.msra.mxu0 %v242
    %730 = vmatmul.f32.gmra.mxu0 %v709
    %v731 = vpop.f32.mrf.mxu0
    %v732 = vadd.f32 0.0, %v731
    %733 = vmatmul.f32.gmra.mxu0 %v712
    %v734 = vpop.f32.mrf.mxu0
    %v735 = vadd.f32 0.0, %v734
    %736 = vdwg.mxu0
    %v737 = vld [vmem:[%s7] sm:$0xff]
    %v738 = vld [vmem:[%s7 + $0x8] sm:$0xff]
    %v739 = vld [vmem:[%s7 + $0x10] sm:$0xff]
    %v740 = vld [vmem:[%s7 + $0x18] sm:$0xff]
    %741 = vmatpush.msra.mxu0 0.0
    %742 = vmatpush.msra.mxu0 %v396
    %743 = vmatpush.msra.mxu0 %v395
    %744 = vmatpush.msra.mxu0 %v394
    %745 = vmatpush.msra.mxu0 %v393
    %746 = vmatpush.msra.mxu0 %v392
    %747 = vmatpush.msra.mxu0 %v391
    %748 = vmatpush.msra.mxu0 %v390
    %749 = vmatpush.msra.mxu0 %v389
    %750 = vmatpush.msra.mxu0 %v388
    %751 = vmatpush.msra.mxu0 %v387
    %752 = vmatpush.msra.mxu0 %v386
    %753 = vmatpush.msra.mxu0 %v385
    %754 = vmatpush.msra.mxu0 %v384
    %755 = vmatpush.msra.mxu0 %v383
    %756 = vmatpush.msra.mxu0 %v382
    %757 = vmatmul.f32.gmra.mxu0 %v709
    %v758 = vpop.f32.mrf.mxu0
    %v759 = vadd.f32 0.0, %v758
    %760 = vmatmul.f32.gmra.mxu0 %v712
    %v761 = vpop.f32.mrf.mxu0
    %v762 = vadd.f32 0.0, %v761
    %763 = vdwg.mxu0
    %s764 = scalar_lea.vmem %s7, 32
    %v765 = vld [vmem:[%s764] sm:$0xff]
    %v766 = vld [vmem:[%s764 + $0x8] sm:$0xff]
    %v767 = vld [vmem:[%s764 + $0x10] sm:$0xff]
    %v768 = vld [vmem:[%s764 + $0x18] sm:$0xff]
    %vm769 = vcmask 130048
    %v771 = vsel %vm769, %v765, 0
    %v774 = vsel %vm769, %v766, 0
    %v777 = vsel %vm769, %v767, 0
    %v780 = vsel %vm769, %v768, 0
    %782 = vmatpush.msra.mxu0 0.0
    %783 = vmatpush.msra.mxu0 0.0
    %784 = vmatpush.msra.mxu0 0.0
    %785 = vmatpush.msra.mxu0 0.0
    %786 = vmatpush.msra.mxu0 0.0
    %787 = vmatpush.msra.mxu0 0.0
    %788 = vmatpush.msra.mxu0 0.0
    %789 = vmatpush.msra.mxu0 0.0
    %790 = vmatpush.msra.mxu0 0.0
    %791 = vmatpush.msra.mxu0 0.0
    %792 = vmatpush.msra.mxu0 0.0
    %793 = vmatpush.msra.mxu0 0.0
    %794 = vmatpush.msra.mxu0 0.0
    %795 = vmatpush.msra.mxu0 0.0
    %796 = vmatpush.msra.mxu0 %v762
    %797 = vmatpush.msra.mxu0 %v759
    %798 = vmatmul.f32.gmra.mxu0 %v771
    %v799 = vpop.f32.mrf.mxu0
    %v800 = vadd.f32 0.0, %v799
    %801 = vmatmul.f32.gmra.mxu0 %v774
    %v802 = vpop.f32.mrf.mxu0
    %v803 = vadd.f32 0.0, %v802
    %804 = vmatmul.f32.gmra.mxu0 %v777
    %v805 = vpop.f32.mrf.mxu0
    %v806 = vadd.f32 0.0, %v805
    %807 = vmatmul.f32.gmra.mxu0 %v780
    %v808 = vpop.f32.mrf.mxu0
    %v809 = vadd.f32 0.0, %v808
    %810 = vdwg.mxu0
    %v812 = vsel %vm769, %v737, 0
    %v815 = vsel %vm769, %v738, 0
    %v818 = vsel %vm769, %v739, 0
    %v821 = vsel %vm769, %v740, 0
    %823 = vmatpush.msra.mxu0 0.0
    %824 = vmatpush.msra.mxu0 0.0
    %825 = vmatpush.msra.mxu0 0.0
    %826 = vmatpush.msra.mxu0 0.0
    %827 = vmatpush.msra.mxu0 0.0
    %828 = vmatpush.msra.mxu0 0.0
    %829 = vmatpush.msra.mxu0 0.0
    %830 = vmatpush.msra.mxu0 0.0
    %831 = vmatpush.msra.mxu0 0.0
    %832 = vmatpush.msra.mxu0 0.0
    %833 = vmatpush.msra.mxu0 0.0
    %834 = vmatpush.msra.mxu0 0.0
    %835 = vmatpush.msra.mxu0 0.0
    %836 = vmatpush.msra.mxu0 0.0
    %837 = vmatpush.msra.mxu0 %v735
    %838 = vmatpush.msra.mxu0 %v732
    %839 = vmatmul.f32.gmra.mxu0 %v812
    %v840 = vpop.f32.mrf.mxu0
    %v841 = vadd.f32 %v800, %v840
    %842 = vmatmul.f32.gmra.mxu0 %v815
    %v843 = vpop.f32.mrf.mxu0
    %v844 = vadd.f32 %v803, %v843
    %845 = vmatmul.f32.gmra.mxu0 %v818
    %v846 = vpop.f32.mrf.mxu0
    %v847 = vadd.f32 %v806, %v846
    %848 = vmatmul.f32.gmra.mxu0 %v821
    %v849 = vpop.f32.mrf.mxu0
    %v850 = vadd.f32 %v809, %v849
    %851 = vdwg.mxu0
    %852 = vmatpush.msra.mxu0 0.0
    %853 = vmatpush.msra.mxu0 %v602
    %854 = vmatpush.msra.mxu0 %v601
    %855 = vmatpush.msra.mxu0 %v600
    %856 = vmatpush.msra.mxu0 %v599
    %857 = vmatpush.msra.mxu0 %v598
    %858 = vmatpush.msra.mxu0 %v597
    %859 = vmatpush.msra.mxu0 %v596
    %860 = vmatpush.msra.mxu0 %v595
    %861 = vmatpush.msra.mxu0 %v594
    %862 = vmatpush.msra.mxu0 %v593
    %863 = vmatpush.msra.mxu0 %v592
    %864 = vmatpush.msra.mxu0 %v591
    %865 = vmatpush.msra.mxu0 %v590
    %866 = vmatpush.msra.mxu0 %v589
    %867 = vmatpush.msra.mxu0 %v588
    %868 = vmatmul.f32.gmra.mxu0 %v709
    %v869 = vpop.f32.mrf.mxu0
    %v870 = vadd.f32 0.0, %v869
    %871 = vmatmul.f32.gmra.mxu0 %v712
    %v872 = vpop.f32.mrf.mxu0
    %v873 = vadd.f32 0.0, %v872
    %874 = vdwg.mxu0
    %s875 = scalar_lea.vmem %s7, 64
    %v876 = vld [vmem:[%s875] sm:$0xff]
    %v877 = vld [vmem:[%s875 + $0x8] sm:$0xff]
    %v878 = vld [vmem:[%s875 + $0x10] sm:$0xff]
    %v879 = vld [vmem:[%s875 + $0x18] sm:$0xff]
    %v881 = vsel %vm769, %v876, 0
    %v884 = vsel %vm769, %v877, 0
    %v887 = vsel %vm769, %v878, 0
    %v890 = vsel %vm769, %v879, 0
    %892 = vmatpush.msra.mxu0 0.0
    %893 = vmatpush.msra.mxu0 0.0
    %894 = vmatpush.msra.mxu0 0.0
    %895 = vmatpush.msra.mxu0 0.0
    %896 = vmatpush.msra.mxu0 0.0
    %897 = vmatpush.msra.mxu0 0.0
    %898 = vmatpush.msra.mxu0 0.0
    %899 = vmatpush.msra.mxu0 0.0
    %900 = vmatpush.msra.mxu0 0.0
    %901 = vmatpush.msra.mxu0 0.0
    %902 = vmatpush.msra.mxu0 0.0
    %903 = vmatpush.msra.mxu0 0.0
    %904 = vmatpush.msra.mxu0 0.0
    %905 = vmatpush.msra.mxu0 0.0
    %906 = vmatpush.msra.mxu0 %v873
    %907 = vmatpush.msra.mxu0 %v870
    %908 = vmatmul.f32.gmra.mxu0 %v881
    %v909 = vpop.f32.mrf.mxu0
    %v910 = vadd.f32 0.0, %v909
    %911 = vmatmul.f32.gmra.mxu0 %v884
    %v912 = vpop.f32.mrf.mxu0
    %v913 = vadd.f32 0.0, %v912
    %914 = vmatmul.f32.gmra.mxu0 %v887
    %v915 = vpop.f32.mrf.mxu0
    %v916 = vadd.f32 0.0, %v915
    %917 = vmatmul.f32.gmra.mxu0 %v890
    %v918 = vpop.f32.mrf.mxu0
    %v919 = vadd.f32 0.0, %v918
    %920 = vdwg.mxu0
    %v921 = vadd.f32 %v841, %v910
    %v922 = vadd.f32 %v844, %v913
    %v923 = vadd.f32 %v847, %v916
    %v924 = vadd.f32 %v850, %v919
    %vm925 = vcmask 490496
    %v926 = vsel %vm925, %v921, 0.0
    %927 = vadd.xlane.f32.xlu0 %v926
    %v928 = vpop.xlane.xlu0 %927
    %v929 = vsel %vm925, %v922, 0.0
    %930 = vadd.xlane.f32.xlu0 %v929
    %v931 = vpop.xlane.xlu0 %930
    %v932 = vsel %vm925, %v923, 0.0
    %933 = vadd.xlane.f32.xlu0 %v932
    %v934 = vpop.xlane.xlu0 %933
    %v935 = vsel %vm925, %v924, 0.0
    %936 = vadd.xlane.f32.xlu0 %v935
    %v937 = vpop.xlane.xlu0 %936
    %v938 = vmul.f32 %v921, %v921
    %v939 = vmul.f32 %v922, %v922
    %v940 = vmul.f32 %v923, %v923
    %v941 = vmul.f32 %v924, %v924
    %v942 = vsel %vm925, %v938, 0.0
    %943 = vadd.xlane.f32.xlu0 %v942
    %v944 = vpop.xlane.xlu0 %943
    %v945 = vsel %vm925, %v939, 0.0
    %946 = vadd.xlane.f32.xlu0 %v945
    %v947 = vpop.xlane.xlu0 %946
    %v948 = vsel %vm925, %v940, 0.0
    %949 = vadd.xlane.f32.xlu0 %v948
    %v950 = vpop.xlane.xlu0 %949
    %v951 = vsel %vm925, %v941, 0.0
    %952 = vadd.xlane.f32.xlu0 %v951
    %v953 = vpop.xlane.xlu0 %952
    %v954 = vadd.f32 %v928, %v934
    %v955 = vadd.f32 %v931, %v937
    %v956 = vadd.f32 %v944, %v950
    %v957 = vadd.f32 %v947, %v953
    %v958 = vmul.f32 %v954, 0.008333334
    %v959 = vmul.f32 %v955, 0.008333334
    %v960 = vmul.f32 %v956, 0.008333334
    %v961 = vmul.f32 %v957, 0.008333334
    %v962 = vmul.f32 %v958, %v958
    %v963 = vmul.f32 %v959, %v959
    %v964 = vsub.f32 %v960, %v962
    %v965 = vsub.f32 %v961, %v963
    %v966 = vmax.f32 %v964, 0.0
    %v967 = vmax.f32 %v965, 0.0
    %v968 = vld [vmem:[%s9] sm:$0xff]
    %v969 = vld [vmem:[%s9 + $0x8] sm:$0xff]
    %v970 = vadd.f32 %v966, 1e-05
    %v971 = vadd.f32 %v967, 1e-05
    %v972 = vrsqrt.pop %v970
    %v973 = vmul.f32 %v972, %v970
    %v974 = vmul.f32 %v973, %v972
    %v975 = vmul.f32 0.5, %v974
    %v976 = vsub.f32 1.5, %v975
    %v977 = vmul.f32 %v972, %v976
    %vm978 = vweird.f32 %v970
    %vm979 = vweird.f32 %v972
    %vm980 = vmor %vm978, %vm979
    %v981 = vsel %vm980, %v972, %v977
    %v982 = vrsqrt.pop %v971
    %v983 = vmul.f32 %v982, %v971
    %v984 = vmul.f32 %v983, %v982
    %v985 = vmul.f32 0.5, %v984
    %v986 = vsub.f32 1.5, %v985
    %v987 = vmul.f32 %v982, %v986
    %vm988 = vweird.f32 %v971
    %vm989 = vweird.f32 %v982
    %vm990 = vmor %vm988, %vm989
    %v991 = vsel %vm990, %v982, %v987
    %v992 = vmul.f32 %v968, %v981
    %v993 = vmul.f32 %v969, %v991
    %v994 = vld [vmem:[%s11] sm:$0xff]
    %v995 = vld [vmem:[%s11 + $0x8] sm:$0xff]
    %v996 = vmul.f32 %v958, %v992
    %v997 = vmul.f32 %v959, %v993
    %v998 = vsub.f32 %v994, %v996
    %v999 = vsub.f32 %v995, %v997
    %1001 = vset.pattern.permute.xlu0 0
    %1002 = vperm.xlu0 %1001, %v992
    %v1003 = vpop.permute.xlu0 %1002
    %1006 = vset.pattern.permute.xlu0 0
    %1007 = vperm.xlu0 %1006, %v993
    %v1008 = vpop.permute.xlu0 %1007
    %v1010 = vmul.f32 %v921, %v1003
    %v1011 = vmul.f32 %v922, %v1008
    %v1012 = vmul.f32 %v923, %v1003
    %v1013 = vmul.f32 %v924, %v1008
    %1015 = vset.pattern.permute.xlu0 0
    %1016 = vperm.xlu0 %1015, %v998
    %v1017 = vpop.permute.xlu0 %1016
    %1020 = vset.pattern.permute.xlu0 0
    %1021 = vperm.xlu0 %1020, %v999
    %v1022 = vpop.permute.xlu0 %1021
    %v1024 = vadd.f32 %v1010, %v1017
    %v1025 = vadd.f32 %v1011, %v1022
    %v1026 = vadd.f32 %v1012, %v1017
    %v1027 = vadd.f32 %v1013, %v1022
    %vm1028 = vcmp.ge.f32.partialorder %v1024, 0.0
    %vm1029 = vcmp.ge.f32.partialorder %v1025, 0.0
    %vm1030 = vcmp.ge.f32.partialorder %v1026, 0.0
    %vm1031 = vcmp.ge.f32.partialorder %v1027, 0.0
    %v1032 = vmul.f32 %v1024, 0.2
    %v1033 = vmul.f32 %v1025, 0.2
    %v1034 = vmul.f32 %v1026, 0.2
    %v1035 = vmul.f32 %v1027, 0.2
    %v1036 = vsel %vm1028, %v1024, %v1032
    %v1037 = vsel %vm1029, %v1025, %v1033
    %v1038 = vsel %vm1030, %v1026, %v1034
    %v1039 = vsel %vm1031, %v1027, %v1035
    %v1041 = vsel %vm925, %v1036, 0
    %v1044 = vsel %vm925, %v1037, 0
    %v1047 = vsel %vm925, %v1038, 0
    %v1050 = vsel %vm925, %v1039, 0
    %vm1052 = vcmask 1043456
    %v1054 = vsel %vm1052, %v249, 0
    %1056 = vmatpush.msra.mxu0 0.0
    %1057 = vmatpush.msra.mxu0 0.0
    %1058 = vmatpush.msra.mxu0 0.0
    %1059 = vmatpush.msra.mxu0 0.0
    %1060 = vmatpush.msra.mxu0 0.0
    %1061 = vmatpush.msra.mxu0 0.0
    %1062 = vmatpush.msra.mxu0 0.0
    %1063 = vmatpush.msra.mxu0 0.0
    %1064 = vmatpush.msra.mxu0 %v1054
    %1065 = vmatpush.msra.mxu0 %v248
    %1066 = vmatpush.msra.mxu0 %v247
    %1067 = vmatpush.msra.mxu0 %v246
    %1068 = vmatpush.msra.mxu0 %v245
    %1069 = vmatpush.msra.mxu0 %v244
    %1070 = vmatpush.msra.mxu0 %v243
    %1071 = vmatpush.msra.mxu0 %v242
    %1072 = vmatmul.f32.gmra.mxu0 %v1041
    %v1073 = vpop.f32.mrf.mxu0
    %v1074 = vadd.f32 0.0, %v1073
    %1075 = vmatmul.f32.gmra.mxu0 %v1044
    %v1076 = vpop.f32.mrf.mxu0
    %v1077 = vadd.f32 0.0, %v1076
    %1078 = vmatmul.f32.gmra.mxu0 %v1047
    %v1079 = vpop.f32.mrf.mxu0
    %v1080 = vadd.f32 0.0, %v1079
    %1081 = vmatmul.f32.gmra.mxu0 %v1050
    %v1082 = vpop.f32.mrf.mxu0
    %v1083 = vadd.f32 0.0, %v1082
    %1084 = vdwg.mxu0
    %v1085 = vld [vmem:[%s13] sm:$0x3]
    %v1087 = vsel %vm1052, %v389, 0
    %1089 = vmatpush.msra.mxu0 0.0
    %1090 = vmatpush.msra.mxu0 0.0
    %1091 = vmatpush.msra.mxu0 0.0
    %1092 = vmatpush.msra.mxu0 0.0
    %1093 = vmatpush.msra.mxu0 0.0
    %1094 = vmatpush.msra.mxu0 0.0
    %1095 = vmatpush.msra.mxu0 0.0
    %1096 = vmatpush.msra.mxu0 0.0
    %1097 = vmatpush.msra.mxu0 %v1087
    %1098 = vmatpush.msra.mxu0 %v388
    %1099 = vmatpush.msra.mxu0 %v387
    %1100 = vmatpush.msra.mxu0 %v386
    %1101 = vmatpush.msra.mxu0 %v385
    %1102 = vmatpush.msra.mxu0 %v384
    %1103 = vmatpush.msra.mxu0 %v383
    %1104 = vmatpush.msra.mxu0 %v382
    %1105 = vmatmul.f32.gmra.mxu0 %v1041
    %v1106 = vpop.f32.mrf.mxu0
    %v1107 = vadd.f32 0.0, %v1106
    %1108 = vmatmul.f32.gmra.mxu0 %v1044
    %v1109 = vpop.f32.mrf.mxu0
    %v1110 = vadd.f32 0.0, %v1109
    %1111 = vmatmul.f32.gmra.mxu0 %v1047
    %v1112 = vpop.f32.mrf.mxu0
    %v1113 = vadd.f32 0.0, %v1112
    %1114 = vmatmul.f32.gmra.mxu0 %v1050
    %v1115 = vpop.f32.mrf.mxu0
    %v1116 = vadd.f32 0.0, %v1115
    %1117 = vdwg.mxu0
    %s1118 = scalar_lea.vmem %s13, 2
    %v1119 = vld [vmem:[%s1118] sm:$0x3]
    %vm1120 = vcmask 261120
    %v1122 = vsel %vm1120, %v1119, 0
    %1124 = vmatpush.msra.mxu0 0.0
    %1125 = vmatpush.msra.mxu0 0.0
    %1126 = vmatpush.msra.mxu0 0.0
    %1127 = vmatpush.msra.mxu0 0.0
    %1128 = vmatpush.msra.mxu0 0.0
    %1129 = vmatpush.msra.mxu0 0.0
    %1130 = vmatpush.msra.mxu0 0.0
    %1131 = vmatpush.msra.mxu0 0.0
    %1132 = vmatpush.msra.mxu0 0.0
    %1133 = vmatpush.msra.mxu0 0.0
    %1134 = vmatpush.msra.mxu0 0.0
    %1135 = vmatpush.msra.mxu0 0.0
    %1136 = vmatpush.msra.mxu0 %v1116
    %1137 = vmatpush.msra.mxu0 %v1113
    %1138 = vmatpush.msra.mxu0 %v1110
    %1139 = vmatpush.msra.mxu0 %v1107
    %1140 = vmatmul.f32.gmra.mxu0 %v1122
    %v1141 = vpop.f32.mrf.mxu0
    %v1142 = vadd.f32 0.0, %v1141
    %1143 = vdwg.mxu0
    %v1145 = vsel %vm1120, %v1085, 0
    %1147 = vmatpush.msra.mxu0 0.0
    %1148 = vmatpush.msra.mxu0 0.0
    %1149 = vmatpush.msra.mxu0 0.0
    %1150 = vmatpush.msra.mxu0 0.0
    %1151 = vmatpush.msra.mxu0 0.0
    %1152 = vmatpush.msra.mxu0 0.0
    %1153 = vmatpush.msra.mxu0 0.0
    %1154 = vmatpush.msra.mxu0 0.0
    %1155 = vmatpush.msra.mxu0 0.0
    %1156 = vmatpush.msra.mxu0 0.0
    %1157 = vmatpush.msra.mxu0 0.0
    %1158 = vmatpush.msra.mxu0 0.0
    %1159 = vmatpush.msra.mxu0 %v1083
    %1160 = vmatpush.msra.mxu0 %v1080
    %1161 = vmatpush.msra.mxu0 %v1077
    %1162 = vmatpush.msra.mxu0 %v1074
    %1163 = vmatmul.f32.gmra.mxu0 %v1145
    %v1164 = vpop.f32.mrf.mxu0
    %v1165 = vadd.f32 %v1142, %v1164
    %1166 = vdwg.mxu0
    %v1168 = vsel %vm1052, %v595, 0
    %1170 = vmatpush.msra.mxu0 0.0
    %1171 = vmatpush.msra.mxu0 0.0
    %1172 = vmatpush.msra.mxu0 0.0
    %1173 = vmatpush.msra.mxu0 0.0
    %1174 = vmatpush.msra.mxu0 0.0
    %1175 = vmatpush.msra.mxu0 0.0
    %1176 = vmatpush.msra.mxu0 0.0
    %1177 = vmatpush.msra.mxu0 0.0
    %1178 = vmatpush.msra.mxu0 %v1168
    %1179 = vmatpush.msra.mxu0 %v594
    %1180 = vmatpush.msra.mxu0 %v593
    %1181 = vmatpush.msra.mxu0 %v592
    %1182 = vmatpush.msra.mxu0 %v591
    %1183 = vmatpush.msra.mxu0 %v590
    %1184 = vmatpush.msra.mxu0 %v589
    %1185 = vmatpush.msra.mxu0 %v588
    %1186 = vmatmul.f32.gmra.mxu0 %v1041
    %v1187 = vpop.f32.mrf.mxu0
    %v1188 = vadd.f32 0.0, %v1187
    %1189 = vmatmul.f32.gmra.mxu0 %v1044
    %v1190 = vpop.f32.mrf.mxu0
    %v1191 = vadd.f32 0.0, %v1190
    %1192 = vmatmul.f32.gmra.mxu0 %v1047
    %v1193 = vpop.f32.mrf.mxu0
    %v1194 = vadd.f32 0.0, %v1193
    %1195 = vmatmul.f32.gmra.mxu0 %v1050
    %v1196 = vpop.f32.mrf.mxu0
    %v1197 = vadd.f32 0.0, %v1196
    %1198 = vdwg.mxu0
    %s1199 = scalar_lea.vmem %s13, 4
    %v1200 = vld [vmem:[%s1199] sm:$0x3]
    %v1202 = vsel %vm1120, %v1200, 0
    %1204 = vmatpush.msra.mxu0 0.0
    %1205 = vmatpush.msra.mxu0 0.0
    %1206 = vmatpush.msra.mxu0 0.0
    %1207 = vmatpush.msra.mxu0 0.0
    %1208 = vmatpush.msra.mxu0 0.0
    %1209 = vmatpush.msra.mxu0 0.0
    %1210 = vmatpush.msra.mxu0 0.0
    %1211 = vmatpush.msra.mxu0 0.0
    %1212 = vmatpush.msra.mxu0 0.0
    %1213 = vmatpush.msra.mxu0 0.0
    %1214 = vmatpush.msra.mxu0 0.0
    %1215 = vmatpush.msra.mxu0 0.0
    %1216 = vmatpush.msra.mxu0 %v1197
    %1217 = vmatpush.msra.mxu0 %v1194
    %1218 = vmatpush.msra.mxu0 %v1191
    %1219 = vmatpush.msra.mxu0 %v1188
    %1220 = vmatmul.f32.gmra.mxu0 %v1202
    %v1221 = vpop.f32.mrf.mxu0
    %v1222 = vadd.f32 0.0, %v1221
    %1223 = vdwg.mxu0
    %v1224 = vadd.f32 %v1165, %v1222
    %vm1225 = vcmask 238592
    %v1226 = vsel %vm1225, %v1224, 0.0
    %1227 = vadd.xlane.f32.xlu0 %v1226
    %v1228 = vpop.xlane.xlu0 %1227
    %v1229 = vmul.f32 %v1224, %v1224
    %v1230 = vsel %vm1225, %v1229, 0.0
    %1231 = vadd.xlane.f32.xlu0 %v1230
    %v1232 = vpop.xlane.xlu0 %1231
    %v1234 = vrot.slane %v1228, 1
    %v1236 = vadd.f32 %v1228, %v1234
    %v1238 = vrot.slane %v1232, 1
    %v1240 = vadd.f32 %v1232, %v1238
    %v1241 = vmul.f32 %v1236, 0.016666668
    %v1242 = vmul.f32 %v1240, 0.016666668
    %v1243 = vmul.f32 %v1241, %v1241
    %v1244 = vsub.f32 %v1242, %v1243
    %v1245 = vmax.f32 %v1244, 0.0
    %v1246 = vld [vmem:[#allocation2] sm:$0x1]
    %v1247 = vadd.f32 %v1245, 1e-05
    %v1248 = vrsqrt.pop %v1247
    %v1249 = vmul.f32 %v1248, %v1247
    %v1250 = vmul.f32 %v1249, %v1248
    %v1251 = vmul.f32 0.5, %v1250
    %v1252 = vsub.f32 1.5, %v1251
    %v1253 = vmul.f32 %v1248, %v1252
    %vm1254 = vweird.f32 %v1247
    %vm1255 = vweird.f32 %v1248
    %vm1256 = vmor %vm1254, %vm1255
    %v1257 = vsel %vm1256, %v1248, %v1253
    %v1258 = vmul.f32 %v1246, %v1257
    %v1259 = vld [vmem:[#allocation3] sm:$0x1]
    %v1260 = vmul.f32 %v1241, %v1258
    %v1261 = vsub.f32 %v1259, %v1260
    %v1263 = vperm.slane %v1258, 0
    %vm1265 = vcmask 1040384
    %v1266 = vsel %vm1265, %v1258, %v1263
    %v1268 = vperm.slane %v1261, 0
    %v1270 = vsel %vm1265, %v1261, %v1268
    %1272 = vset.pattern.permute.xlu0 0
    %1273 = vperm.xlu0 %1272, %v1266
    %v1274 = vpop.permute.xlu0 %1273
    %v1276 = vmul.f32 %v1224, %v1274
    %1278 = vset.pattern.permute.xlu0 0
    %1279 = vperm.xlu0 %1278, %v1270
    %v1280 = vpop.permute.xlu0 %1279
    %v1282 = vadd.f32 %v1276, %v1280
    %vm1283 = vcmp.ge.f32.partialorder %v1282, 0.0
    %v1284 = vmul.f32 %v1282, 0.2
    %v1285 = vsel %vm1283, %v1282, %v1284
    %v1286 = vld [vmem:[%s19] sm:$0xff]
    %v1287 = vld [vmem:[%s19 + $0x8] sm:$0xff]
    %v1288 = vld [vmem:[%s19 + $0x10] sm:$0xff]
    %v1289 = vld [vmem:[%s19 + $0x18] sm:$0x3f]
    %v1290 = vld [vmem:[%s21] sm:$0x1]
    %v1292 = vperm.slane %v1290, 0
    %vm1294 = vcmask 244736
    %v1296 = vsel %vm1294, %v1285, 0
    %vm1298 = vcmask 1045504
    %v1300 = vsel %vm1298, %v1289, 0
    %1302 = vmatpush.msra.mxu0 0.0
    %1303 = vmatpush.msra.mxu0 0.0
    %1304 = vmatpush.msra.mxu0 0.0
    %1305 = vmatpush.msra.mxu0 0.0
    %1306 = vmatpush.msra.mxu0 0.0
    %1307 = vmatpush.msra.mxu0 0.0
    %1308 = vmatpush.msra.mxu0 0.0
    %1309 = vmatpush.msra.mxu0 0.0
    %1310 = vmatpush.msra.mxu0 0.0
    %1311 = vmatpush.msra.mxu0 0.0
    %1312 = vmatpush.msra.mxu0 0.0
    %1313 = vmatpush.msra.mxu0 0.0
    %1314 = vmatpush.msra.mxu0 %v1300
    %1315 = vmatpush.msra.mxu0 %v1288
    %1316 = vmatpush.msra.mxu0 %v1287
    %1317 = vmatpush.msra.mxu0 %v1286
    %1318 = vmatmul.f32.gmra.mxu0 %v1296
    %v1319 = vpop.f32.mrf.mxu0
    %v1320 = vadd.f32 %v1292, %v1319
    %1321 = vdwg.mxu0
    %vm1322 = vcmp.ge.f32.partialorder %v1320, 0.0
    %v1323 = vmul.f32 %v1320, 0.2
    %v1324 = vsel %vm1322, %v1320, %v1323
    %v1325 = vld [vmem:[%s1] sm:$0x3]
    %v1326 = vld [vmem:[%s23] sm:$0x1f]
    %v1327 = vld [vmem:[%s25] sm:$0xff]
    %v1328 = vld [vmem:[%s25 + $0x8] sm:$0x3]
    %vm1329 = vcmask 80896
    %v1331 = vsel %vm1329, %v1324, 0
    %v1334 = vsel %vm468, %v1328, 0
    %1336 = vmatpush.msra.mxu0 0.0
    %1337 = vmatpush.msra.mxu0 0.0
    %1338 = vmatpush.msra.mxu0 0.0
    %1339 = vmatpush.msra.mxu0 0.0
    %1340 = vmatpush.msra.mxu0 0.0
    %1341 = vmatpush.msra.mxu0 0.0
    %1342 = vmatpush.msra.mxu0 0.0
    %1343 = vmatpush.msra.mxu0 0.0
    %1344 = vmatpush.msra.mxu0 0.0
    %1345 = vmatpush.msra.mxu0 0.0
    %1346 = vmatpush.msra.mxu0 0.0
    %1347 = vmatpush.msra.mxu0 0.0
    %1348 = vmatpush.msra.mxu0 0.0
    %1349 = vmatpush.msra.mxu0 0.0
    %1350 = vmatpush.msra.mxu0 %v1334
    %1351 = vmatpush.msra.mxu0 %v1327
    %1352 = vmatmul.f32.gmra.mxu0 %v1331
    %v1353 = vpop.f32.mrf.mxu0
    %v1354 = vadd.f32 0.0, %v1353
    %1355 = vdwg.mxu0
    %vm1356 = vcmask 39936
    %v1358 = vsel %vm1356, %v1325, 0
    %vm1360 = vcmask 1044480
    %v1362 = vsel %vm1360, %v1326, 0
    %1364 = vmatpush.msra.mxu0 0.0
    %1365 = vmatpush.msra.mxu0 0.0
    %1366 = vmatpush.msra.mxu0 0.0
    %1367 = vmatpush.msra.mxu0 0.0
    %1368 = vmatpush.msra.mxu0 0.0
    %1369 = vmatpush.msra.mxu0 0.0
    %1370 = vmatpush.msra.mxu0 0.0
    %1371 = vmatpush.msra.mxu0 0.0
    %1372 = vmatpush.msra.mxu0 0.0
    %1373 = vmatpush.msra.mxu0 0.0
    %1374 = vmatpush.msra.mxu0 0.0
    %1375 = vmatpush.msra.mxu0 0.0
    %1376 = vmatpush.msra.mxu0 0.0
    %1377 = vmatpush.msra.mxu0 0.0
    %1378 = vmatpush.msra.mxu0 0.0
    %1379 = vmatpush.msra.mxu0 %v1362
    %1380 = vmatmul.f32.gmra.mxu0 %v1358
    %v1381 = vpop.f32.mrf.mxu0
    %v1382 = vadd.f32 %v1354, %v1381
    %1383 = vdwg.mxu0
    %v1384 = vld [vmem:[%s27] sm:$0x1]
    %v1386 = vperm.slane %v1384, 0
    %v1388 = vadd.f32 %v1382, %v1386
    %vm1389 = vcmp.ge.f32.partialorder %v1388, 0.0
    %v1390 = vmul.f32 %v1388, 0.2
    %v1391 = vsel %vm1389, %v1388, %v1390
    %v1392 = vld [vmem:[%s29] sm:$0xff]
    %v1393 = vld [vmem:[%s29 + $0x8] sm:$0xff]
    %v1394 = vld [vmem:[%s29 + $0x10] sm:$0xff]
    %v1395 = vld [vmem:[%s29 + $0x18] sm:$0xff]
    %v1396 = vld [vmem:[%s29 + $0x20] sm:$0xff]
    %v1397 = vld [vmem:[%s29 + $0x28] sm:$0xff]
    %v1398 = vld [vmem:[%s29 + $0x30] sm:$0x3]
    %v1399 = vld [vmem:[%s31] sm:$0x1]
    %v1401 = vperm.slane %v1399, 0
    %vm1403 = vcmask 408576
    %v1405 = vsel %vm1403, %v1391, 0
    %v1408 = vsel %vm468, %v1398, 0
    %1410 = vmatpush.msra.mxu0 0.0
    %1411 = vmatpush.msra.mxu0 0.0
    %1412 = vmatpush.msra.mxu0 0.0
    %1413 = vmatpush.msra.mxu0 0.0
    %1414 = vmatpush.msra.mxu0 0.0
    %1415 = vmatpush.msra.mxu0 0.0
    %1416 = vmatpush.msra.mxu0 0.0
    %1417 = vmatpush.msra.mxu0 0.0
    %1418 = vmatpush.msra.mxu0 0.0
    %1419 = vmatpush.msra.mxu0 %v1408
    %1420 = vmatpush.msra.mxu0 %v1397
    %1421 = vmatpush.msra.mxu0 %v1396
    %1422 = vmatpush.msra.mxu0 %v1395
    %1423 = vmatpush.msra.mxu0 %v1394
    %1424 = vmatpush.msra.mxu0 %v1393
    %1425 = vmatpush.msra.mxu0 %v1392
    %1426 = vmatmul.f32.gmra.mxu0 %v1405
    %v1427 = vpop.f32.mrf.mxu0
    %v1428 = vadd.f32 %v1401, %v1427
    %1429 = vdwg.mxu0
    %vm1430 = vcmp.ge.f32.partialorder %v1428, 0.0
    %v1431 = vmul.f32 %v1428, 0.2
    %v1432 = vsel %vm1430, %v1428, %v1431
    %v1433 = vld [vmem:[%s33] sm:$0xff]
    %v1434 = vld [vmem:[%s33 + $0x8] sm:$0xff]
    %v1435 = vld [vmem:[%s33 + $0x10] sm:$0xf]
    %v1436 = vld [vmem:[%s35] sm:$0x1]
    %v1438 = vperm.slane %v1436, 0
    %vm1440 = vcmask 162816
    %v1442 = vsel %vm1440, %v1432, 0
    %v1445 = vsel %vm1052, %v1435, 0
    %1447 = vmatpush.msra.mxu0 0.0
    %1448 = vmatpush.msra.mxu0 0.0
    %1449 = vmatpush.msra.mxu0 0.0
    %1450 = vmatpush.msra.mxu0 0.0
    %1451 = vmatpush.msra.mxu0 0.0
    %1452 = vmatpush.msra.mxu0 0.0
    %1453 = vmatpush.msra.mxu0 0.0
    %1454 = vmatpush.msra.mxu0 0.0
    %1455 = vmatpush.msra.mxu0 0.0
    %1456 = vmatpush.msra.mxu0 0.0
    %1457 = vmatpush.msra.mxu0 0.0
    %1458 = vmatpush.msra.mxu0 0.0
    %1459 = vmatpush.msra.mxu0 0.0
    %1460 = vmatpush.msra.mxu0 %v1445
    %1461 = vmatpush.msra.mxu0 %v1434
    %1462 = vmatpush.msra.mxu0 %v1433
    %1463 = vmatmul.f32.gmra.mxu0 %v1442
    %v1464 = vpop.f32.mrf.mxu0
    %v1465 = vadd.f32 %v1438, %v1464
    %1466 = vdwg.mxu0
    %vm1467 = vcmp.ge.f32.partialorder %v1465, 0.0
    %v1468 = vmul.f32 %v1465, 0.2
    %v1469 = vsel %vm1467, %v1465, %v1468
    %v1470 = vld [vmem:[%s37] sm:$0xff]
    %v1471 = vld [vmem:[%s37 + $0x8] sm:$0x3]
    %v1472 = vld [vmem:[%s39] sm:$0x1]
    %v1474 = vperm.slane %v1472, 0
    %v1477 = vsel %vm1329, %v1469, 0
    %v1480 = vsel %vm468, %v1471, 0
    %1482 = vmatpush.msra.mxu0 0.0
    %1483 = vmatpush.msra.mxu0 0.0
    %1484 = vmatpush.msra.mxu0 0.0
    %1485 = vmatpush.msra.mxu0 0.0
    %1486 = vmatpush.msra.mxu0 0.0
    %1487 = vmatpush.msra.mxu0 0.0
    %1488 = vmatpush.msra.mxu0 0.0
    %1489 = vmatpush.msra.mxu0 0.0
    %1490 = vmatpush.msra.mxu0 0.0
    %1491 = vmatpush.msra.mxu0 0.0
    %1492 = vmatpush.msra.mxu0 0.0
    %1493 = vmatpush.msra.mxu0 0.0
    %1494 = vmatpush.msra.mxu0 0.0
    %1495 = vmatpush.msra.mxu0 0.0
    %1496 = vmatpush.msra.mxu0 %v1480
    %1497 = vmatpush.msra.mxu0 %v1470
    %1498 = vmatmul.f32.gmra.mxu0 %v1477
    %v1499 = vpop.f32.mrf.mxu0
    %v1500 = vadd.f32 %v1474, %v1499
    %1501 = vdwg.mxu0
    %vm1502 = vcmp.ge.f32.partialorder %v1500, 0.0
    %v1503 = vmul.f32 %v1500, 0.2
    %v1504 = vsel %vm1502, %v1500, %v1503
    %v1505 = vmul.u32 %v148, 2
    %v1506 = vmul.u32 %v149, 2
    %v1507 = vmul.u32 %v150, 2
    %v1508 = vmul.u32 %v151, 2
    %v1509 = vmul.u32 %v152, 2
    %v1510 = vadd.s32 %v1505, 4294967295
    %v1511 = vadd.s32 %v1506, 4294967295
    %v1512 = vadd.s32 %v1507, 4294967295
    %v1513 = vadd.s32 %v1508, 4294967295
    %v1514 = vadd.s32 %v1509, 4294967295
    %vm1515 = vcmp.eq.s32.totalorder %v179, %v1510
    %vm1516 = vcmp.eq.s32.totalorder %v179, %v1511
    %vm1517 = vcmp.eq.s32.totalorder %v179, %v1512
    %vm1518 = vcmp.eq.s32.totalorder %v179, %v1513
    %vm1519 = vcmp.eq.s32.totalorder %v179, %v1514
    %v1520 = vsel %vm1515, 1, 0
    %v1521 = vsel %vm1516, 1, 0
    %v1522 = vsel %vm1517, 1, 0
    %v1523 = vsel %vm1518, 1, 0
    %v1524 = vsel %vm1519, 1, 0
    %v1525 = vcvt.s32.f32 %v1520
    %v1526 = vcvt.s32.f32 %v1521
    %v1527 = vcvt.s32.f32 %v1522
    %v1528 = vcvt.s32.f32 %v1523
    %v1529 = vcvt.s32.f32 %v1524
    %vm1530 = vcmask 310272
    %v1532 = vsel %vm1530, %v1504, 0
    %v1535 = vsel %vm1298, %v1529, 0
    %1537 = vmatpush.msra.mxu0 0.0
    %1538 = vmatpush.msra.mxu0 0.0
    %1539 = vmatpush.msra.mxu0 0.0
    %1540 = vmatpush.msra.mxu0 0.0
    %1541 = vmatpush.msra.mxu0 0.0
    %1542 = vmatpush.msra.mxu0 0.0
    %1543 = vmatpush.msra.mxu0 0.0
    %1544 = vmatpush.msra.mxu0 0.0
    %1545 = vmatpush.msra.mxu0 0.0
    %1546 = vmatpush.msra.mxu0 0.0
    %1547 = vmatpush.msra.mxu0 0.0
    %1548 = vmatpush.msra.mxu0 %v1535
    %1549 = vmatpush.msra.mxu0 %v1528
    %1550 = vmatpush.msra.mxu0 %v1527
    %1551 = vmatpush.msra.mxu0 %v1526
    %1552 = vmatpush.msra.mxu0 %v1525
    %1553 = vmatmul.f32.gmra.mxu0 %v1532
    %v1554 = vpop.f32.mrf.mxu0
    %v1555 = vadd.f32 0.0, %v1554
    %1556 = vdwg.mxu0
    %v1557 = vld [vmem:[%s41] sm:$0xff]
    %v1558 = vld [vmem:[%s41 + $0x8] sm:$0xff]
    %v1559 = vld [vmem:[%s41 + $0x10] sm:$0xff]
    %v1560 = vld [vmem:[%s41 + $0x18] sm:$0xff]
    %vm1561 = vcmp.eq.s32.totalorder %v179, %v1505
    %vm1562 = vcmp.eq.s32.totalorder %v179, %v1506
    %vm1563 = vcmp.eq.s32.totalorder %v179, %v1507
    %vm1564 = vcmp.eq.s32.totalorder %v179, %v1508
    %vm1565 = vcmp.eq.s32.totalorder %v179, %v1509
    %v1566 = vsel %vm1561, 1, 0
    %v1567 = vsel %vm1562, 1, 0
    %v1568 = vsel %vm1563, 1, 0
    %v1569 = vsel %vm1564, 1, 0
    %v1570 = vsel %vm1565, 1, 0
    %v1571 = vcvt.s32.f32 %v1566
    %v1572 = vcvt.s32.f32 %v1567
    %v1573 = vcvt.s32.f32 %v1568
    %v1574 = vcvt.s32.f32 %v1569
    %v1575 = vcvt.s32.f32 %v1570
    %v1577 = vsel %vm1298, %v1575, 0
    %1579 = vmatpush.msra.mxu0 0.0
    %1580 = vmatpush.msra.mxu0 0.0
    %1581 = vmatpush.msra.mxu0 0.0
    %1582 = vmatpush.msra.mxu0 0.0
    %1583 = vmatpush.msra.mxu0 0.0
    %1584 = vmatpush.msra.mxu0 0.0
    %1585 = vmatpush.msra.mxu0 0.0
    %1586 = vmatpush.msra.mxu0 0.0
    %1587 = vmatpush.msra.mxu0 0.0
    %1588 = vmatpush.msra.mxu0 0.0
    %1589 = vmatpush.msra.mxu0 0.0
    %1590 = vmatpush.msra.mxu0 %v1577
    %1591 = vmatpush.msra.mxu0 %v1574
    %1592 = vmatpush.msra.mxu0 %v1573
    %1593 = vmatpush.msra.mxu0 %v1572
    %1594 = vmatpush.msra.mxu0 %v1571
    %1595 = vmatmul.f32.gmra.mxu0 %v1532
    %v1596 = vpop.f32.mrf.mxu0
    %v1597 = vadd.f32 0.0, %v1596
    %1598 = vdwg.mxu0
    %s1599 = scalar_lea.vmem %s41, 32
    %v1600 = vld [vmem:[%s1599] sm:$0xff]
    %v1601 = vld [vmem:[%s1599 + $0x8] sm:$0xff]
    %v1602 = vld [vmem:[%s1599 + $0x10] sm:$0xff]
    %v1603 = vld [vmem:[%s1599 + $0x18] sm:$0xff]
    %v1605 = vsel %vm461, %v1600, 0
    %v1608 = vsel %vm461, %v1601, 0
    %v1611 = vsel %vm461, %v1602, 0
    %v1614 = vsel %vm461, %v1603, 0
    %v1617 = vsel %vm468, %v1597, 0
    %1619 = vmatpush.msra.mxu0 0.0
    %1620 = vmatpush.msra.mxu0 0.0
    %1621 = vmatpush.msra.mxu0 0.0
    %1622 = vmatpush.msra.mxu0 0.0
    %1623 = vmatpush.msra.mxu0 0.0
    %1624 = vmatpush.msra.mxu0 0.0
    %1625 = vmatpush.msra.mxu0 0.0
    %1626 = vmatpush.msra.mxu0 0.0
    %1627 = vmatpush.msra.mxu0 0.0
    %1628 = vmatpush.msra.mxu0 0.0
    %1629 = vmatpush.msra.mxu0 0.0
    %1630 = vmatpush.msra.mxu0 0.0
    %1631 = vmatpush.msra.mxu0 0.0
    %1632 = vmatpush.msra.mxu0 0.0
    %1633 = vmatpush.msra.mxu0 0.0
    %1634 = vmatpush.msra.mxu0 %v1617
    %1635 = vmatmul.f32.gmra.mxu0 %v1605
    %v1636 = vpop.f32.mrf.mxu0
    %v1637 = vadd.f32 0.0, %v1636
    %1638 = vmatmul.f32.gmra.mxu0 %v1608
    %v1639 = vpop.f32.mrf.mxu0
    %v1640 = vadd.f32 0.0, %v1639
    %1641 = vmatmul.f32.gmra.mxu0 %v1611
    %v1642 = vpop.f32.mrf.mxu0
    %v1643 = vadd.f32 0.0, %v1642
    %1644 = vmatmul.f32.gmra.mxu0 %v1614
    %v1645 = vpop.f32.mrf.mxu0
    %v1646 = vadd.f32 0.0, %v1645
    %1647 = vdwg.mxu0
    %v1649 = vsel %vm461, %v1557, 0
    %v1652 = vsel %vm461, %v1558, 0
    %v1655 = vsel %vm461, %v1559, 0
    %v1658 = vsel %vm461, %v1560, 0
    %v1661 = vsel %vm468, %v1555, 0
    %1663 = vmatpush.msra.mxu0 0.0
    %1664 = vmatpush.msra.mxu0 0.0
    %1665 = vmatpush.msra.mxu0 0.0
    %1666 = vmatpush.msra.mxu0 0.0
    %1667 = vmatpush.msra.mxu0 0.0
    %1668 = vmatpush.msra.mxu0 0.0
    %1669 = vmatpush.msra.mxu0 0.0
    %1670 = vmatpush.msra.mxu0 0.0
    %1671 = vmatpush.msra.mxu0 0.0
    %1672 = vmatpush.msra.mxu0 0.0
    %1673 = vmatpush.msra.mxu0 0.0
    %1674 = vmatpush.msra.mxu0 0.0
    %1675 = vmatpush.msra.mxu0 0.0
    %1676 = vmatpush.msra.mxu0 0.0
    %1677 = vmatpush.msra.mxu0 0.0
    %1678 = vmatpush.msra.mxu0 %v1661
    %1679 = vmatmul.f32.gmra.mxu0 %v1649
    %v1680 = vpop.f32.mrf.mxu0
    %v1681 = vadd.f32 %v1637, %v1680
    %1682 = vmatmul.f32.gmra.mxu0 %v1652
    %v1683 = vpop.f32.mrf.mxu0
    %v1684 = vadd.f32 %v1640, %v1683
    %1685 = vmatmul.f32.gmra.mxu0 %v1655
    %v1686 = vpop.f32.mrf.mxu0
    %v1687 = vadd.f32 %v1643, %v1686
    %1688 = vmatmul.f32.gmra.mxu0 %v1658
    %v1689 = vpop.f32.mrf.mxu0
    %v1690 = vadd.f32 %v1646, %v1689
    %1691 = vdwg.mxu0
    %v1692 = vadd.s32 %v1505, 1
    %v1693 = vadd.s32 %v1506, 1
    %v1694 = vadd.s32 %v1507, 1
    %v1695 = vadd.s32 %v1508, 1
    %v1696 = vadd.s32 %v1509, 1
    %vm1697 = vcmp.eq.s32.totalorder %v179, %v1692
    %vm1698 = vcmp.eq.s32.totalorder %v179, %v1693
    %vm1699 = vcmp.eq.s32.totalorder %v179, %v1694
    %vm1700 = vcmp.eq.s32.totalorder %v179, %v1695
    %vm1701 = vcmp.eq.s32.totalorder %v179, %v1696
    %v1702 = vsel %vm1697, 1, 0
    %v1703 = vsel %vm1698, 1, 0
    %v1704 = vsel %vm1699, 1, 0
    %v1705 = vsel %vm1700, 1, 0
    %v1706 = vsel %vm1701, 1, 0
    %v1707 = vcvt.s32.f32 %v1702
    %v1708 = vcvt.s32.f32 %v1703
    %v1709 = vcvt.s32.f32 %v1704
    %v1710 = vcvt.s32.f32 %v1705
    %v1711 = vcvt.s32.f32 %v1706
    %v1713 = vsel %vm1298, %v1711, 0
    %1715 = vmatpush.msra.mxu0 0.0
    %1716 = vmatpush.msra.mxu0 0.0
    %1717 = vmatpush.msra.mxu0 0.0
    %1718 = vmatpush.msra.mxu0 0.0
    %1719 = vmatpush.msra.mxu0 0.0
    %1720 = vmatpush.msra.mxu0 0.0
    %1721 = vmatpush.msra.mxu0 0.0
    %1722 = vmatpush.msra.mxu0 0.0
    %1723 = vmatpush.msra.mxu0 0.0
    %1724 = vmatpush.msra.mxu0 0.0
    %1725 = vmatpush.msra.mxu0 0.0
    %1726 = vmatpush.msra.mxu0 %v1713
    %1727 = vmatpush.msra.mxu0 %v1710
    %1728 = vmatpush.msra.mxu0 %v1709
    %1729 = vmatpush.msra.mxu0 %v1708
    %1730 = vmatpush.msra.mxu0 %v1707
    %1731 = vmatmul.f32.gmra.mxu0 %v1532
    %v1732 = vpop.f32.mrf.mxu0
    %v1733 = vadd.f32 0.0, %v1732
    %1734 = vdwg.mxu0
    %s1735 = scalar_lea.vmem %s41, 64
    %v1736 = vld [vmem:[%s1735] sm:$0xff]
    %v1737 = vld [vmem:[%s1735 + $0x8] sm:$0xff]
    %v1738 = vld [vmem:[%s1735 + $0x10] sm:$0xff]
    %v1739 = vld [vmem:[%s1735 + $0x18] sm:$0xff]
    %v1741 = vsel %vm461, %v1736, 0
    %v1744 = vsel %vm461, %v1737, 0
    %v1747 = vsel %vm461, %v1738, 0
    %v1750 = vsel %vm461, %v1739, 0
    %v1753 = vsel %vm468, %v1733, 0
    %1755 = vmatpush.msra.mxu0 0.0
    %1756 = vmatpush.msra.mxu0 0.0
    %1757 = vmatpush.msra.mxu0 0.0
    %1758 = vmatpush.msra.mxu0 0.0
    %1759 = vmatpush.msra.mxu0 0.0
    %1760 = vmatpush.msra.mxu0 0.0
    %1761 = vmatpush.msra.mxu0 0.0
    %1762 = vmatpush.msra.mxu0 0.0
    %1763 = vmatpush.msra.mxu0 0.0
    %1764 = vmatpush.msra.mxu0 0.0
    %1765 = vmatpush.msra.mxu0 0.0
    %1766 = vmatpush.msra.mxu0 0.0
    %1767 = vmatpush.msra.mxu0 0.0
    %1768 = vmatpush.msra.mxu0 0.0
    %1769 = vmatpush.msra.mxu0 0.0
    %1770 = vmatpush.msra.mxu0 %v1753
    %1771 = vmatmul.f32.gmra.mxu0 %v1741
    %v1772 = vpop.f32.mrf.mxu0
    %v1773 = vadd.f32 0.0, %v1772
    %1774 = vmatmul.f32.gmra.mxu0 %v1744
    %v1775 = vpop.f32.mrf.mxu0
    %v1776 = vadd.f32 0.0, %v1775
    %1777 = vmatmul.f32.gmra.mxu0 %v1747
    %v1778 = vpop.f32.mrf.mxu0
    %v1779 = vadd.f32 0.0, %v1778
    %1780 = vmatmul.f32.gmra.mxu0 %v1750
    %v1781 = vpop.f32.mrf.mxu0
    %v1782 = vadd.f32 0.0, %v1781
    %1783 = vdwg.mxu0
    %v1784 = vadd.f32 %v1681, %v1773
    %v1785 = vadd.f32 %v1684, %v1776
    %v1786 = vadd.f32 %v1687, %v1779
    %v1787 = vadd.f32 %v1690, %v1782
    %vm1788 = vcmask 613376
    %v1789 = vsel %vm1788, %v1784, 0.0
    %1790 = vadd.xlane.f32.xlu0 %v1789
    %v1791 = vpop.xlane.xlu0 %1790
    %v1792 = vsel %vm1788, %v1785, 0.0
    %1793 = vadd.xlane.f32.xlu0 %v1792
    %v1794 = vpop.xlane.xlu0 %1793
    %v1795 = vsel %vm1788, %v1786, 0.0
    %1796 = vadd.xlane.f32.xlu0 %v1795
    %v1797 = vpop.xlane.xlu0 %1796
    %v1798 = vsel %vm1788, %v1787, 0.0
    %1799 = vadd.xlane.f32.xlu0 %v1798
    %v1800 = vpop.xlane.xlu0 %1799
    %v1801 = vmul.f32 %v1784, %v1784
    %v1802 = vmul.f32 %v1785, %v1785
    %v1803 = vmul.f32 %v1786, %v1786
    %v1804 = vmul.f32 %v1787, %v1787
    %v1805 = vsel %vm1788, %v1801, 0.0
    %1806 = vadd.xlane.f32.xlu0 %v1805
    %v1807 = vpop.xlane.xlu0 %1806
    %v1808 = vsel %vm1788, %v1802, 0.0
    %1809 = vadd.xlane.f32.xlu0 %v1808
    %v1810 = vpop.xlane.xlu0 %1809
    %v1811 = vsel %vm1788, %v1803, 0.0
    %1812 = vadd.xlane.f32.xlu0 %v1811
    %v1813 = vpop.xlane.xlu0 %1812
    %v1814 = vsel %vm1788, %v1804, 0.0
    %1815 = vadd.xlane.f32.xlu0 %v1814
    %v1816 = vpop.xlane.xlu0 %1815
    %v1817 = vadd.f32 %v1791, %v1797
    %v1818 = vadd.f32 %v1794, %v1800
    %v1819 = vadd.f32 %v1807, %v1813
    %v1820 = vadd.f32 %v1810, %v1816
    %v1821 = vmul.f32 %v1817, 0.006666667
    %v1822 = vmul.f32 %v1818, 0.006666667
    %v1823 = vmul.f32 %v1819, 0.006666667
    %v1824 = vmul.f32 %v1820, 0.006666667
    %v1825 = vmul.f32 %v1821, %v1821
    %v1826 = vmul.f32 %v1822, %v1822
    %v1827 = vsub.f32 %v1823, %v1825
    %v1828 = vsub.f32 %v1824, %v1826
    %v1829 = vmax.f32 %v1827, 0.0
    %v1830 = vmax.f32 %v1828, 0.0
    %v1831 = vld [vmem:[%s43] sm:$0xff]
    %v1832 = vld [vmem:[%s43 + $0x8] sm:$0xff]
    %v1833 = vadd.f32 %v1829, 1e-05
    %v1834 = vadd.f32 %v1830, 1e-05
    %v1835 = vrsqrt.pop %v1833
    %v1836 = vmul.f32 %v1835, %v1833
    %v1837 = vmul.f32 %v1836, %v1835
    %v1838 = vmul.f32 0.5, %v1837
    %v1839 = vsub.f32 1.5, %v1838
    %v1840 = vmul.f32 %v1835, %v1839
    %vm1841 = vweird.f32 %v1833
    %vm1842 = vweird.f32 %v1835
    %vm1843 = vmor %vm1841, %vm1842
    %v1844 = vsel %vm1843, %v1835, %v1840
    %v1845 = vrsqrt.pop %v1834
    %v1846 = vmul.f32 %v1845, %v1834
    %v1847 = vmul.f32 %v1846, %v1845
    %v1848 = vmul.f32 0.5, %v1847
    %v1849 = vsub.f32 1.5, %v1848
    %v1850 = vmul.f32 %v1845, %v1849
    %vm1851 = vweird.f32 %v1834
    %vm1852 = vweird.f32 %v1845
    %vm1853 = vmor %vm1851, %vm1852
    %v1854 = vsel %vm1853, %v1845, %v1850
    %v1855 = vmul.f32 %v1831, %v1844
    %v1856 = vmul.f32 %v1832, %v1854
    %v1857 = vld [vmem:[%s45] sm:$0xff]
    %v1858 = vld [vmem:[%s45 + $0x8] sm:$0xff]
    %v1859 = vmul.f32 %v1821, %v1855
    %v1860 = vmul.f32 %v1822, %v1856
    %v1861 = vsub.f32 %v1857, %v1859
    %v1862 = vsub.f32 %v1858, %v1860
    %1864 = vset.pattern.permute.xlu0 0
    %1865 = vperm.xlu0 %1864, %v1855
    %v1866 = vpop.permute.xlu0 %1865
    %1869 = vset.pattern.permute.xlu0 0
    %1870 = vperm.xlu0 %1869, %v1856
    %v1871 = vpop.permute.xlu0 %1870
    %v1873 = vmul.f32 %v1784, %v1866
    %v1874 = vmul.f32 %v1785, %v1871
    %v1875 = vmul.f32 %v1786, %v1866
    %v1876 = vmul.f32 %v1787, %v1871
    %1878 = vset.pattern.permute.xlu0 0
    %1879 = vperm.xlu0 %1878, %v1861
    %v1880 = vpop.permute.xlu0 %1879
    %1883 = vset.pattern.permute.xlu0 0
    %1884 = vperm.xlu0 %1883, %v1862
    %v1885 = vpop.permute.xlu0 %1884
    %v1887 = vadd.f32 %v1873, %v1880
    %v1888 = vadd.f32 %v1874, %v1885
    %v1889 = vadd.f32 %v1875, %v1880
    %v1890 = vadd.f32 %v1876, %v1885
    %vm1891 = vcmp.ge.f32.partialorder %v1887, 0.0
    %vm1892 = vcmp.ge.f32.partialorder %v1888, 0.0
    %vm1893 = vcmp.ge.f32.partialorder %v1889, 0.0
    %vm1894 = vcmp.ge.f32.partialorder %v1890, 0.0
    %v1895 = vmul.f32 %v1887, 0.2
    %v1896 = vmul.f32 %v1888, 0.2
    %v1897 = vmul.f32 %v1889, 0.2
    %v1898 = vmul.f32 %v1890, 0.2
    %v1899 = vsel %vm1891, %v1887, %v1895
    %v1900 = vsel %vm1892, %v1888, %v1896
    %v1901 = vsel %vm1893, %v1889, %v1897
    %v1902 = vsel %vm1894, %v1890, %v1898
    %v1903 = vadd.s32 %v179, 128
    %v1904 = vmul.u32 %v153, 2
    %v1905 = vmul.u32 %v154, 2
    %v1906 = vmul.u32 %v155, 2
    %v1907 = vmul.u32 %v156, 2
    %v1908 = vmul.u32 %v157, 2
    %v1909 = vadd.s32 %v1904, 4294967295
    %v1910 = vadd.s32 %v1905, 4294967295
    %v1911 = vadd.s32 %v1906, 4294967295
    %v1912 = vadd.s32 %v1907, 4294967295
    %v1913 = vadd.s32 %v1908, 4294967295
    %vm1914 = vcmp.eq.s32.totalorder %v1903, %v1510
    %vm1915 = vcmp.eq.s32.totalorder %v1903, %v1511
    %vm1916 = vcmp.eq.s32.totalorder %v1903, %v1512
    %vm1917 = vcmp.eq.s32.totalorder %v1903, %v1513
    %vm1918 = vcmp.eq.s32.totalorder %v1903, %v1514
    %vm1919 = vcmp.eq.s32.totalorder %v179, %v1909
    %vm1920 = vcmp.eq.s32.totalorder %v1903, %v1909
    %vm1921 = vcmp.eq.s32.totalorder %v179, %v1910
    %vm1922 = vcmp.eq.s32.totalorder %v1903, %v1910
    %vm1923 = vcmp.eq.s32.totalorder %v179, %v1911
    %vm1924 = vcmp.eq.s32.totalorder %v1903, %v1911
    %vm1925 = vcmp.eq.s32.totalorder %v179, %v1912
    %vm1926 = vcmp.eq.s32.totalorder %v1903, %v1912
    %vm1927 = vcmp.eq.s32.totalorder %v179, %v1913
    %vm1928 = vcmp.eq.s32.totalorder %v1903, %v1913
    %v1929 = vsel %vm1914, 1, 0
    %v1930 = vsel %vm1915, 1, 0
    %v1931 = vsel %vm1916, 1, 0
    %v1932 = vsel %vm1917, 1, 0
    %v1933 = vsel %vm1918, 1, 0
    %v1934 = vsel %vm1919, 1, 0
    %v1935 = vsel %vm1920, 1, 0
    %v1936 = vsel %vm1921, 1, 0
    %v1937 = vsel %vm1922, 1, 0
    %v1938 = vsel %vm1923, 1, 0
    %v1939 = vsel %vm1924, 1, 0
    %v1940 = vsel %vm1925, 1, 0
    %v1941 = vsel %vm1926, 1, 0
    %v1942 = vsel %vm1927, 1, 0
    %v1943 = vsel %vm1928, 1, 0
    %v1944 = vcvt.s32.f32 %v1929
    %v1945 = vcvt.s32.f32 %v1930
    %v1946 = vcvt.s32.f32 %v1931
    %v1947 = vcvt.s32.f32 %v1932
    %v1948 = vcvt.s32.f32 %v1933
    %v1949 = vcvt.s32.f32 %v1934
    %v1950 = vcvt.s32.f32 %v1935
    %v1951 = vcvt.s32.f32 %v1936
    %v1952 = vcvt.s32.f32 %v1937
    %v1953 = vcvt.s32.f32 %v1938
    %v1954 = vcvt.s32.f32 %v1939
    %v1955 = vcvt.s32.f32 %v1940
    %v1956 = vcvt.s32.f32 %v1941
    %v1957 = vcvt.s32.f32 %v1942
    %v1958 = vcvt.s32.f32 %v1943
    %v1960 = vsel %vm1788, %v1899, 0
    %v1963 = vsel %vm1788, %v1900, 0
    %v1966 = vsel %vm1788, %v1901, 0
    %v1969 = vsel %vm1788, %v1902, 0
    %vm1971 = vcmask 1042432
    %v1973 = vsel %vm1971, %v1957, 0
    %v1976 = vsel %vm1971, %v1958, 0
    %1978 = vmatpush.msra.mxu0 0.0
    %1979 = vmatpush.msra.mxu0 0.0
    %1980 = vmatpush.msra.mxu0 0.0
    %1981 = vmatpush.msra.mxu0 0.0
    %1982 = vmatpush.msra.mxu0 0.0
    %1983 = vmatpush.msra.mxu0 0.0
    %1984 = vmatpush.msra.mxu0 %v1973
    %1985 = vmatpush.msra.mxu0 %v1955
    %1986 = vmatpush.msra.mxu0 %v1953
    %1987 = vmatpush.msra.mxu0 %v1951
    %1988 = vmatpush.msra.mxu0 %v1949
    %1989 = vmatpush.msra.mxu0 %v1529
    %1990 = vmatpush.msra.mxu0 %v1528
    %1991 = vmatpush.msra.mxu0 %v1527
    %1992 = vmatpush.msra.mxu0 %v1526
    %1993 = vmatpush.msra.mxu0 %v1525
    %1994 = vmatmul.f32.gmra.mxu0 %v1960
    %v1995 = vpop.f32.mrf.mxu0
    %v1996 = vadd.f32 0.0, %v1995
    %1997 = vmatmul.f32.gmra.mxu0 %v1963
    %v1998 = vpop.f32.mrf.mxu0
    %v1999 = vadd.f32 0.0, %v1998
    %2000 = vmatmul.f32.gmra.mxu0 %v1966
    %v2001 = vpop.f32.mrf.mxu0
    %v2002 = vadd.f32 0.0, %v2001
    %2003 = vmatmul.f32.gmra.mxu0 %v1969
    %v2004 = vpop.f32.mrf.mxu0
    %v2005 = vadd.f32 0.0, %v2004
    %2006 = vdwg.mxu0
    %2007 = vmatpush.msra.mxu0 0.0
    %2008 = vmatpush.msra.mxu0 0.0
    %2009 = vmatpush.msra.mxu0 0.0
    %2010 = vmatpush.msra.mxu0 0.0
    %2011 = vmatpush.msra.mxu0 0.0
    %2012 = vmatpush.msra.mxu0 0.0
    %2013 = vmatpush.msra.mxu0 %v1976
    %2014 = vmatpush.msra.mxu0 %v1956
    %2015 = vmatpush.msra.mxu0 %v1954
    %2016 = vmatpush.msra.mxu0 %v1952
    %2017 = vmatpush.msra.mxu0 %v1950
    %2018 = vmatpush.msra.mxu0 %v1948
    %2019 = vmatpush.msra.mxu0 %v1947
    %2020 = vmatpush.msra.mxu0 %v1946
    %2021 = vmatpush.msra.mxu0 %v1945
    %2022 = vmatpush.msra.mxu0 %v1944
    %2023 = vmatmul.f32.gmra.mxu0 %v1960
    %v2024 = vpop.f32.mrf.mxu0
    %v2025 = vadd.f32 0.0, %v2024
    %2026 = vmatmul.f32.gmra.mxu0 %v1963
    %v2027 = vpop.f32.mrf.mxu0
    %v2028 = vadd.f32 0.0, %v2027
    %2029 = vmatmul.f32.gmra.mxu0 %v1966
    %v2030 = vpop.f32.mrf.mxu0
    %v2031 = vadd.f32 0.0, %v2030
    %2032 = vmatmul.f32.gmra.mxu0 %v1969
    %v2033 = vpop.f32.mrf.mxu0
    %v2034 = vadd.f32 0.0, %v2033
    %2035 = vdwg.mxu0
    %v2036 = vld [vmem:[%s47] sm:$0xff]
    %v2037 = vld [vmem:[%s47 + $0x8] sm:$0xff]
    %vm2038 = vcmp.eq.s32.totalorder %v1903, %v1505
    %vm2039 = vcmp.eq.s32.totalorder %v1903, %v1506
    %vm2040 = vcmp.eq.s32.totalorder %v1903, %v1507
    %vm2041 = vcmp.eq.s32.totalorder %v1903, %v1508
    %vm2042 = vcmp.eq.s32.totalorder %v1903, %v1509
    %vm2043 = vcmp.eq.s32.totalorder %v179, %v1904
    %vm2044 = vcmp.eq.s32.totalorder %v1903, %v1904
    %vm2045 = vcmp.eq.s32.totalorder %v179, %v1905
    %vm2046 = vcmp.eq.s32.totalorder %v1903, %v1905
    %vm2047 = vcmp.eq.s32.totalorder %v179, %v1906
    %vm2048 = vcmp.eq.s32.totalorder %v1903, %v1906
    %vm2049 = vcmp.eq.s32.totalorder %v179, %v1907
    %vm2050 = vcmp.eq.s32.totalorder %v1903, %v1907
    %vm2051 = vcmp.eq.s32.totalorder %v179, %v1908
    %vm2052 = vcmp.eq.s32.totalorder %v1903, %v1908
    %v2053 = vsel %vm2038, 1, 0
    %v2054 = vsel %vm2039, 1, 0
    %v2055 = vsel %vm2040, 1, 0
    %v2056 = vsel %vm2041, 1, 0
    %v2057 = vsel %vm2042, 1, 0
    %v2058 = vsel %vm2043, 1, 0
    %v2059 = vsel %vm2044, 1, 0
    %v2060 = vsel %vm2045, 1, 0
    %v2061 = vsel %vm2046, 1, 0
    %v2062 = vsel %vm2047, 1, 0
    %v2063 = vsel %vm2048, 1, 0
    %v2064 = vsel %vm2049, 1, 0
    %v2065 = vsel %vm2050, 1, 0
    %v2066 = vsel %vm2051, 1, 0
    %v2067 = vsel %vm2052, 1, 0
    %v2068 = vcvt.s32.f32 %v2053
    %v2069 = vcvt.s32.f32 %v2054
    %v2070 = vcvt.s32.f32 %v2055
    %v2071 = vcvt.s32.f32 %v2056
    %v2072 = vcvt.s32.f32 %v2057
    %v2073 = vcvt.s32.f32 %v2058
    %v2074 = vcvt.s32.f32 %v2059
    %v2075 = vcvt.s32.f32 %v2060
    %v2076 = vcvt.s32.f32 %v2061
    %v2077 = vcvt.s32.f32 %v2062
    %v2078 = vcvt.s32.f32 %v2063
    %v2079 = vcvt.s32.f32 %v2064
    %v2080 = vcvt.s32.f32 %v2065
    %v2081 = vcvt.s32.f32 %v2066
    %v2082 = vcvt.s32.f32 %v2067
    %v2084 = vsel %vm1971, %v2081, 0
    %v2087 = vsel %vm1971, %v2082, 0
    %2089 = vmatpush.msra.mxu0 0.0
    %2090 = vmatpush.msra.mxu0 0.0
    %2091 = vmatpush.msra.mxu0 0.0
    %2092 = vmatpush.msra.mxu0 0.0
    %2093 = vmatpush.msra.mxu0 0.0
    %2094 = vmatpush.msra.mxu0 0.0
    %2095 = vmatpush.msra.mxu0 %v2084
    %2096 = vmatpush.msra.mxu0 %v2079
    %2097 = vmatpush.msra.mxu0 %v2077
    %2098 = vmatpush.msra.mxu0 %v2075
    %2099 = vmatpush.msra.mxu0 %v2073
    %2100 = vmatpush.msra.mxu0 %v1575
    %2101 = vmatpush.msra.mxu0 %v1574
    %2102 = vmatpush.msra.mxu0 %v1573
    %2103 = vmatpush.msra.mxu0 %v1572
    %2104 = vmatpush.msra.mxu0 %v1571
    %2105 = vmatmul.f32.gmra.mxu0 %v1960
    %v2106 = vpop.f32.mrf.mxu0
    %v2107 = vadd.f32 0.0, %v2106
    %2108 = vmatmul.f32.gmra.mxu0 %v1963
    %v2109 = vpop.f32.mrf.mxu0
    %v2110 = vadd.f32 0.0, %v2109
    %2111 = vmatmul.f32.gmra.mxu0 %v1966
    %v2112 = vpop.f32.mrf.mxu0
    %v2113 = vadd.f32 0.0, %v2112
    %2114 = vmatmul.f32.gmra.mxu0 %v1969
    %v2115 = vpop.f32.mrf.mxu0
    %v2116 = vadd.f32 0.0, %v2115
    %2117 = vdwg.mxu0
    %2118 = vmatpush.msra.mxu0 0.0
    %2119 = vmatpush.msra.mxu0 0.0
    %2120 = vmatpush.msra.mxu0 0.0
    %2121 = vmatpush.msra.mxu0 0.0
    %2122 = vmatpush.msra.mxu0 0.0
    %2123 = vmatpush.msra.mxu0 0.0
    %2124 = vmatpush.msra.mxu0 %v2087
    %2125 = vmatpush.msra.mxu0 %v2080
    %2126 = vmatpush.msra.mxu0 %v2078
    %2127 = vmatpush.msra.mxu0 %v2076
    %2128 = vmatpush.msra.mxu0 %v2074
    %2129 = vmatpush.msra.mxu0 %v2072
    %2130 = vmatpush.msra.mxu0 %v2071
    %2131 = vmatpush.msra.mxu0 %v2070
    %2132 = vmatpush.msra.mxu0 %v2069
    %2133 = vmatpush.msra.mxu0 %v2068
    %2134 = vmatmul.f32.gmra.mxu0 %v1960
    %v2135 = vpop.f32.mrf.mxu0
    %v2136 = vadd.f32 0.0, %v2135
    %2137 = vmatmul.f32.gmra.mxu0 %v1963
    %v2138 = vpop.f32.mrf.mxu0
    %v2139 = vadd.f32 0.0, %v2138
    %2140 = vmatmul.f32.gmra.mxu0 %v1966
    %v2141 = vpop.f32.mrf.mxu0
    %v2142 = vadd.f32 0.0, %v2141
    %2143 = vmatmul.f32.gmra.mxu0 %v1969
    %v2144 = vpop.f32.mrf.mxu0
    %v2145 = vadd.f32 0.0, %v2144
    %2146 = vdwg.mxu0
    %s2147 = scalar_lea.vmem %s47, 16
    %v2148 = vld [vmem:[%s2147] sm:$0xff]
    %v2149 = vld [vmem:[%s2147 + $0x8] sm:$0xff]
    %v2151 = vsel %vm1120, %v2148, 0
    %v2154 = vsel %vm1120, %v2149, 0
    %2156 = vmatpush.msra.mxu0 0.0
    %2157 = vmatpush.msra.mxu0 0.0
    %2158 = vmatpush.msra.mxu0 0.0
    %2159 = vmatpush.msra.mxu0 0.0
    %2160 = vmatpush.msra.mxu0 0.0
    %2161 = vmatpush.msra.mxu0 0.0
    %2162 = vmatpush.msra.mxu0 0.0
    %2163 = vmatpush.msra.mxu0 0.0
    %2164 = vmatpush.msra.mxu0 0.0
    %2165 = vmatpush.msra.mxu0 0.0
    %2166 = vmatpush.msra.mxu0 0.0
    %2167 = vmatpush.msra.mxu0 0.0
    %2168 = vmatpush.msra.mxu0 %v2116
    %2169 = vmatpush.msra.mxu0 %v2113
    %2170 = vmatpush.msra.mxu0 %v2110
    %2171 = vmatpush.msra.mxu0 %v2107
    %2172 = vmatmul.f32.gmra.mxu0 %v2151
    %v2173 = vpop.f32.mrf.mxu0
    %v2174 = vadd.f32 0.0, %v2173
    %2175 = vmatmul.f32.gmra.mxu0 %v2154
    %v2176 = vpop.f32.mrf.mxu0
    %v2177 = vadd.f32 0.0, %v2176
    %2178 = vdwg.mxu0
    %2179 = vmatpush.msra.mxu0 0.0
    %2180 = vmatpush.msra.mxu0 0.0
    %2181 = vmatpush.msra.mxu0 0.0
    %2182 = vmatpush.msra.mxu0 0.0
    %2183 = vmatpush.msra.mxu0 0.0
    %2184 = vmatpush.msra.mxu0 0.0
    %2185 = vmatpush.msra.mxu0 0.0
    %2186 = vmatpush.msra.mxu0 0.0
    %2187 = vmatpush.msra.mxu0 0.0
    %2188 = vmatpush.msra.mxu0 0.0
    %2189 = vmatpush.msra.mxu0 0.0
    %2190 = vmatpush.msra.mxu0 0.0
    %2191 = vmatpush.msra.mxu0 %v2145
    %2192 = vmatpush.msra.mxu0 %v2142
    %2193 = vmatpush.msra.mxu0 %v2139
    %2194 = vmatpush.msra.mxu0 %v2136
    %2195 = vmatmul.f32.gmra.mxu0 %v2151
    %v2196 = vpop.f32.mrf.mxu0
    %v2197 = vadd.f32 0.0, %v2196
    %2198 = vmatmul.f32.gmra.mxu0 %v2154
    %v2199 = vpop.f32.mrf.mxu0
    %v2200 = vadd.f32 0.0, %v2199
    %2201 = vdwg.mxu0
    %v2203 = vsel %vm1120, %v2036, 0
    %v2206 = vsel %vm1120, %v2037, 0
    %2208 = vmatpush.msra.mxu0 0.0
    %2209 = vmatpush.msra.mxu0 0.0
    %2210 = vmatpush.msra.mxu0 0.0
    %2211 = vmatpush.msra.mxu0 0.0
    %2212 = vmatpush.msra.mxu0 0.0
    %2213 = vmatpush.msra.mxu0 0.0
    %2214 = vmatpush.msra.mxu0 0.0
    %2215 = vmatpush.msra.mxu0 0.0
    %2216 = vmatpush.msra.mxu0 0.0
    %2217 = vmatpush.msra.mxu0 0.0
    %2218 = vmatpush.msra.mxu0 0.0
    %2219 = vmatpush.msra.mxu0 0.0
    %2220 = vmatpush.msra.mxu0 %v2005
    %2221 = vmatpush.msra.mxu0 %v2002
    %2222 = vmatpush.msra.mxu0 %v1999
    %2223 = vmatpush.msra.mxu0 %v1996
    %2224 = vmatmul.f32.gmra.mxu0 %v2203
    %v2225 = vpop.f32.mrf.mxu0
    %v2226 = vadd.f32 %v2174, %v2225
    %2227 = vmatmul.f32.gmra.mxu0 %v2206
    %v2228 = vpop.f32.mrf.mxu0
    %v2229 = vadd.f32 %v2177, %v2228
    %2230 = vdwg.mxu0
    %2231 = vmatpush.msra.mxu0 0.0
    %2232 = vmatpush.msra.mxu0 0.0
    %2233 = vmatpush.msra.mxu0 0.0
    %2234 = vmatpush.msra.mxu0 0.0
    %2235 = vmatpush.msra.mxu0 0.0
    %2236 = vmatpush.msra.mxu0 0.0
    %2237 = vmatpush.msra.mxu0 0.0
    %2238 = vmatpush.msra.mxu0 0.0
    %2239 = vmatpush.msra.mxu0 0.0
    %2240 = vmatpush.msra.mxu0 0.0
    %2241 = vmatpush.msra.mxu0 0.0
    %2242 = vmatpush.msra.mxu0 0.0
    %2243 = vmatpush.msra.mxu0 %v2034
    %2244 = vmatpush.msra.mxu0 %v2031
    %2245 = vmatpush.msra.mxu0 %v2028
    %2246 = vmatpush.msra.mxu0 %v2025
    %2247 = vmatmul.f32.gmra.mxu0 %v2203
    %v2248 = vpop.f32.mrf.mxu0
    %v2249 = vadd.f32 %v2197, %v2248
    %2250 = vmatmul.f32.gmra.mxu0 %v2206
    %v2251 = vpop.f32.mrf.mxu0
    %v2252 = vadd.f32 %v2200, %v2251
    %2253 = vdwg.mxu0
    %v2254 = vadd.s32 %v1904, 1
    %v2255 = vadd.s32 %v1905, 1
    %v2256 = vadd.s32 %v1906, 1
    %v2257 = vadd.s32 %v1907, 1
    %v2258 = vadd.s32 %v1908, 1
    %vm2259 = vcmp.eq.s32.totalorder %v1903, %v1692
    %vm2260 = vcmp.eq.s32.totalorder %v1903, %v1693
    %vm2261 = vcmp.eq.s32.totalorder %v1903, %v1694
    %vm2262 = vcmp.eq.s32.totalorder %v1903, %v1695
    %vm2263 = vcmp.eq.s32.totalorder %v1903, %v1696
    %vm2264 = vcmp.eq.s32.totalorder %v179, %v2254
    %vm2265 = vcmp.eq.s32.totalorder %v1903, %v2254
    %vm2266 = vcmp.eq.s32.totalorder %v179, %v2255
    %vm2267 = vcmp.eq.s32.totalorder %v1903, %v2255
    %vm2268 = vcmp.eq.s32.totalorder %v179, %v2256
    %vm2269 = vcmp.eq.s32.totalorder %v1903, %v2256
    %vm2270 = vcmp.eq.s32.totalorder %v179, %v2257
    %vm2271 = vcmp.eq.s32.totalorder %v1903, %v2257
    %vm2272 = vcmp.eq.s32.totalorder %v179, %v2258
    %vm2273 = vcmp.eq.s32.totalorder %v1903, %v2258
    %v2274 = vsel %vm2259, 1, 0
    %v2275 = vsel %vm2260, 1, 0
    %v2276 = vsel %vm2261, 1, 0
    %v2277 = vsel %vm2262, 1, 0
    %v2278 = vsel %vm2263, 1, 0
    %v2279 = vsel %vm2264, 1, 0
    %v2280 = vsel %vm2265, 1, 0
    %v2281 = vsel %vm2266, 1, 0
    %v2282 = vsel %vm2267, 1, 0
    %v2283 = vsel %vm2268, 1, 0
    %v2284 = vsel %vm2269, 1, 0
    %v2285 = vsel %vm2270, 1, 0
    %v2286 = vsel %vm2271, 1, 0
    %v2287 = vsel %vm2272, 1, 0
    %v2288 = vsel %vm2273, 1, 0
    %v2289 = vcvt.s32.f32 %v2274
    %v2290 = vcvt.s32.f32 %v2275
    %v2291 = vcvt.s32.f32 %v2276
    %v2292 = vcvt.s32.f32 %v2277
    %v2293 = vcvt.s32.f32 %v2278
    %v2294 = vcvt.s32.f32 %v2279
    %v2295 = vcvt.s32.f32 %v2280
    %v2296 = vcvt.s32.f32 %v2281
    %v2297 = vcvt.s32.f32 %v2282
    %v2298 = vcvt.s32.f32 %v2283
    %v2299 = vcvt.s32.f32 %v2284
    %v2300 = vcvt.s32.f32 %v2285
    %v2301 = vcvt.s32.f32 %v2286
    %v2302 = vcvt.s32.f32 %v2287
    %v2303 = vcvt.s32.f32 %v2288
    %v2305 = vsel %vm1971, %v2302, 0
    %v2308 = vsel %vm1971, %v2303, 0
    %2310 = vmatpush.msra.mxu0 0.0
    %2311 = vmatpush.msra.mxu0 0.0
    %2312 = vmatpush.msra.mxu0 0.0
    %2313 = vmatpush.msra.mxu0 0.0
    %2314 = vmatpush.msra.mxu0 0.0
    %2315 = vmatpush.msra.mxu0 0.0
    %2316 = vmatpush.msra.mxu0 %v2305
    %2317 = vmatpush.msra.mxu0 %v2300
    %2318 = vmatpush.msra.mxu0 %v2298
    %2319 = vmatpush.msra.mxu0 %v2296
    %2320 = vmatpush.msra.mxu0 %v2294
    %2321 = vmatpush.msra.mxu0 %v1711
    %2322 = vmatpush.msra.mxu0 %v1710
    %2323 = vmatpush.msra.mxu0 %v1709
    %2324 = vmatpush.msra.mxu0 %v1708
    %2325 = vmatpush.msra.mxu0 %v1707
    %2326 = vmatmul.f32.gmra.mxu0 %v1960
    %v2327 = vpop.f32.mrf.mxu0
    %v2328 = vadd.f32 0.0, %v2327
    %2329 = vmatmul.f32.gmra.mxu0 %v1963
    %v2330 = vpop.f32.mrf.mxu0
    %v2331 = vadd.f32 0.0, %v2330
    %2332 = vmatmul.f32.gmra.mxu0 %v1966
    %v2333 = vpop.f32.mrf.mxu0
    %v2334 = vadd.f32 0.0, %v2333
    %2335 = vmatmul.f32.gmra.mxu0 %v1969
    %v2336 = vpop.f32.mrf.mxu0
    %v2337 = vadd.f32 0.0, %v2336
    %2338 = vdwg.mxu0
    %2339 = vmatpush.msra.mxu0 0.0
    %2340 = vmatpush.msra.mxu0 0.0
    %2341 = vmatpush.msra.mxu0 0.0
    %2342 = vmatpush.msra.mxu0 0.0
    %2343 = vmatpush.msra.mxu0 0.0
    %2344 = vmatpush.msra.mxu0 0.0
    %2345 = vmatpush.msra.mxu0 %v2308
    %2346 = vmatpush.msra.mxu0 %v2301
    %2347 = vmatpush.msra.mxu0 %v2299
    %2348 = vmatpush.msra.mxu0 %v2297
    %2349 = vmatpush.msra.mxu0 %v2295
    %2350 = vmatpush.msra.mxu0 %v2293
    %2351 = vmatpush.msra.mxu0 %v2292
    %2352 = vmatpush.msra.mxu0 %v2291
    %2353 = vmatpush.msra.mxu0 %v2290
    %2354 = vmatpush.msra.mxu0 %v2289
    %2355 = vmatmul.f32.gmra.mxu0 %v1960
    %v2356 = vpop.f32.mrf.mxu0
    %v2357 = vadd.f32 0.0, %v2356
    %2358 = vmatmul.f32.gmra.mxu0 %v1963
    %v2359 = vpop.f32.mrf.mxu0
    %v2360 = vadd.f32 0.0, %v2359
    %2361 = vmatmul.f32.gmra.mxu0 %v1966
    %v2362 = vpop.f32.mrf.mxu0
    %v2363 = vadd.f32 0.0, %v2362
    %2364 = vmatmul.f32.gmra.mxu0 %v1969
    %v2365 = vpop.f32.mrf.mxu0
    %v2366 = vadd.f32 0.0, %v2365
    %2367 = vdwg.mxu0
    %s2368 = scalar_lea.vmem %s47, 32
    %v2369 = vld [vmem:[%s2368] sm:$0xff]
    %v2370 = vld [vmem:[%s2368 + $0x8] sm:$0xff]
    %v2372 = vsel %vm1120, %v2369, 0
    %v2375 = vsel %vm1120, %v2370, 0
    %2377 = vmatpush.msra.mxu0 0.0
    %2378 = vmatpush.msra.mxu0 0.0
    %2379 = vmatpush.msra.mxu0 0.0
    %2380 = vmatpush.msra.mxu0 0.0
    %2381 = vmatpush.msra.mxu0 0.0
    %2382 = vmatpush.msra.mxu0 0.0
    %2383 = vmatpush.msra.mxu0 0.0
    %2384 = vmatpush.msra.mxu0 0.0
    %2385 = vmatpush.msra.mxu0 0.0
    %2386 = vmatpush.msra.mxu0 0.0
    %2387 = vmatpush.msra.mxu0 0.0
    %2388 = vmatpush.msra.mxu0 0.0
    %2389 = vmatpush.msra.mxu0 %v2337
    %2390 = vmatpush.msra.mxu0 %v2334
    %2391 = vmatpush.msra.mxu0 %v2331
    %2392 = vmatpush.msra.mxu0 %v2328
    %2393 = vmatmul.f32.gmra.mxu0 %v2372
    %v2394 = vpop.f32.mrf.mxu0
    %v2395 = vadd.f32 0.0, %v2394
    %2396 = vmatmul.f32.gmra.mxu0 %v2375
    %v2397 = vpop.f32.mrf.mxu0
    %v2398 = vadd.f32 0.0, %v2397
    %2399 = vdwg.mxu0
    %2400 = vmatpush.msra.mxu0 0.0
    %2401 = vmatpush.msra.mxu0 0.0
    %2402 = vmatpush.msra.mxu0 0.0
    %2403 = vmatpush.msra.mxu0 0.0
    %2404 = vmatpush.msra.mxu0 0.0
    %2405 = vmatpush.msra.mxu0 0.0
    %2406 = vmatpush.msra.mxu0 0.0
    %2407 = vmatpush.msra.mxu0 0.0
    %2408 = vmatpush.msra.mxu0 0.0
    %2409 = vmatpush.msra.mxu0 0.0
    %2410 = vmatpush.msra.mxu0 0.0
    %2411 = vmatpush.msra.mxu0 0.0
    %2412 = vmatpush.msra.mxu0 %v2366
    %2413 = vmatpush.msra.mxu0 %v2363
    %2414 = vmatpush.msra.mxu0 %v2360
    %2415 = vmatpush.msra.mxu0 %v2357
    %2416 = vmatmul.f32.gmra.mxu0 %v2372
    %v2417 = vpop.f32.mrf.mxu0
    %v2418 = vadd.f32 0.0, %v2417
    %2419 = vmatmul.f32.gmra.mxu0 %v2375
    %v2420 = vpop.f32.mrf.mxu0
    %v2421 = vadd.f32 0.0, %v2420
    %2422 = vdwg.mxu0
    %v2423 = vadd.f32 %v2226, %v2395
    %v2424 = vadd.f32 %v2249, %v2418
    %v2425 = vadd.f32 %v2229, %v2398
    %v2426 = vadd.f32 %v2252, %v2421
    %vm2427 = vcmask 179200
    %v2428 = vsel %vm2427, %v2424, 0.0
    %v2429 = vadd.f32 %v2423, %v2428
    %2430 = vadd.xlane.f32.xlu0 %v2429
    %v2431 = vpop.xlane.xlu0 %2430
    %v2432 = vsel %vm2427, %v2426, 0.0
    %v2433 = vadd.f32 %v2425, %v2432
    %2434 = vadd.xlane.f32.xlu0 %v2433
    %v2435 = vpop.xlane.xlu0 %2434
    %v2436 = vmul.f32 %v2423, %v2423
    %v2437 = vmul.f32 %v2424, %v2424
    %v2438 = vmul.f32 %v2425, %v2425
    %v2439 = vmul.f32 %v2426, %v2426
    %v2440 = vsel %vm2427, %v2437, 0.0
    %v2441 = vadd.f32 %v2436, %v2440
    %2442 = vadd.xlane.f32.xlu0 %v2441
    %v2443 = vpop.xlane.xlu0 %2442
    %v2444 = vsel %vm2427, %v2439, 0.0
    %v2445 = vadd.f32 %v2438, %v2444
    %2446 = vadd.xlane.f32.xlu0 %v2445
    %v2447 = vpop.xlane.xlu0 %2446
    %v2448 = vadd.f32 %v2431, %v2435
    %v2449 = vadd.f32 %v2443, %v2447
    %v2450 = vmul.f32 %v2448, 0.0033333334
    %v2451 = vmul.f32 %v2449, 0.0033333334
    %v2452 = vmul.f32 %v2450, %v2450
    %v2453 = vsub.f32 %v2451, %v2452
    %v2454 = vmax.f32 %v2453, 0.0
    %v2455 = vld [vmem:[%s49] sm:$0xff]
    %v2456 = vadd.f32 %v2454, 1e-05
    %v2457 = vrsqrt.pop %v2456
    %v2458 = vmul.f32 %v2457, %v2456
    %v2459 = vmul.f32 %v2458, %v2457
    %v2460 = vmul.f32 0.5, %v2459
    %v2461 = vsub.f32 1.5, %v2460
    %v2462 = vmul.f32 %v2457, %v2461
    %vm2463 = vweird.f32 %v2456
    %vm2464 = vweird.f32 %v2457
    %vm2465 = vmor %vm2463, %vm2464
    %v2466 = vsel %vm2465, %v2457, %v2462
    %v2467 = vmul.f32 %v2455, %v2466
    %v2468 = vld [vmem:[%s51] sm:$0xff]
    %v2469 = vmul.f32 %v2450, %v2467
    %v2470 = vsub.f32 %v2468, %v2469
    %2472 = vset.pattern.permute.xlu0 0
    %2473 = vperm.xlu0 %2472, %v2467
    %v2474 = vpop.permute.xlu0 %2473
    %v2476 = vmul.f32 %v2423, %v2474
    %v2477 = vmul.f32 %v2424, %v2474
    %v2478 = vmul.f32 %v2425, %v2474
    %v2479 = vmul.f32 %v2426, %v2474
    %2481 = vset.pattern.permute.xlu0 0
    %2482 = vperm.xlu0 %2481, %v2470
    %v2483 = vpop.permute.xlu0 %2482
    %v2485 = vadd.f32 %v2476, %v2483
    %v2486 = vadd.f32 %v2477, %v2483
    %v2487 = vadd.f32 %v2478, %v2483
    %v2488 = vadd.f32 %v2479, %v2483
    %vm2489 = vcmp.ge.f32.partialorder %v2485, 0.0
    %vm2490 = vcmp.ge.f32.partialorder %v2486, 0.0
    %vm2491 = vcmp.ge.f32.partialorder %v2487, 0.0
    %vm2492 = vcmp.ge.f32.partialorder %v2488, 0.0
    %v2493 = vmul.f32 %v2485, 0.2
    %v2494 = vmul.f32 %v2486, 0.2
    %v2495 = vmul.f32 %v2487, 0.2
    %v2496 = vmul.f32 %v2488, 0.2
    %v2497 = vsel %vm2489, %v2485, %v2493
    %v2498 = vsel %vm2490, %v2486, %v2494
    %v2499 = vsel %vm2491, %v2487, %v2495
    %v2500 = vsel %vm2492, %v2488, %v2496
    %v2501 = vadd.s32 %v179, 256
    %v2502 = vmul.u32 %v158, 2
    %v2503 = vmul.u32 %v159, 2
    %v2504 = vmul.u32 %v160, 2
    %v2505 = vmul.u32 %v161, 2
    %v2506 = vmul.u32 %v162, 2
    %v2507 = vmul.u32 %v163, 2
    %v2508 = vmul.u32 %v164, 2
    %v2509 = vmul.u32 %v165, 2
    %v2510 = vmul.u32 %v166, 2
    %v2511 = vadd.s32 %v2502, 4294967295
    %v2512 = vadd.s32 %v2503, 4294967295
    %v2513 = vadd.s32 %v2504, 4294967295
    %v2514 = vadd.s32 %v2505, 4294967295
    %v2515 = vadd.s32 %v2506, 4294967295
    %v2516 = vadd.s32 %v2507, 4294967295
    %v2517 = vadd.s32 %v2508, 4294967295
    %v2518 = vadd.s32 %v2509, 4294967295
    %v2519 = vadd.s32 %v2510, 4294967295
    %vm2520 = vcmp.eq.s32.totalorder %v2501, %v1510
    %vm2521 = vcmp.eq.s32.totalorder %v2501, %v1511
    %vm2522 = vcmp.eq.s32.totalorder %v2501, %v1512
    %vm2523 = vcmp.eq.s32.totalorder %v2501, %v1513
    %vm2524 = vcmp.eq.s32.totalorder %v2501, %v1514
    %vm2525 = vcmp.eq.s32.totalorder %v2501, %v1909
    %vm2526 = vcmp.eq.s32.totalorder %v2501, %v1910
    %vm2527 = vcmp.eq.s32.totalorder %v2501, %v1911
    %vm2528 = vcmp.eq.s32.totalorder %v2501, %v1912
    %vm2529 = vcmp.eq.s32.totalorder %v2501, %v1913
    %vm2530 = vcmp.eq.s32.totalorder %v179, %v2511
    %vm2531 = vcmp.eq.s32.totalorder %v1903, %v2511
    %vm2532 = vcmp.eq.s32.totalorder %v2501, %v2511
    %vm2533 = vcmp.eq.s32.totalorder %v179, %v2512
    %vm2534 = vcmp.eq.s32.totalorder %v1903, %v2512
    %vm2535 = vcmp.eq.s32.totalorder %v2501, %v2512
    %vm2536 = vcmp.eq.s32.totalorder %v179, %v2513
    %vm2537 = vcmp.eq.s32.totalorder %v1903, %v2513
    %vm2538 = vcmp.eq.s32.totalorder %v2501, %v2513
    %vm2539 = vcmp.eq.s32.totalorder %v179, %v2514
    %vm2540 = vcmp.eq.s32.totalorder %v1903, %v2514
    %vm2541 = vcmp.eq.s32.totalorder %v2501, %v2514
    %vm2542 = vcmp.eq.s32.totalorder %v179, %v2515
    %vm2543 = vcmp.eq.s32.totalorder %v1903, %v2515
    %vm2544 = vcmp.eq.s32.totalorder %v2501, %v2515
    %vm2545 = vcmp.eq.s32.totalorder %v179, %v2516
    %vm2546 = vcmp.eq.s32.totalorder %v1903, %v2516
    %vm2547 = vcmp.eq.s32.totalorder %v2501, %v2516
    %vm2548 = vcmp.eq.s32.totalorder %v179, %v2517
    %vm2549 = vcmp.eq.s32.totalorder %v1903, %v2517
    %vm2550 = vcmp.eq.s32.totalorder %v2501, %v2517
    %vm2551 = vcmp.eq.s32.totalorder %v179, %v2518
    %vm2552 = vcmp.eq.s32.totalorder %v1903, %v2518
    %vm2553 = vcmp.eq.s32.totalorder %v2501, %v2518
    %vm2554 = vcmp.eq.s32.totalorder %v179, %v2519
    %vm2555 = vcmp.eq.s32.totalorder %v1903, %v2519
    %vm2556 = vcmp.eq.s32.totalorder %v2501, %v2519
    %v2557 = vsel %vm2520, 1, 0
    %v2558 = vsel %vm2521, 1, 0
    %v2559 = vsel %vm2522, 1, 0
    %v2560 = vsel %vm2523, 1, 0
    %v2561 = vsel %vm2524, 1, 0
    %v2562 = vsel %vm2525, 1, 0
    %v2563 = vsel %vm2526, 1, 0
    %v2564 = vsel %vm2527, 1, 0
    %v2565 = vsel %vm2528, 1, 0
    %v2566 = vsel %vm2529, 1, 0
    %v2567 = vsel %vm2530, 1, 0
    %v2568 = vsel %vm2531, 1, 0
    %v2569 = vsel %vm2532, 1, 0
    %v2570 = vsel %vm2533, 1, 0
    %v2571 = vsel %vm2534, 1, 0
    %v2572 = vsel %vm2535, 1, 0
    %v2573 = vsel %vm2536, 1, 0
    %v2574 = vsel %vm2537, 1, 0
    %v2575 = vsel %vm2538, 1, 0
    %v2576 = vsel %vm2539, 1, 0
    %v2577 = vsel %vm2540, 1, 0
    %v2578 = vsel %vm2541, 1, 0
    %v2579 = vsel %vm2542, 1, 0
    %v2580 = vsel %vm2543, 1, 0
    %v2581 = vsel %vm2544, 1, 0
    %v2582 = vsel %vm2545, 1, 0
    %v2583 = vsel %vm2546, 1, 0
    %v2584 = vsel %vm2547, 1, 0
    %v2585 = vsel %vm2548, 1, 0
    %v2586 = vsel %vm2549, 1, 0
    %v2587 = vsel %vm2550, 1, 0
    %v2588 = vsel %vm2551, 1, 0
    %v2589 = vsel %vm2552, 1, 0
    %v2590 = vsel %vm2553, 1, 0
    %v2591 = vsel %vm2554, 1, 0
    %v2592 = vsel %vm2555, 1, 0
    %v2593 = vsel %vm2556, 1, 0
    %v2594 = vcvt.s32.f32 %v2557
    %v2595 = vcvt.s32.f32 %v2558
    %v2596 = vcvt.s32.f32 %v2559
    %v2597 = vcvt.s32.f32 %v2560
    %v2598 = vcvt.s32.f32 %v2561
    %v2599 = vcvt.s32.f32 %v2562
    %v2600 = vcvt.s32.f32 %v2563
    %v2601 = vcvt.s32.f32 %v2564
    %v2602 = vcvt.s32.f32 %v2565
    %v2603 = vcvt.s32.f32 %v2566
    %v2604 = vcvt.s32.f32 %v2567
    %v2605 = vcvt.s32.f32 %v2568
    %v2606 = vcvt.s32.f32 %v2569
    %v2607 = vcvt.s32.f32 %v2570
    %v2608 = vcvt.s32.f32 %v2571
    %v2609 = vcvt.s32.f32 %v2572
    %v2610 = vcvt.s32.f32 %v2573
    %v2611 = vcvt.s32.f32 %v2574
    %v2612 = vcvt.s32.f32 %v2575
    %v2613 = vcvt.s32.f32 %v2576
    %v2614 = vcvt.s32.f32 %v2577
    %v2615 = vcvt.s32.f32 %v2578
    %v2616 = vcvt.s32.f32 %v2579
    %v2617 = vcvt.s32.f32 %v2580
    %v2618 = vcvt.s32.f32 %v2581
    %v2619 = vcvt.s32.f32 %v2582
    %v2620 = vcvt.s32.f32 %v2583
    %v2621 = vcvt.s32.f32 %v2584
    %v2622 = vcvt.s32.f32 %v2585
    %v2623 = vcvt.s32.f32 %v2586
    %v2624 = vcvt.s32.f32 %v2587
    %v2625 = vcvt.s32.f32 %v2588
    %v2626 = vcvt.s32.f32 %v2589
    %v2627 = vcvt.s32.f32 %v2590
    %v2628 = vcvt.s32.f32 %v2591
    %v2629 = vcvt.s32.f32 %v2592
    %v2630 = vcvt.s32.f32 %v2593
    %v2632 = vsel %vm2427, %v2498, 0
    %v2635 = vsel %vm2427, %v2500, 0
    %v2638 = vsel %vm1298, %v2628, 0
    %v2641 = vsel %vm1298, %v2629, 0
    %v2644 = vsel %vm1298, %v2630, 0
    %2646 = vmatpush.msra.mxu0 %v2619
    %2647 = vmatpush.msra.mxu0 %v2616
    %2648 = vmatpush.msra.mxu0 %v2613
    %2649 = vmatpush.msra.mxu0 %v2610
    %2650 = vmatpush.msra.mxu0 %v2607
    %2651 = vmatpush.msra.mxu0 %v2604
    %2652 = vmatpush.msra.mxu0 %v1957
    %2653 = vmatpush.msra.mxu0 %v1955
    %2654 = vmatpush.msra.mxu0 %v1953
    %2655 = vmatpush.msra.mxu0 %v1951
    %2656 = vmatpush.msra.mxu0 %v1949
    %2657 = vmatpush.msra.mxu0 %v1529
    %2658 = vmatpush.msra.mxu0 %v1528
    %2659 = vmatpush.msra.mxu0 %v1527
    %2660 = vmatpush.msra.mxu0 %v1526
    %2661 = vmatpush.msra.mxu0 %v1525
    %2662 = vmatmul.f32.gmra.mxu0 %v2497
    %v2663 = vpop.f32.mrf.mxu0
    %v2664 = vadd.f32 0.0, %v2663
    %2665 = vmatmul.f32.gmra.mxu0 %v2499
    %v2666 = vpop.f32.mrf.mxu0
    %v2667 = vadd.f32 0.0, %v2666
    %2668 = vdwg.mxu0
    %2669 = vmatpush.msra.mxu0 0.0
    %2670 = vmatpush.msra.mxu0 0.0
    %2671 = vmatpush.msra.mxu0 0.0
    %2672 = vmatpush.msra.mxu0 0.0
    %2673 = vmatpush.msra.mxu0 0.0
    %2674 = vmatpush.msra.mxu0 0.0
    %2675 = vmatpush.msra.mxu0 0.0
    %2676 = vmatpush.msra.mxu0 0.0
    %2677 = vmatpush.msra.mxu0 0.0
    %2678 = vmatpush.msra.mxu0 0.0
    %2679 = vmatpush.msra.mxu0 0.0
    %2680 = vmatpush.msra.mxu0 0.0
    %2681 = vmatpush.msra.mxu0 0.0
    %2682 = vmatpush.msra.mxu0 %v2638
    %2683 = vmatpush.msra.mxu0 %v2625
    %2684 = vmatpush.msra.mxu0 %v2622
    %2685 = vmatmul.f32.gmra.mxu0 %v2632
    %v2686 = vpop.f32.mrf.mxu0
    %v2687 = vadd.f32 %v2664, %v2686
    %2688 = vmatmul.f32.gmra.mxu0 %v2635
    %v2689 = vpop.f32.mrf.mxu0
    %v2690 = vadd.f32 %v2667, %v2689
    %2691 = vdwg.mxu0
    %2692 = vmatpush.msra.mxu0 %v2620
    %2693 = vmatpush.msra.mxu0 %v2617
    %2694 = vmatpush.msra.mxu0 %v2614
    %2695 = vmatpush.msra.mxu0 %v2611
    %2696 = vmatpush.msra.mxu0 %v2608
    %2697 = vmatpush.msra.mxu0 %v2605
    %2698 = vmatpush.msra.mxu0 %v1958
    %2699 = vmatpush.msra.mxu0 %v1956
    %2700 = vmatpush.msra.mxu0 %v1954
    %2701 = vmatpush.msra.mxu0 %v1952
    %2702 = vmatpush.msra.mxu0 %v1950
    %2703 = vmatpush.msra.mxu0 %v1948
    %2704 = vmatpush.msra.mxu0 %v1947
    %2705 = vmatpush.msra.mxu0 %v1946
    %2706 = vmatpush.msra.mxu0 %v1945
    %2707 = vmatpush.msra.mxu0 %v1944
    %2708 = vmatmul.f32.gmra.mxu0 %v2497
    %v2709 = vpop.f32.mrf.mxu0
    %v2710 = vadd.f32 0.0, %v2709
    %2711 = vmatmul.f32.gmra.mxu0 %v2499
    %v2712 = vpop.f32.mrf.mxu0
    %v2713 = vadd.f32 0.0, %v2712
    %2714 = vdwg.mxu0
    %2715 = vmatpush.msra.mxu0 0.0
    %2716 = vmatpush.msra.mxu0 0.0
    %2717 = vmatpush.msra.mxu0 0.0
    %2718 = vmatpush.msra.mxu0 0.0
    %2719 = vmatpush.msra.mxu0 0.0
    %2720 = vmatpush.msra.mxu0 0.0
    %2721 = vmatpush.msra.mxu0 0.0
    %2722 = vmatpush.msra.mxu0 0.0
    %2723 = vmatpush.msra.mxu0 0.0
    %2724 = vmatpush.msra.mxu0 0.0
    %2725 = vmatpush.msra.mxu0 0.0
    %2726 = vmatpush.msra.mxu0 0.0
    %2727 = vmatpush.msra.mxu0 0.0
    %2728 = vmatpush.msra.mxu0 %v2641
    %2729 = vmatpush.msra.mxu0 %v2626
    %2730 = vmatpush.msra.mxu0 %v2623
    %2731 = vmatmul.f32.gmra.mxu0 %v2632
    %v2732 = vpop.f32.mrf.mxu0
    %v2733 = vadd.f32 %v2710, %v2732
    %2734 = vmatmul.f32.gmra.mxu0 %v2635
    %v2735 = vpop.f32.mrf.mxu0
    %v2736 = vadd.f32 %v2713, %v2735
    %2737 = vdwg.mxu0
    %2738 = vmatpush.msra.mxu0 %v2621
    %2739 = vmatpush.msra.mxu0 %v2618
    %2740 = vmatpush.msra.mxu0 %v2615
    %2741 = vmatpush.msra.mxu0 %v2612
    %2742 = vmatpush.msra.mxu0 %v2609
    %2743 = vmatpush.msra.mxu0 %v2606
    %2744 = vmatpush.msra.mxu0 %v2603
    %2745 = vmatpush.msra.mxu0 %v2602
    %2746 = vmatpush.msra.mxu0 %v2601
    %2747 = vmatpush.msra.mxu0 %v2600
    %2748 = vmatpush.msra.mxu0 %v2599
    %2749 = vmatpush.msra.mxu0 %v2598
    %2750 = vmatpush.msra.mxu0 %v2597
    %2751 = vmatpush.msra.mxu0 %v2596
    %2752 = vmatpush.msra.mxu0 %v2595
    %2753 = vmatpush.msra.mxu0 %v2594
    %2754 = vmatmul.f32.gmra.mxu0 %v2497
    %v2755 = vpop.f32.mrf.mxu0
    %v2756 = vadd.f32 0.0, %v2755
    %2757 = vmatmul.f32.gmra.mxu0 %v2499
    %v2758 = vpop.f32.mrf.mxu0
    %v2759 = vadd.f32 0.0, %v2758
    %2760 = vdwg.mxu0
    %2761 = vmatpush.msra.mxu0 0.0
    %2762 = vmatpush.msra.mxu0 0.0
    %2763 = vmatpush.msra.mxu0 0.0
    %2764 = vmatpush.msra.mxu0 0.0
    %2765 = vmatpush.msra.mxu0 0.0
    %2766 = vmatpush.msra.mxu0 0.0
    %2767 = vmatpush.msra.mxu0 0.0
    %2768 = vmatpush.msra.mxu0 0.0
    %2769 = vmatpush.msra.mxu0 0.0
    %2770 = vmatpush.msra.mxu0 0.0
    %2771 = vmatpush.msra.mxu0 0.0
    %2772 = vmatpush.msra.mxu0 0.0
    %2773 = vmatpush.msra.mxu0 0.0
    %2774 = vmatpush.msra.mxu0 %v2644
    %2775 = vmatpush.msra.mxu0 %v2627
    %2776 = vmatpush.msra.mxu0 %v2624
    %2777 = vmatmul.f32.gmra.mxu0 %v2632
    %v2778 = vpop.f32.mrf.mxu0
    %v2779 = vadd.f32 %v2756, %v2778
    %2780 = vmatmul.f32.gmra.mxu0 %v2635
    %v2781 = vpop.f32.mrf.mxu0
    %v2782 = vadd.f32 %v2759, %v2781
    %2783 = vdwg.mxu0
    %v2784 = vld [vmem:[%s53] sm:$0x3]
    %vm2785 = vcmp.eq.s32.totalorder %v2501, %v1505
    %vm2786 = vcmp.eq.s32.totalorder %v2501, %v1506
    %vm2787 = vcmp.eq.s32.totalorder %v2501, %v1507
    %vm2788 = vcmp.eq.s32.totalorder %v2501, %v1508
    %vm2789 = vcmp.eq.s32.totalorder %v2501, %v1509
    %vm2790 = vcmp.eq.s32.totalorder %v2501, %v1904
    %vm2791 = vcmp.eq.s32.totalorder %v2501, %v1905
    %vm2792 = vcmp.eq.s32.totalorder %v2501, %v1906
    %vm2793 = vcmp.eq.s32.totalorder %v2501, %v1907
    %vm2794 = vcmp.eq.s32.totalorder %v2501, %v1908
    %vm2795 = vcmp.eq.s32.totalorder %v179, %v2502
    %vm2796 = vcmp.eq.s32.totalorder %v1903, %v2502
    %vm2797 = vcmp.eq.s32.totalorder %v2501, %v2502
    %vm2798 = vcmp.eq.s32.totalorder %v179, %v2503
    %vm2799 = vcmp.eq.s32.totalorder %v1903, %v2503
    %vm2800 = vcmp.eq.s32.totalorder %v2501, %v2503
    %vm2801 = vcmp.eq.s32.totalorder %v179, %v2504
    %vm2802 = vcmp.eq.s32.totalorder %v1903, %v2504
    %vm2803 = vcmp.eq.s32.totalorder %v2501, %v2504
    %vm2804 = vcmp.eq.s32.totalorder %v179, %v2505
    %vm2805 = vcmp.eq.s32.totalorder %v1903, %v2505
    %vm2806 = vcmp.eq.s32.totalorder %v2501, %v2505
    %vm2807 = vcmp.eq.s32.totalorder %v179, %v2506
    %vm2808 = vcmp.eq.s32.totalorder %v1903, %v2506
    %vm2809 = vcmp.eq.s32.totalorder %v2501, %v2506
    %vm2810 = vcmp.eq.s32.totalorder %v179, %v2507
    %vm2811 = vcmp.eq.s32.totalorder %v1903, %v2507
    %vm2812 = vcmp.eq.s32.totalorder %v2501, %v2507
    %vm2813 = vcmp.eq.s32.totalorder %v179, %v2508
    %vm2814 = vcmp.eq.s32.totalorder %v1903, %v2508
    %vm2815 = vcmp.eq.s32.totalorder %v2501, %v2508
    %vm2816 = vcmp.eq.s32.totalorder %v179, %v2509
    %vm2817 = vcmp.eq.s32.totalorder %v1903, %v2509
    %vm2818 = vcmp.eq.s32.totalorder %v2501, %v2509
    %vm2819 = vcmp.eq.s32.totalorder %v179, %v2510
    %vm2820 = vcmp.eq.s32.totalorder %v1903, %v2510
    %vm2821 = vcmp.eq.s32.totalorder %v2501, %v2510
    %v2822 = vsel %vm2785, 1, 0
    %v2823 = vsel %vm2786, 1, 0
    %v2824 = vsel %vm2787, 1, 0
    %v2825 = vsel %vm2788, 1, 0
    %v2826 = vsel %vm2789, 1, 0
    %v2827 = vsel %vm2790, 1, 0
    %v2828 = vsel %vm2791, 1, 0
    %v2829 = vsel %vm2792, 1, 0
    %v2830 = vsel %vm2793, 1, 0
    %v2831 = vsel %vm2794, 1, 0
    %v2832 = vsel %vm2795, 1, 0
    %v2833 = vsel %vm2796, 1, 0
    %v2834 = vsel %vm2797, 1, 0
    %v2835 = vsel %vm2798, 1, 0
    %v2836 = vsel %vm2799, 1, 0
    %v2837 = vsel %vm2800, 1, 0
    %v2838 = vsel %vm2801, 1, 0
    %v2839 = vsel %vm2802, 1, 0
    %v2840 = vsel %vm2803, 1, 0
    %v2841 = vsel %vm2804, 1, 0
    %v2842 = vsel %vm2805, 1, 0
    %v2843 = vsel %vm2806, 1, 0
    %v2844 = vsel %vm2807, 1, 0
    %v2845 = vsel %vm2808, 1, 0
    %v2846 = vsel %vm2809, 1, 0
    %v2847 = vsel %vm2810, 1, 0
    %v2848 = vsel %vm2811, 1, 0
    %v2849 = vsel %vm2812, 1, 0
    %v2850 = vsel %vm2813, 1, 0
    %v2851 = vsel %vm2814, 1, 0
    %v2852 = vsel %vm2815, 1, 0
    %v2853 = vsel %vm2816, 1, 0
    %v2854 = vsel %vm2817, 1, 0
    %v2855 = vsel %vm2818, 1, 0
    %v2856 = vsel %vm2819, 1, 0
    %v2857 = vsel %vm2820, 1, 0
    %v2858 = vsel %vm2821, 1, 0
    %v2859 = vcvt.s32.f32 %v2822
    %v2860 = vcvt.s32.f32 %v2823
    %v2861 = vcvt.s32.f32 %v2824
    %v2862 = vcvt.s32.f32 %v2825
    %v2863 = vcvt.s32.f32 %v2826
    %v2864 = vcvt.s32.f32 %v2827
    %v2865 = vcvt.s32.f32 %v2828
    %v2866 = vcvt.s32.f32 %v2829
    %v2867 = vcvt.s32.f32 %v2830
    %v2868 = vcvt.s32.f32 %v2831
    %v2869 = vcvt.s32.f32 %v2832
    %v2870 = vcvt.s32.f32 %v2833
    %v2871 = vcvt.s32.f32 %v2834
    %v2872 = vcvt.s32.f32 %v2835
    %v2873 = vcvt.s32.f32 %v2836
    %v2874 = vcvt.s32.f32 %v2837
    %v2875 = vcvt.s32.f32 %v2838
    %v2876 = vcvt.s32.f32 %v2839
    %v2877 = vcvt.s32.f32 %v2840
    %v2878 = vcvt.s32.f32 %v2841
    %v2879 = vcvt.s32.f32 %v2842
    %v2880 = vcvt.s32.f32 %v2843
    %v2881 = vcvt.s32.f32 %v2844
    %v2882 = vcvt.s32.f32 %v2845
    %v2883 = vcvt.s32.f32 %v2846
    %v2884 = vcvt.s32.f32 %v2847
    %v2885 = vcvt.s32.f32 %v2848
    %v2886 = vcvt.s32.f32 %v2849
    %v2887 = vcvt.s32.f32 %v2850
    %v2888 = vcvt.s32.f32 %v2851
    %v2889 = vcvt.s32.f32 %v2852
    %v2890 = vcvt.s32.f32 %v2853
    %v2891 = vcvt.s32.f32 %v2854
    %v2892 = vcvt.s32.f32 %v2855
    %v2893 = vcvt.s32.f32 %v2856
    %v2894 = vcvt.s32.f32 %v2857
    %v2895 = vcvt.s32.f32 %v2858
    %v2897 = vsel %vm1298, %v2893, 0
    %v2900 = vsel %vm1298, %v2894, 0
    %v2903 = vsel %vm1298, %v2895, 0
    %2905 = vmatpush.msra.mxu0 %v2884
    %2906 = vmatpush.msra.mxu0 %v2881
    %2907 = vmatpush.msra.mxu0 %v2878
    %2908 = vmatpush.msra.mxu0 %v2875
    %2909 = vmatpush.msra.mxu0 %v2872
    %2910 = vmatpush.msra.mxu0 %v2869
    %2911 = vmatpush.msra.mxu0 %v2081
    %2912 = vmatpush.msra.mxu0 %v2079
    %2913 = vmatpush.msra.mxu0 %v2077
    %2914 = vmatpush.msra.mxu0 %v2075
    %2915 = vmatpush.msra.mxu0 %v2073
    %2916 = vmatpush.msra.mxu0 %v1575
    %2917 = vmatpush.msra.mxu0 %v1574
    %2918 = vmatpush.msra.mxu0 %v1573
    %2919 = vmatpush.msra.mxu0 %v1572
    %2920 = vmatpush.msra.mxu0 %v1571
    %2921 = vmatmul.f32.gmra.mxu0 %v2497
    %v2922 = vpop.f32.mrf.mxu0
    %v2923 = vadd.f32 0.0, %v2922
    %2924 = vmatmul.f32.gmra.mxu0 %v2499
    %v2925 = vpop.f32.mrf.mxu0
    %v2926 = vadd.f32 0.0, %v2925
    %2927 = vdwg.mxu0
    %2928 = vmatpush.msra.mxu0 0.0
    %2929 = vmatpush.msra.mxu0 0.0
    %2930 = vmatpush.msra.mxu0 0.0
    %2931 = vmatpush.msra.mxu0 0.0
    %2932 = vmatpush.msra.mxu0 0.0
    %2933 = vmatpush.msra.mxu0 0.0
    %2934 = vmatpush.msra.mxu0 0.0
    %2935 = vmatpush.msra.mxu0 0.0
    %2936 = vmatpush.msra.mxu0 0.0
    %2937 = vmatpush.msra.mxu0 0.0
    %2938 = vmatpush.msra.mxu0 0.0
    %2939 = vmatpush.msra.mxu0 0.0
    %2940 = vmatpush.msra.mxu0 0.0
    %2941 = vmatpush.msra.mxu0 %v2897
    %2942 = vmatpush.msra.mxu0 %v2890
    %2943 = vmatpush.msra.mxu0 %v2887
    %2944 = vmatmul.f32.gmra.mxu0 %v2632
    %v2945 = vpop.f32.mrf.mxu0
    %v2946 = vadd.f32 %v2923, %v2945
    %2947 = vmatmul.f32.gmra.mxu0 %v2635
    %v2948 = vpop.f32.mrf.mxu0
    %v2949 = vadd.f32 %v2926, %v2948
    %2950 = vdwg.mxu0
    %2951 = vmatpush.msra.mxu0 %v2885
    %2952 = vmatpush.msra.mxu0 %v2882
    %2953 = vmatpush.msra.mxu0 %v2879
    %2954 = vmatpush.msra.mxu0 %v2876
    %2955 = vmatpush.msra.mxu0 %v2873
    %2956 = vmatpush.msra.mxu0 %v2870
    %2957 = vmatpush.msra.mxu0 %v2082
    %2958 = vmatpush.msra.mxu0 %v2080
    %2959 = vmatpush.msra.mxu0 %v2078
    %2960 = vmatpush.msra.mxu0 %v2076
    %2961 = vmatpush.msra.mxu0 %v2074
    %2962 = vmatpush.msra.mxu0 %v2072
    %2963 = vmatpush.msra.mxu0 %v2071
    %2964 = vmatpush.msra.mxu0 %v2070
    %2965 = vmatpush.msra.mxu0 %v2069
    %2966 = vmatpush.msra.mxu0 %v2068
    %2967 = vmatmul.f32.gmra.mxu0 %v2497
    %v2968 = vpop.f32.mrf.mxu0
    %v2969 = vadd.f32 0.0, %v2968
    %2970 = vmatmul.f32.gmra.mxu0 %v2499
    %v2971 = vpop.f32.mrf.mxu0
    %v2972 = vadd.f32 0.0, %v2971
    %2973 = vdwg.mxu0
    %2974 = vmatpush.msra.mxu0 0.0
    %2975 = vmatpush.msra.mxu0 0.0
    %2976 = vmatpush.msra.mxu0 0.0
    %2977 = vmatpush.msra.mxu0 0.0
    %2978 = vmatpush.msra.mxu0 0.0
    %2979 = vmatpush.msra.mxu0 0.0
    %2980 = vmatpush.msra.mxu0 0.0
    %2981 = vmatpush.msra.mxu0 0.0
    %2982 = vmatpush.msra.mxu0 0.0
    %2983 = vmatpush.msra.mxu0 0.0
    %2984 = vmatpush.msra.mxu0 0.0
    %2985 = vmatpush.msra.mxu0 0.0
    %2986 = vmatpush.msra.mxu0 0.0
    %2987 = vmatpush.msra.mxu0 %v2900
    %2988 = vmatpush.msra.mxu0 %v2891
    %2989 = vmatpush.msra.mxu0 %v2888
    %2990 = vmatmul.f32.gmra.mxu0 %v2632
    %v2991 = vpop.f32.mrf.mxu0
    %v2992 = vadd.f32 %v2969, %v2991
    %2993 = vmatmul.f32.gmra.mxu0 %v2635
    %v2994 = vpop.f32.mrf.mxu0
    %v2995 = vadd.f32 %v2972, %v2994
    %2996 = vdwg.mxu0
    %2997 = vmatpush.msra.mxu0 %v2886
    %2998 = vmatpush.msra.mxu0 %v2883
    %2999 = vmatpush.msra.mxu0 %v2880
    %3000 = vmatpush.msra.mxu0 %v2877
    %3001 = vmatpush.msra.mxu0 %v2874
    %3002 = vmatpush.msra.mxu0 %v2871
    %3003 = vmatpush.msra.mxu0 %v2868
    %3004 = vmatpush.msra.mxu0 %v2867
    %3005 = vmatpush.msra.mxu0 %v2866
    %3006 = vmatpush.msra.mxu0 %v2865
    %3007 = vmatpush.msra.mxu0 %v2864
    %3008 = vmatpush.msra.mxu0 %v2863
    %3009 = vmatpush.msra.mxu0 %v2862
    %3010 = vmatpush.msra.mxu0 %v2861
    %3011 = vmatpush.msra.mxu0 %v2860
    %3012 = vmatpush.msra.mxu0 %v2859
    %3013 = vmatmul.f32.gmra.mxu0 %v2497
    %v3014 = vpop.f32.mrf.mxu0
    %v3015 = vadd.f32 0.0, %v3014
    %3016 = vmatmul.f32.gmra.mxu0 %v2499
    %v3017 = vpop.f32.mrf.mxu0
    %v3018 = vadd.f32 0.0, %v3017
    %3019 = vdwg.mxu0
    %3020 = vmatpush.msra.mxu0 0.0
    %3021 = vmatpush.msra.mxu0 0.0
    %3022 = vmatpush.msra.mxu0 0.0
    %3023 = vmatpush.msra.mxu0 0.0
    %3024 = vmatpush.msra.mxu0 0.0
    %3025 = vmatpush.msra.mxu0 0.0
    %3026 = vmatpush.msra.mxu0 0.0
    %3027 = vmatpush.msra.mxu0 0.0
    %3028 = vmatpush.msra.mxu0 0.0
    %3029 = vmatpush.msra.mxu0 0.0
    %3030 = vmatpush.msra.mxu0 0.0
    %3031 = vmatpush.msra.mxu0 0.0
    %3032 = vmatpush.msra.mxu0 0.0
    %3033 = vmatpush.msra.mxu0 %v2903
    %3034 = vmatpush.msra.mxu0 %v2892
    %3035 = vmatpush.msra.mxu0 %v2889
    %3036 = vmatmul.f32.gmra.mxu0 %v2632
    %v3037 = vpop.f32.mrf.mxu0
    %v3038 = vadd.f32 %v3015, %v3037
    %3039 = vmatmul.f32.gmra.mxu0 %v2635
    %v3040 = vpop.f32.mrf.mxu0
    %v3041 = vadd.f32 %v3018, %v3040
    %3042 = vdwg.mxu0
    %s3043 = scalar_lea.vmem %s53, 2
    %v3044 = vld [vmem:[%s3043] sm:$0x3]
    %v3046 = vsel %vm769, %v3044, 0
    %3048 = vmatpush.msra.mxu0 0.0
    %3049 = vmatpush.msra.mxu0 0.0
    %3050 = vmatpush.msra.mxu0 0.0
    %3051 = vmatpush.msra.mxu0 0.0
    %3052 = vmatpush.msra.mxu0 0.0
    %3053 = vmatpush.msra.mxu0 0.0
    %3054 = vmatpush.msra.mxu0 0.0
    %3055 = vmatpush.msra.mxu0 0.0
    %3056 = vmatpush.msra.mxu0 0.0
    %3057 = vmatpush.msra.mxu0 0.0
    %3058 = vmatpush.msra.mxu0 0.0
    %3059 = vmatpush.msra.mxu0 0.0
    %3060 = vmatpush.msra.mxu0 0.0
    %3061 = vmatpush.msra.mxu0 0.0
    %3062 = vmatpush.msra.mxu0 %v2949
    %3063 = vmatpush.msra.mxu0 %v2946
    %3064 = vmatmul.f32.gmra.mxu0 %v3046
    %v3065 = vpop.f32.mrf.mxu0
    %v3066 = vadd.f32 0.0, %v3065
    %3067 = vdwg.mxu0
    %3068 = vmatpush.msra.mxu0 0.0
    %3069 = vmatpush.msra.mxu0 0.0
    %3070 = vmatpush.msra.mxu0 0.0
    %3071 = vmatpush.msra.mxu0 0.0
    %3072 = vmatpush.msra.mxu0 0.0
    %3073 = vmatpush.msra.mxu0 0.0
    %3074 = vmatpush.msra.mxu0 0.0
    %3075 = vmatpush.msra.mxu0 0.0
    %3076 = vmatpush.msra.mxu0 0.0
    %3077 = vmatpush.msra.mxu0 0.0
    %3078 = vmatpush.msra.mxu0 0.0
    %3079 = vmatpush.msra.mxu0 0.0
    %3080 = vmatpush.msra.mxu0 0.0
    %3081 = vmatpush.msra.mxu0 0.0
    %3082 = vmatpush.msra.mxu0 %v2995
    %3083 = vmatpush.msra.mxu0 %v2992
    %3084 = vmatmul.f32.gmra.mxu0 %v3046
    %v3085 = vpop.f32.mrf.mxu0
    %v3086 = vadd.f32 0.0, %v3085
    %3087 = vdwg.mxu0
    %3088 = vmatpush.msra.mxu0 0.0
    %3089 = vmatpush.msra.mxu0 0.0
    %3090 = vmatpush.msra.mxu0 0.0
    %3091 = vmatpush.msra.mxu0 0.0
    %3092 = vmatpush.msra.mxu0 0.0
    %3093 = vmatpush.msra.mxu0 0.0
    %3094 = vmatpush.msra.mxu0 0.0
    %3095 = vmatpush.msra.mxu0 0.0
    %3096 = vmatpush.msra.mxu0 0.0
    %3097 = vmatpush.msra.mxu0 0.0
    %3098 = vmatpush.msra.mxu0 0.0
    %3099 = vmatpush.msra.mxu0 0.0
    %3100 = vmatpush.msra.mxu0 0.0
    %3101 = vmatpush.msra.mxu0 0.0
    %3102 = vmatpush.msra.mxu0 %v3041
    %3103 = vmatpush.msra.mxu0 %v3038
    %3104 = vmatmul.f32.gmra.mxu0 %v3046
    %v3105 = vpop.f32.mrf.mxu0
    %v3106 = vadd.f32 0.0, %v3105
    %3107 = vdwg.mxu0
    %v3109 = vsel %vm769, %v2784, 0
    %3111 = vmatpush.msra.mxu0 0.0
    %3112 = vmatpush.msra.mxu0 0.0
    %3113 = vmatpush.msra.mxu0 0.0
    %3114 = vmatpush.msra.mxu0 0.0
    %3115 = vmatpush.msra.mxu0 0.0
    %3116 = vmatpush.msra.mxu0 0.0
    %3117 = vmatpush.msra.mxu0 0.0
    %3118 = vmatpush.msra.mxu0 0.0
    %3119 = vmatpush.msra.mxu0 0.0
    %3120 = vmatpush.msra.mxu0 0.0
    %3121 = vmatpush.msra.mxu0 0.0
    %3122 = vmatpush.msra.mxu0 0.0
    %3123 = vmatpush.msra.mxu0 0.0
    %3124 = vmatpush.msra.mxu0 0.0
    %3125 = vmatpush.msra.mxu0 %v2690
    %3126 = vmatpush.msra.mxu0 %v2687
    %3127 = vmatmul.f32.gmra.mxu0 %v3109
    %v3128 = vpop.f32.mrf.mxu0
    %v3129 = vadd.f32 %v3066, %v3128
    %3130 = vdwg.mxu0
    %3131 = vmatpush.msra.mxu0 0.0
    %3132 = vmatpush.msra.mxu0 0.0
    %3133 = vmatpush.msra.mxu0 0.0
    %3134 = vmatpush.msra.mxu0 0.0
    %3135 = vmatpush.msra.mxu0 0.0
    %3136 = vmatpush.msra.mxu0 0.0
    %3137 = vmatpush.msra.mxu0 0.0
    %3138 = vmatpush.msra.mxu0 0.0
    %3139 = vmatpush.msra.mxu0 0.0
    %3140 = vmatpush.msra.mxu0 0.0
    %3141 = vmatpush.msra.mxu0 0.0
    %3142 = vmatpush.msra.mxu0 0.0
    %3143 = vmatpush.msra.mxu0 0.0
    %3144 = vmatpush.msra.mxu0 0.0
    %3145 = vmatpush.msra.mxu0 %v2736
    %3146 = vmatpush.msra.mxu0 %v2733
    %3147 = vmatmul.f32.gmra.mxu0 %v3109
    %v3148 = vpop.f32.mrf.mxu0
    %v3149 = vadd.f32 %v3086, %v3148
    %3150 = vdwg.mxu0
    %3151 = vmatpush.msra.mxu0 0.0
    %3152 = vmatpush.msra.mxu0 0.0
    %3153 = vmatpush.msra.mxu0 0.0
    %3154 = vmatpush.msra.mxu0 0.0
    %3155 = vmatpush.msra.mxu0 0.0
    %3156 = vmatpush.msra.mxu0 0.0
    %3157 = vmatpush.msra.mxu0 0.0
    %3158 = vmatpush.msra.mxu0 0.0
    %3159 = vmatpush.msra.mxu0 0.0
    %3160 = vmatpush.msra.mxu0 0.0
    %3161 = vmatpush.msra.mxu0 0.0
    %3162 = vmatpush.msra.mxu0 0.0
    %3163 = vmatpush.msra.mxu0 0.0
    %3164 = vmatpush.msra.mxu0 0.0
    %3165 = vmatpush.msra.mxu0 %v2782
    %3166 = vmatpush.msra.mxu0 %v2779
    %3167 = vmatmul.f32.gmra.mxu0 %v3109
    %v3168 = vpop.f32.mrf.mxu0
    %v3169 = vadd.f32 %v3106, %v3168
    %3170 = vdwg.mxu0
    %v3171 = vadd.s32 %v2502, 1
    %v3172 = vadd.s32 %v2503, 1
    %v3173 = vadd.s32 %v2504, 1
    %v3174 = vadd.s32 %v2505, 1
    %v3175 = vadd.s32 %v2506, 1
    %v3176 = vadd.s32 %v2507, 1
    %v3177 = vadd.s32 %v2508, 1
    %v3178 = vadd.s32 %v2509, 1
    %v3179 = vadd.s32 %v2510, 1
    %vm3180 = vcmp.eq.s32.totalorder %v2501, %v1692
    %vm3181 = vcmp.eq.s32.totalorder %v2501, %v1693
    %vm3182 = vcmp.eq.s32.totalorder %v2501, %v1694
    %vm3183 = vcmp.eq.s32.totalorder %v2501, %v1695
    %vm3184 = vcmp.eq.s32.totalorder %v2501, %v1696
    %vm3185 = vcmp.eq.s32.totalorder %v2501, %v2254
    %vm3186 = vcmp.eq.s32.totalorder %v2501, %v2255
    %vm3187 = vcmp.eq.s32.totalorder %v2501, %v2256
    %vm3188 = vcmp.eq.s32.totalorder %v2501, %v2257
    %vm3189 = vcmp.eq.s32.totalorder %v2501, %v2258
    %vm3190 = vcmp.eq.s32.totalorder %v179, %v3171
    %vm3191 = vcmp.eq.s32.totalorder %v1903, %v3171
    %vm3192 = vcmp.eq.s32.totalorder %v2501, %v3171
    %vm3193 = vcmp.eq.s32.totalorder %v179, %v3172
    %vm3194 = vcmp.eq.s32.totalorder %v1903, %v3172
    %vm3195 = vcmp.eq.s32.totalorder %v2501, %v3172
    %vm3196 = vcmp.eq.s32.totalorder %v179, %v3173
    %vm3197 = vcmp.eq.s32.totalorder %v1903, %v3173
    %vm3198 = vcmp.eq.s32.totalorder %v2501, %v3173
    %vm3199 = vcmp.eq.s32.totalorder %v179, %v3174
    %vm3200 = vcmp.eq.s32.totalorder %v1903, %v3174
    %vm3201 = vcmp.eq.s32.totalorder %v2501, %v3174
    %vm3202 = vcmp.eq.s32.totalorder %v179, %v3175
    %vm3203 = vcmp.eq.s32.totalorder %v1903, %v3175
    %vm3204 = vcmp.eq.s32.totalorder %v2501, %v3175
    %vm3205 = vcmp.eq.s32.totalorder %v179, %v3176
    %vm3206 = vcmp.eq.s32.totalorder %v1903, %v3176
    %vm3207 = vcmp.eq.s32.totalorder %v2501, %v3176
    %vm3208 = vcmp.eq.s32.totalorder %v179, %v3177
    %vm3209 = vcmp.eq.s32.totalorder %v1903, %v3177
    %vm3210 = vcmp.eq.s32.totalorder %v2501, %v3177
    %vm3211 = vcmp.eq.s32.totalorder %v179, %v3178
    %vm3212 = vcmp.eq.s32.totalorder %v1903, %v3178
    %vm3213 = vcmp.eq.s32.totalorder %v2501, %v3178
    %vm3214 = vcmp.eq.s32.totalorder %v179, %v3179
    %vm3215 = vcmp.eq.s32.totalorder %v1903, %v3179
    %vm3216 = vcmp.eq.s32.totalorder %v2501, %v3179
    %v3217 = vsel %vm3180, 1, 0
    %v3218 = vsel %vm3181, 1, 0
    %v3219 = vsel %vm3182, 1, 0
    %v3220 = vsel %vm3183, 1, 0
    %v3221 = vsel %vm3184, 1, 0
    %v3222 = vsel %vm3185, 1, 0
    %v3223 = vsel %vm3186, 1, 0
    %v3224 = vsel %vm3187, 1, 0
    %v3225 = vsel %vm3188, 1, 0
    %v3226 = vsel %vm3189, 1, 0
    %v3227 = vsel %vm3190, 1, 0
    %v3228 = vsel %vm3191, 1, 0
    %v3229 = vsel %vm3192, 1, 0
    %v3230 = vsel %vm3193, 1, 0
    %v3231 = vsel %vm3194, 1, 0
    %v3232 = vsel %vm3195, 1, 0
    %v3233 = vsel %vm3196, 1, 0
    %v3234 = vsel %vm3197, 1, 0
    %v3235 = vsel %vm3198, 1, 0
    %v3236 = vsel %vm3199, 1, 0
    %v3237 = vsel %vm3200, 1, 0
    %v3238 = vsel %vm3201, 1, 0
    %v3239 = vsel %vm3202, 1, 0
    %v3240 = vsel %vm3203, 1, 0
    %v3241 = vsel %vm3204, 1, 0
    %v3242 = vsel %vm3205, 1, 0
    %v3243 = vsel %vm3206, 1, 0
    %v3244 = vsel %vm3207, 1, 0
    %v3245 = vsel %vm3208, 1, 0
    %v3246 = vsel %vm3209, 1, 0
    %v3247 = vsel %vm3210, 1, 0
    %v3248 = vsel %vm3211, 1, 0
    %v3249 = vsel %vm3212, 1, 0
    %v3250 = vsel %vm3213, 1, 0
    %v3251 = vsel %vm3214, 1, 0
    %v3252 = vsel %vm3215, 1, 0
    %v3253 = vsel %vm3216, 1, 0
    %v3254 = vcvt.s32.f32 %v3217
    %v3255 = vcvt.s32.f32 %v3218
    %v3256 = vcvt.s32.f32 %v3219
    %v3257 = vcvt.s32.f32 %v3220
    %v3258 = vcvt.s32.f32 %v3221
    %v3259 = vcvt.s32.f32 %v3222
    %v3260 = vcvt.s32.f32 %v3223
    %v3261 = vcvt.s32.f32 %v3224
    %v3262 = vcvt.s32.f32 %v3225
    %v3263 = vcvt.s32.f32 %v3226
    %v3264 = vcvt.s32.f32 %v3227
    %v3265 = vcvt.s32.f32 %v3228
    %v3266 = vcvt.s32.f32 %v3229
    %v3267 = vcvt.s32.f32 %v3230
    %v3268 = vcvt.s32.f32 %v3231
    %v3269 = vcvt.s32.f32 %v3232
    %v3270 = vcvt.s32.f32 %v3233
    %v3271 = vcvt.s32.f32 %v3234
    %v3272 = vcvt.s32.f32 %v3235
    %v3273 = vcvt.s32.f32 %v3236
    %v3274 = vcvt.s32.f32 %v3237
    %v3275 = vcvt.s32.f32 %v3238
    %v3276 = vcvt.s32.f32 %v3239
    %v3277 = vcvt.s32.f32 %v3240
    %v3278 = vcvt.s32.f32 %v3241
    %v3279 = vcvt.s32.f32 %v3242
    %v3280 = vcvt.s32.f32 %v3243
    %v3281 = vcvt.s32.f32 %v3244
    %v3282 = vcvt.s32.f32 %v3245
    %v3283 = vcvt.s32.f32 %v3246
    %v3284 = vcvt.s32.f32 %v3247
    %v3285 = vcvt.s32.f32 %v3248
    %v3286 = vcvt.s32.f32 %v3249
    %v3287 = vcvt.s32.f32 %v3250
    %v3288 = vcvt.s32.f32 %v3251
    %v3289 = vcvt.s32.f32 %v3252
    %v3290 = vcvt.s32.f32 %v3253
    %v3292 = vsel %vm1298, %v3288, 0
    %v3295 = vsel %vm1298, %v3289, 0
    %v3298 = vsel %vm1298, %v3290, 0
    %3300 = vmatpush.msra.mxu0 %v3279
    %3301 = vmatpush.msra.mxu0 %v3276
    %3302 = vmatpush.msra.mxu0 %v3273
    %3303 = vmatpush.msra.mxu0 %v3270
    %3304 = vmatpush.msra.mxu0 %v3267
    %3305 = vmatpush.msra.mxu0 %v3264
    %3306 = vmatpush.msra.mxu0 %v2302
    %3307 = vmatpush.msra.mxu0 %v2300
    %3308 = vmatpush.msra.mxu0 %v2298
    %3309 = vmatpush.msra.mxu0 %v2296
    %3310 = vmatpush.msra.mxu0 %v2294
    %3311 = vmatpush.msra.mxu0 %v1711
    %3312 = vmatpush.msra.mxu0 %v1710
    %3313 = vmatpush.msra.mxu0 %v1709
    %3314 = vmatpush.msra.mxu0 %v1708
    %3315 = vmatpush.msra.mxu0 %v1707
    %3316 = vmatmul.f32.gmra.mxu0 %v2497
    %v3317 = vpop.f32.mrf.mxu0
    %v3318 = vadd.f32 0.0, %v3317
    %3319 = vmatmul.f32.gmra.mxu0 %v2499
    %v3320 = vpop.f32.mrf.mxu0
    %v3321 = vadd.f32 0.0, %v3320
    %3322 = vdwg.mxu0
    %3323 = vmatpush.msra.mxu0 0.0
    %3324 = vmatpush.msra.mxu0 0.0
    %3325 = vmatpush.msra.mxu0 0.0
    %3326 = vmatpush.msra.mxu0 0.0
    %3327 = vmatpush.msra.mxu0 0.0
    %3328 = vmatpush.msra.mxu0 0.0
    %3329 = vmatpush.msra.mxu0 0.0
    %3330 = vmatpush.msra.mxu0 0.0
    %3331 = vmatpush.msra.mxu0 0.0
    %3332 = vmatpush.msra.mxu0 0.0
    %3333 = vmatpush.msra.mxu0 0.0
    %3334 = vmatpush.msra.mxu0 0.0
    %3335 = vmatpush.msra.mxu0 0.0
    %3336 = vmatpush.msra.mxu0 %v3292
    %3337 = vmatpush.msra.mxu0 %v3285
    %3338 = vmatpush.msra.mxu0 %v3282
    %3339 = vmatmul.f32.gmra.mxu0 %v2632
    %v3340 = vpop.f32.mrf.mxu0
    %v3341 = vadd.f32 %v3318, %v3340
    %3342 = vmatmul.f32.gmra.mxu0 %v2635
    %v3343 = vpop.f32.mrf.mxu0
    %v3344 = vadd.f32 %v3321, %v3343
    %3345 = vdwg.mxu0
    %3346 = vmatpush.msra.mxu0 %v3280
    %3347 = vmatpush.msra.mxu0 %v3277
    %3348 = vmatpush.msra.mxu0 %v3274
    %3349 = vmatpush.msra.mxu0 %v3271
    %3350 = vmatpush.msra.mxu0 %v3268
    %3351 = vmatpush.msra.mxu0 %v3265
    %3352 = vmatpush.msra.mxu0 %v2303
    %3353 = vmatpush.msra.mxu0 %v2301
    %3354 = vmatpush.msra.mxu0 %v2299
    %3355 = vmatpush.msra.mxu0 %v2297
    %3356 = vmatpush.msra.mxu0 %v2295
    %3357 = vmatpush.msra.mxu0 %v2293
    %3358 = vmatpush.msra.mxu0 %v2292
    %3359 = vmatpush.msra.mxu0 %v2291
    %3360 = vmatpush.msra.mxu0 %v2290
    %3361 = vmatpush.msra.mxu0 %v2289
    %3362 = vmatmul.f32.gmra.mxu0 %v2497
    %v3363 = vpop.f32.mrf.mxu0
    %v3364 = vadd.f32 0.0, %v3363
    %3365 = vmatmul.f32.gmra.mxu0 %v2499
    %v3366 = vpop.f32.mrf.mxu0
    %v3367 = vadd.f32 0.0, %v3366
    %3368 = vdwg.mxu0
    %3369 = vmatpush.msra.mxu0 0.0
    %3370 = vmatpush.msra.mxu0 0.0
    %3371 = vmatpush.msra.mxu0 0.0
    %3372 = vmatpush.msra.mxu0 0.0
    %3373 = vmatpush.msra.mxu0 0.0
    %3374 = vmatpush.msra.mxu0 0.0
    %3375 = vmatpush.msra.mxu0 0.0
    %3376 = vmatpush.msra.mxu0 0.0
    %3377 = vmatpush.msra.mxu0 0.0
    %3378 = vmatpush.msra.mxu0 0.0
    %3379 = vmatpush.msra.mxu0 0.0
    %3380 = vmatpush.msra.mxu0 0.0
    %3381 = vmatpush.msra.mxu0 0.0
    %3382 = vmatpush.msra.mxu0 %v3295
    %3383 = vmatpush.msra.mxu0 %v3286
    %3384 = vmatpush.msra.mxu0 %v3283
    %3385 = vmatmul.f32.gmra.mxu0 %v2632
    %v3386 = vpop.f32.mrf.mxu0
    %v3387 = vadd.f32 %v3364, %v3386
    %3388 = vmatmul.f32.gmra.mxu0 %v2635
    %v3389 = vpop.f32.mrf.mxu0
    %v3390 = vadd.f32 %v3367, %v3389
    %3391 = vdwg.mxu0
    %3392 = vmatpush.msra.mxu0 %v3281
    %3393 = vmatpush.msra.mxu0 %v3278
    %3394 = vmatpush.msra.mxu0 %v3275
    %3395 = vmatpush.msra.mxu0 %v3272
    %3396 = vmatpush.msra.mxu0 %v3269
    %3397 = vmatpush.msra.mxu0 %v3266
    %3398 = vmatpush.msra.mxu0 %v3263
    %3399 = vmatpush.msra.mxu0 %v3262
    %3400 = vmatpush.msra.mxu0 %v3261
    %3401 = vmatpush.msra.mxu0 %v3260
    %3402 = vmatpush.msra.mxu0 %v3259
    %3403 = vmatpush.msra.mxu0 %v3258
    %3404 = vmatpush.msra.mxu0 %v3257
    %3405 = vmatpush.msra.mxu0 %v3256
    %3406 = vmatpush.msra.mxu0 %v3255
    %3407 = vmatpush.msra.mxu0 %v3254
    %3408 = vmatmul.f32.gmra.mxu0 %v2497
    %v3409 = vpop.f32.mrf.mxu0
    %v3410 = vadd.f32 0.0, %v3409
    %3411 = vmatmul.f32.gmra.mxu0 %v2499
    %v3412 = vpop.f32.mrf.mxu0
    %v3413 = vadd.f32 0.0, %v3412
    %3414 = vdwg.mxu0
    %3415 = vmatpush.msra.mxu0 0.0
    %3416 = vmatpush.msra.mxu0 0.0
    %3417 = vmatpush.msra.mxu0 0.0
    %3418 = vmatpush.msra.mxu0 0.0
    %3419 = vmatpush.msra.mxu0 0.0
    %3420 = vmatpush.msra.mxu0 0.0
    %3421 = vmatpush.msra.mxu0 0.0
    %3422 = vmatpush.msra.mxu0 0.0
    %3423 = vmatpush.msra.mxu0 0.0
    %3424 = vmatpush.msra.mxu0 0.0
    %3425 = vmatpush.msra.mxu0 0.0
    %3426 = vmatpush.msra.mxu0 0.0
    %3427 = vmatpush.msra.mxu0 0.0
    %3428 = vmatpush.msra.mxu0 %v3298
    %3429 = vmatpush.msra.mxu0 %v3287
    %3430 = vmatpush.msra.mxu0 %v3284
    %3431 = vmatmul.f32.gmra.mxu0 %v2632
    %v3432 = vpop.f32.mrf.mxu0
    %v3433 = vadd.f32 %v3410, %v3432
    %3434 = vmatmul.f32.gmra.mxu0 %v2635
    %v3435 = vpop.f32.mrf.mxu0
    %v3436 = vadd.f32 %v3413, %v3435
    %3437 = vdwg.mxu0
    %s3438 = scalar_lea.vmem %s53, 4
    %v3439 = vld [vmem:[%s3438] sm:$0x3]
    %v3441 = vsel %vm769, %v3439, 0
    %3443 = vmatpush.msra.mxu0 0.0
    %3444 = vmatpush.msra.mxu0 0.0
    %3445 = vmatpush.msra.mxu0 0.0
    %3446 = vmatpush.msra.mxu0 0.0
    %3447 = vmatpush.msra.mxu0 0.0
    %3448 = vmatpush.msra.mxu0 0.0
    %3449 = vmatpush.msra.mxu0 0.0
    %3450 = vmatpush.msra.mxu0 0.0
    %3451 = vmatpush.msra.mxu0 0.0
    %3452 = vmatpush.msra.mxu0 0.0
    %3453 = vmatpush.msra.mxu0 0.0
    %3454 = vmatpush.msra.mxu0 0.0
    %3455 = vmatpush.msra.mxu0 0.0
    %3456 = vmatpush.msra.mxu0 0.0
    %3457 = vmatpush.msra.mxu0 %v3344
    %3458 = vmatpush.msra.mxu0 %v3341
    %3459 = vmatmul.f32.gmra.mxu0 %v3441
    %v3460 = vpop.f32.mrf.mxu0
    %v3461 = vadd.f32 0.0, %v3460
    %3462 = vdwg.mxu0
    %3463 = vmatpush.msra.mxu0 0.0
    %3464 = vmatpush.msra.mxu0 0.0
    %3465 = vmatpush.msra.mxu0 0.0
    %3466 = vmatpush.msra.mxu0 0.0
    %3467 = vmatpush.msra.mxu0 0.0
    %3468 = vmatpush.msra.mxu0 0.0
    %3469 = vmatpush.msra.mxu0 0.0
    %3470 = vmatpush.msra.mxu0 0.0
    %3471 = vmatpush.msra.mxu0 0.0
    %3472 = vmatpush.msra.mxu0 0.0
    %3473 = vmatpush.msra.mxu0 0.0
    %3474 = vmatpush.msra.mxu0 0.0
    %3475 = vmatpush.msra.mxu0 0.0
    %3476 = vmatpush.msra.mxu0 0.0
    %3477 = vmatpush.msra.mxu0 %v3390
    %3478 = vmatpush.msra.mxu0 %v3387
    %3479 = vmatmul.f32.gmra.mxu0 %v3441
    %v3480 = vpop.f32.mrf.mxu0
    %v3481 = vadd.f32 0.0, %v3480
    %3482 = vdwg.mxu0
    %3483 = vmatpush.msra.mxu0 0.0
    %3484 = vmatpush.msra.mxu0 0.0
    %3485 = vmatpush.msra.mxu0 0.0
    %3486 = vmatpush.msra.mxu0 0.0
    %3487 = vmatpush.msra.mxu0 0.0
    %3488 = vmatpush.msra.mxu0 0.0
    %3489 = vmatpush.msra.mxu0 0.0
    %3490 = vmatpush.msra.mxu0 0.0
    %3491 = vmatpush.msra.mxu0 0.0
    %3492 = vmatpush.msra.mxu0 0.0
    %3493 = vmatpush.msra.mxu0 0.0
    %3494 = vmatpush.msra.mxu0 0.0
    %3495 = vmatpush.msra.mxu0 0.0
    %3496 = vmatpush.msra.mxu0 0.0
    %3497 = vmatpush.msra.mxu0 %v3436
    %3498 = vmatpush.msra.mxu0 %v3433
    %3499 = vmatmul.f32.gmra.mxu0 %v3441
    %v3500 = vpop.f32.mrf.mxu0
    %v3501 = vadd.f32 0.0, %v3500
    %3502 = vdwg.mxu0
    %v3503 = vadd.f32 %v3129, %v3461
    %v3504 = vadd.f32 %v3149, %v3481
    %v3505 = vadd.f32 %v3169, %v3501
    %v3506 = vld [vmem:[#allocation4] sm:$0x1]
    %v3508 = vperm.slane %v3506, 0
    %3509 = vset.pattern.permute.xlu0 0
    %3510 = vperm.xlu0 %3509, %v3508
    %v3511 = vpop.permute.xlu0 %3510
    %v3513 = vadd.f32 %v3503, %v3511
    %v3514 = vadd.f32 %v3504, %v3511
    %v3515 = vadd.f32 %v3505, %v3511
    %v3516 = vmax.f32 %v3513, 0.0
    %v3517 = vmax.f32 %v3514, 0.0
    %v3518 = vmax.f32 %v3515, 0.0
    %v3522 = vrot.slane %v3517, 6
    %v3523 = vrot.slane %v3518, 4
    %v3524 = vsel %vm468, %v3516, %v3522
    %v3525 = vsel %vm1052, %v3524, %v3523
    %vm3527 = vcmask 1043458
    %vm3528 = vmor %vm3527, %vm468
    %vm3529 = vcmask 357380
    %vm3530 = vmor %vm3529, %vm3528
    %3531 = vst.msk [vmem:[#allocation6] sm:$0x3f] %vm3530, %v3525
    %v3532 = vld [vmem:[%s57] sm:$0xff]
    %v3533 = vld [vmem:[%s57 + $0x8] sm:$0x3]
    %v3534 = vld [vmem:[%s59] sm:$0x1]
    %v3536 = vperm.slane %v3534, 0
    %v3539 = vsel %vm468, %v3533, 0
    %3541 = vmatpush.msra.mxu0 0.0
    %3542 = vmatpush.msra.mxu0 0.0
    %3543 = vmatpush.msra.mxu0 0.0
    %3544 = vmatpush.msra.mxu0 0.0
    %3545 = vmatpush.msra.mxu0 0.0
    %3546 = vmatpush.msra.mxu0 0.0
    %3547 = vmatpush.msra.mxu0 0.0
    %3548 = vmatpush.msra.mxu0 0.0
    %3549 = vmatpush.msra.mxu0 0.0
    %3550 = vmatpush.msra.mxu0 0.0
    %3551 = vmatpush.msra.mxu0 0.0
    %3552 = vmatpush.msra.mxu0 0.0
    %3553 = vmatpush.msra.mxu0 0.0
    %3554 = vmatpush.msra.mxu0 0.0
    %3555 = vmatpush.msra.mxu0 %v3539
    %3556 = vmatpush.msra.mxu0 %v3532
    %3557 = vmatmul.f32.gmra.mxu0 %v1477
    %v3558 = vpop.f32.mrf.mxu0
    %v3559 = vadd.f32 %v3536, %v3558
    %3560 = vdwg.mxu0
    %vm3561 = vcmp.ge.f32.partialorder %v3559, 0.0
    %v3562 = vmul.f32 %v3559, 0.2
    %v3563 = vsel %vm3561, %v3559, %v3562
    %v3564 = vld [vmem:[%s61] sm:$0xff]
    %v3565 = vld [vmem:[%s61 + $0x8] sm:$0xff]
    %v3566 = vld [vmem:[%s61 + $0x10] sm:$0xf]
    %v3567 = vld [vmem:[#allocation5] sm:$0x1]
    %v3569 = vperm.slane %v3567, 0
    %v3572 = vsel %vm1440, %v3563, 0
    %v3575 = vsel %vm1052, %v3566, 0
    %3577 = vmatpush.msra.mxu0 0.0
    %3578 = vmatpush.msra.mxu0 0.0
    %3579 = vmatpush.msra.mxu0 0.0
    %3580 = vmatpush.msra.mxu0 0.0
    %3581 = vmatpush.msra.mxu0 0.0
    %3582 = vmatpush.msra.mxu0 0.0
    %3583 = vmatpush.msra.mxu0 0.0
    %3584 = vmatpush.msra.mxu0 0.0
    %3585 = vmatpush.msra.mxu0 0.0
    %3586 = vmatpush.msra.mxu0 0.0
    %3587 = vmatpush.msra.mxu0 0.0
    %3588 = vmatpush.msra.mxu0 0.0
    %3589 = vmatpush.msra.mxu0 0.0
    %3590 = vmatpush.msra.mxu0 %v3575
    %3591 = vmatpush.msra.mxu0 %v3565
    %3592 = vmatpush.msra.mxu0 %v3564
    %3593 = vmatmul.f32.gmra.mxu0 %v3572
    %v3594 = vpop.f32.mrf.mxu0
    %v3595 = vadd.f32 %v3569, %v3594
    %3596 = vdwg.mxu0
    %vm3597 = vcmp.gt.f32.partialorder %v3595, 20.0
    %v3598 = vmin.f32 %v3595, 20.0
    %v3599 = vmul.f32 %v3598, 1.442695
    %v3600 = vpow.pop %v3599
    %v3601 = vadd.f32 %v3600, 1.0
    %v3602 = vlog2.pop %v3601
    %v3603 = vmul.f32 %v3602, 0.6931472
    %v3604 = vmul.f32 -0.5, %v3600
    %v3605 = vadd.f32 %v3604, 1.0
    %v3606 = vmul.f32 %v3605, %v3600
    %v3607 = vand.u32 2147483647, %v3600
    %vm3608 = vcmp.lt.f32.partialorder %v3607, 0.0004427343
    %v3609 = vsel %vm3608, %v3606, %v3603
    %v3610 = vsel %vm3597, %v3595, %v3609
    %vm3611 = vcmask 1024
    %3612 = vst.msk [vmem:[%s67] sm:$0x3] %vm3611, %v3610
    // Predicated region
    $region130: #{generator_forward.1} parent=1 // pred_check
      _
    $region131: #{generator_forward.1} parent=1 // pred_check_branch
      %3614 = sbr.rel (0) target = $region133
    $region132: #{generator_forward.1} parent=1 // pred_region
      %3616 = vsyncadd [#allocation7], 0
      %s3618 = sshll.u32 [#allocation6], 4
      %s3619 = int_to_ptr.vmem [resolvable:$true] %s3618
      %s3620 = sshll.u32 %s65, 4
      %s3621 = int_to_ptr.hbm [resolvable:$true] %s3620
      %3623 = dma.vmem_to_hbm [thread:$0]  %s3619, 96, %s3621, [#allocation7]
    $region133: #{generator_forward.1} parent=1 // pred_fallthru
      _
    // Predicated region
    $region134: #{generator_forward.1} parent=1 // pred_check
      _
    $region135: #{generator_forward.1} parent=1 // pred_check_branch
      %3625 = sbr.rel (0) target = $region137
    $region136: #{generator_forward.1} parent=1 // pred_region
      _
    $region137: #{generator_forward.1} parent=1 // pred_fallthru
      _
    // Predicated region
    $region138: #{generator_forward.1} parent=1 // pred_check
      _
    $region139: #{generator_forward.1} parent=1 // pred_check_branch
      %3627 = sbr.rel (0) target = $region141
    $region140: #{generator_forward.1} parent=1 // pred_region
      %3629 = dma.done [#allocation7], 96
    $region141: #{generator_forward.1} parent=1 // pred_fallthru
      _
    // Predicated region
    $region142: #{generator_forward.1} parent=1 // pred_check
      _
    $region143: #{generator_forward.1} parent=1 // pred_check_branch
      %3631 = sbr.rel (0) target = $region145
    $region144: #{generator_forward.1} parent=1 // pred_region
      _
    $region145: #{generator_forward.1} parent=1 // pred_fallthru
      _
    %3632 = vsyncpa [#allocation7], 1

</llo_original>
